<compile_context>
chip_gen: v6e
topology: v6e:2x2x1
jax: 0.10.0
libtpu: 0.0.40
codegen_flags: <defaults>
</compile_context>

<pallas_src>
import jax
import jax.numpy as jnp
import numpy as np
from jax.experimental import pallas as pl
from jax.experimental.pallas import tpu as pltpu

NEG_SLOPE = 0.01                                   # F.leaky_relu default
LN_EPS = 1e-5                                      # nn.LayerNorm default
GEN_EPS = 1e-7                                     # pyg GENConv message eps
BN_SCALE = float(1.0 / np.sqrt(1.0 + 1e-5))        # eval BatchNorm1d, init stats
SUB = 8                                            # sublane pad for the dense-path row


def _leaky_relu(x):
    return jnp.where(x >= 0, x, NEG_SLOPE * x)


def _round_up(x, m):
    return (x + m - 1) // m * m


# ----------------------- fused per-graph kernel (grid = B) --------------------
def make_fused_kernel(e_real, e_pad, nodes_real, nodes_pad, num_layers):
    inv_e = 1.0 / float(e_real)
    inv_nodes = 1.0 / float(nodes_real)
    f32, bf16 = jnp.float32, jnp.bfloat16

    def kernel(xflat_ref, w1_ref, b1_ref, w2_ref, b2_ref,
               xnode_ref, wenc_ref, benc_ref, adj_ref,
               gamma_ref, beta_ref, wm1_ref, bm1_ref, wm2_ref, bm2_ref,
               wdec_ref, bdec_ref, y_ref, rhs_scr):
        # ---- dense frontend on this graph's row of x.view(-1, in_dim) ----
        h = jnp.dot(xflat_ref[...].astype(bf16), w1_ref[...],
                    preferred_element_type=f32) + b1_ref[...]
        h = _leaky_relu(h)
        h = jnp.dot(h.astype(bf16), w2_ref[...],
                    preferred_element_type=f32) + b2_ref[...]
        xs = _leaky_relu(h)                                   # [SUB, E_P], row 0 real

        # ---- node encoder: Linear(1, E) as a broadcast (VPU) ----
        x = xnode_ref[...] * wenc_ref[...] + benc_ref[...]    # [NP, E_P]
        adj = adj_ref[...]                                    # [NP, NP] bf16 (0/1)

        # masks hoisted out of the layer loop (broadcasts are not CSE'd)
        lane = jax.lax.broadcasted_iota(jnp.int32, (1, e_pad), 1)
        lane_mask = (lane < e_real).astype(f32)
        rows = jax.lax.broadcasted_iota(jnp.int32, (nodes_pad, e_pad), 0)
        row_mask = (rows < nodes_real).astype(f32)

        # ---- L x DeepGCNLayer('res+', GENConv), fully unrolled in-kernel ----
        for l in range(num_layers):
            # LayerNorm over the e_real real lanes (padded lanes of x stay 0)
            mean = jnp.sum(x, axis=-1, keepdims=True) * inv_e
            diff = x - mean
            var = jnp.sum(lane_mask * diff * diff, axis=-1, keepdims=True) * inv_e
            hh = diff * jax.lax.rsqrt(var + LN_EPS)
            hh = hh * gamma_ref[l] + beta_ref[l]              # padded gamma/beta = 0
            hh = jnp.maximum(hh, 0.0)                         # ReLU; dropout=id (eval)

            # GENConv message + per-destination softmax aggregation
            msg = hh + GEN_EPS                                # relu(h)+eps (h >= 0)
            shift = jnp.max(msg * row_mask, axis=0, keepdims=True)  # cancels in num/den
            e = jnp.exp(msg - shift)
            rhs_scr[:, :e_pad] = (e * msg).astype(bf16)       # reused scratch, no concat
            rhs_scr[:, e_pad:] = e.astype(bf16)
            nd = jnp.dot(adj, rhs_scr[...], preferred_element_type=f32)
            num = nd[:, :e_pad]
            den = nd[:, e_pad:]
            den_ok = den > 0.0
            inv_den = pl.reciprocal(jnp.where(den_ok, den, 1.0), approx=True)
            agg = jnp.where(den_ok, num * inv_den, 0.0)

            # root add + MLP (eval-BN scale pre-folded into wm1/bm1)
            o = agg + hh
            o = jnp.dot(o.astype(bf16), wm1_ref[l],
                        preferred_element_type=f32) + bm1_ref[l]
            o = jnp.maximum(o, 0.0)
            o = jnp.dot(o.astype(bf16), wm2_ref[l],
                        preferred_element_type=f32) + bm2_ref[l]
            x = x + o                                         # 'res+' residual

        # ---- exact global mean pool + combine + decoder (0.5 folded into w_dec) ----
        pooled = jnp.sum(x * row_mask, axis=0, keepdims=True) * inv_nodes  # [1, E_P] f32
        z = xs + pooled
        y = jnp.dot(z.astype(bf16), wdec_ref[...],
                    preferred_element_type=f32) + bdec_ref[...]
        y_ref[...] = y[None]

    return kernel


# ---------------------------------- wrapper -----------------------------------
def deep_rna_gen_conv_forward(x_nodes, adj, params, in_dim, num_layers):
    f32, bf16 = jnp.float32, jnp.bfloat16
    N = x_nodes.shape[0]
    B = N // in_dim
    E = params["w_enc"].shape[1]
    H1 = params["w1"].shape[1]
    OUT = params["w_dec"].shape[1]
    L = num_layers

    # lane/sublane friendly padded sizes
    E_P = _round_up(E, 128)
    H1_P = _round_up(H1, 128)
    OUT_P = _round_up(OUT, 128)
    NP = _round_up(in_dim, 8)                      # nodes per graph, sublane padded

    def pad2(a, r, c):
        return jnp.pad(a, ((0, r - a.shape[0]), (0, c - a.shape[1])))

    def pad3(a, r, c):
        return jnp.pad(a, ((0, 0), (0, r - a.shape[1]), (0, c - a.shape[2])))

    # per-graph inputs (block-diagonal batch: off-diagonal adj blocks never touched)
    x_flat = jnp.pad(x_nodes.reshape(B, 1, in_dim).astype(f32),
                     ((0, 0), (0, SUB - 1), (0, 0)))               # [B, SUB, in_dim]
    x_node = jnp.pad(x_nodes.reshape(B, in_dim, 1).astype(f32),
                     ((0, 0), (0, NP - in_dim), (0, 0)))           # [B, NP, 1]
    adj_blk = jnp.stack([adj[g * in_dim:(g + 1) * in_dim,
                             g * in_dim:(g + 1) * in_dim] for g in range(B)])
    adj_blk = jnp.pad(adj_blk, ((0, 0), (0, NP - in_dim),
                                (0, NP - in_dim))).astype(bf16)    # [B, NP, NP] 0/1

    # weights: zero-padded; matmul operands bf16, biases/affine f32; exact folds
    w1 = pad2(params["w1"], in_dim, H1_P).astype(bf16)
    b1 = pad2(params["b1"], 1, H1_P).astype(f32)
    w2 = pad2(params["w2"], H1_P, E_P).astype(bf16)
    b2 = pad2(params["b2"], 1, E_P).astype(f32)
    w_enc = pad2(params["w_enc"], 1, E_P).astype(f32)
    b_enc = pad2(params["b_enc"], 1, E_P).astype(f32)
    gamma = pad3(params["ln_gamma"], 1, E_P).astype(f32)           # padded lanes = 0
    beta = pad3(params["ln_beta"], 1, E_P).astype(f32)
    wm1 = pad3(params["w_mlp1"] * BN_SCALE, E_P, 2 * E_P).astype(bf16)   # BN fold
    bm1 = pad3(params["b_mlp1"] * BN_SCALE, 1, 2 * E_P).astype(f32)
    wm2 = pad3(params["w_mlp2"], 2 * E_P, E_P).astype(bf16)
    bm2 = pad3(params["b_mlp2"], 1, E_P).astype(f32)
    w_dec = pad2(params["w_dec"] * 0.5, E_P, OUT_P).astype(bf16)         # 0.5*z fold
    b_dec = pad2(params["b_dec"], 1, OUT_P).astype(f32)

    kernel = make_fused_kernel(E, E_P, in_dim, NP, L)

    def invariant(shape):
        n = len(shape)
        return pl.BlockSpec(shape, lambda g, _n=n: (0,) * _n)

    def per_graph(*trailing):
        k = len(trailing)
        return pl.BlockSpec((pl.Squeezed(),) + tuple(trailing),
                            lambda g, _k=k: (g,) + (0,) * _k)

    y = pl.pallas_call(
        kernel,
        out_shape=jax.ShapeDtypeStruct((B, SUB, OUT_P), f32),
        grid=(B,),
        in_specs=[
            per_graph(SUB, in_dim),        # x_flat row for this graph
            invariant((in_dim, H1_P)),     # w1 (bf16)
            invariant((1, H1_P)),          # b1
            invariant((H1_P, E_P)),        # w2 (bf16)
            invariant((1, E_P)),           # b2
            per_graph(NP, 1),              # this graph's node features
            invariant((1, E_P)),           # w_enc
            invariant((1, E_P)),           # b_enc
            per_graph(NP, NP),             # this graph's adjacency block (bf16)
            invariant((L, 1, E_P)),        # ln_gamma stack
            invariant((L, 1, E_P)),        # ln_beta stack
            invariant((L, E_P, 2 * E_P)),  # w_mlp1 stack (bf16, BN folded)
            invariant((L, 1, 2 * E_P)),    # b_mlp1 stack (BN folded)
            invariant((L, 2 * E_P, E_P)),  # w_mlp2 stack (bf16)
            invariant((L, 1, E_P)),        # b_mlp2 stack
            invariant((E_P, OUT_P)),       # w_dec (bf16, 0.5 folded)
            invariant((1, OUT_P)),         # b_dec
        ],
        out_specs=pl.BlockSpec((1, SUB, OUT_P), lambda g: (g, 0, 0)),
        scratch_shapes=[pltpu.VMEM((NP, 2 * E_P), bf16)],   # fused aggregation RHS
        compiler_params=pltpu.CompilerParams(
            dimension_semantics=("parallel",)),
    )(x_flat, w1, b1, w2, b2, x_node, w_enc, b_enc, adj_blk,
      gamma, beta, wm1, bm1, wm2, bm2, w_dec, b_dec)

    return y[:, 0, 0]                      # x[:, 0] per graph


# ----------------------- pure-JAX reference (sanity) --------------------------
# Mirrors the kernel's bf16 matmul operands / f32 accumulation (unpadded shapes) so
# the check validates the Pallas logic tightly; bf16 operands deviate from a strict
# f32 PyTorch run by <~1% (exact for the 0/1 adjacency mask).
def reference_forward(x_nodes, adj, params, in_dim, num_layers):
    def bdot(a, b):
        return jnp.dot(a.astype(jnp.bfloat16), b.astype(jnp.bfloat16),
                       preferred_element_type=jnp.float32)

    N = x_nodes.shape[0]
    B = N // in_dim
    E = params["w_enc"].shape[1]
    x_flat = x_nodes.reshape(B, in_dim)
    xs = _leaky_relu(bdot(x_flat, params["w1"]) + params["b1"])
    xs = _leaky_relu(bdot(xs, params["w2"]) + params["b2"])
    x = x_nodes * params["w_enc"] + params["b_enc"]
    for l in range(num_layers):
        mean = x.mean(-1, keepdims=True)
        var = ((x - mean) ** 2).mean(-1, keepdims=True)
        h = (x - mean) / jnp.sqrt(var + LN_EPS)
        h = h * params["ln_gamma"][l, 0] + params["ln_beta"][l, 0]
        h = jnp.maximum(h, 0.0)
        msg = h + GEN_EPS
        shift = msg.reshape(B, in_dim, E).max(axis=1, keepdims=True)  # per-graph shift
        e = jnp.exp(msg.reshape(B, in_dim, E) - shift).reshape(N, E)
        num = bdot(adj, e * msg)
        den = bdot(adj, e)
        agg = jnp.where(den > 0, num / jnp.where(den > 0, den, 1.0), 0.0)
        o = agg + h
        o = bdot(o, params["w_mlp1"][l]) + params["b_mlp1"][l, 0]
        o = jnp.maximum(o * BN_SCALE, 0.0)
        o = bdot(o, params["w_mlp2"][l]) + params["b_mlp2"][l, 0]
        x = x + o
    pooled = x.reshape(B, in_dim, E).mean(axis=1)          # global_mean_pool (f32)
    z = 0.5 * xs + 0.5 * pooled
    return (bdot(z, params["w_dec"]) + params["b_dec"])[:, 0]


if __name__ == "__main__":
    B = 2           # graphs in batch
    IN_DIM = 16     # in_dim (nodes per graph), synthetic stand-in for len(ppi csv)
    F_NODE = 1      # node_features_dim
    EMB = 100       # node_embedding_dim (fixed by hidden2 output)
    H1 = 1000       # hidden1 output (hard-coded in module)
    OUT_DIM = 4     # node_output_features_dim
    L = 3           # num_layers
    N = B * IN_DIM

    key = jax.random.PRNGKey(0)
    keys = jax.random.split(key, 16)

    def w(k, shape, scale=0.1):
        return (scale * jax.random.normal(k, shape)).astype(jnp.float32)

    params = dict(
        w1=w(keys[0], (IN_DIM, H1)),      b1=w(keys[1], (1, H1)),
        w2=w(keys[2], (H1, EMB)),         b2=w(keys[3], (1, EMB)),
        w_enc=w(keys[4], (F_NODE, EMB)),  b_enc=w(keys[5], (1, EMB)),
        ln_gamma=jnp.ones((L, 1, EMB), jnp.float32),
        ln_beta=jnp.zeros((L, 1, EMB), jnp.float32),
        w_mlp1=w(keys[6], (L, EMB, 2 * EMB)), b_mlp1=w(keys[7], (L, 1, 2 * EMB)),
        w_mlp2=w(keys[8], (L, 2 * EMB, EMB)), b_mlp2=w(keys[9], (L, 1, EMB)),
        w_dec=w(keys[10], (EMB, OUT_DIM)),    b_dec=w(keys[11], (1, OUT_DIM)),
    )

    x_nodes = w(keys[12], (N, F_NODE), scale=1.0)

    # deterministic block-diagonal edge set (PyG batching): ring + skip-3 per graph
    adj_np = np.zeros((N, N), np.float32)           # adj[dst, src]
    for b in range(B):
        off = b * IN_DIM
        for j in range(IN_DIM):
            adj_np[off + (j + 1) % IN_DIM, off + j] = 1.0
            adj_np[off + (j + 3) % IN_DIM, off + j] = 1.0
    adj = jnp.asarray(adj_np)

    out = deep_rna_gen_conv_forward(x_nodes, adj, params, IN_DIM, L)
    out = jax.block_until_ready(out)
    ref = reference_forward(x_nodes, adj, params, IN_DIM, L)
    assert out.shape == (B,)
    np.testing.assert_allclose(np.asarray(out), np.asarray(ref),
                               rtol=3e-3, atol=3e-3)
    print("KERNEL_OK")
</pallas_src>

<mosaic_0001>
module attributes {stable_mosaic.version = 11 : i64} {
  func.func @kernel(%arg0: i32, %arg1: memref<1x8x16xf32, #tpu.memory_space<vmem>>, %arg2: memref<16x1024xbf16, #tpu.memory_space<vmem>>, %arg3: memref<1x1024xf32, #tpu.memory_space<vmem>>, %arg4: memref<1024x128xbf16, #tpu.memory_space<vmem>>, %arg5: memref<1x128xf32, #tpu.memory_space<vmem>>, %arg6: memref<1x16x1xf32, #tpu.memory_space<vmem>>, %arg7: memref<1x128xf32, #tpu.memory_space<vmem>>, %arg8: memref<1x128xf32, #tpu.memory_space<vmem>>, %arg9: memref<1x16x16xbf16, #tpu.memory_space<vmem>>, %arg10: memref<3x1x128xf32, #tpu.memory_space<vmem>>, %arg11: memref<3x1x128xf32, #tpu.memory_space<vmem>>, %arg12: memref<3x128x256xbf16, #tpu.memory_space<vmem>>, %arg13: memref<3x1x256xf32, #tpu.memory_space<vmem>>, %arg14: memref<3x256x128xbf16, #tpu.memory_space<vmem>>, %arg15: memref<3x1x128xf32, #tpu.memory_space<vmem>>, %arg16: memref<128x128xbf16, #tpu.memory_space<vmem>>, %arg17: memref<1x128xf32, #tpu.memory_space<vmem>>, %arg18: memref<1x8x128xf32, #tpu.memory_space<vmem>>, %arg19: memref<16x256xbf16, #tpu.memory_space<vmem>>) attributes {dimension_semantics = [#tpu.dimension_semantics<parallel>], iteration_bounds = array<i64: 2>, scalar_prefetch = 0 : i64, scratch_operands = 1 : i64, tpu.core_type = #tpu.core_type<tc>, window_params = [{transform_indices = @transform_0, window_bounds = array<i64: 1, 8, 16>}, {pipeline_mode = #tpu.pipeline_mode<synchronous>, transform_indices = @transform_1, window_bounds = array<i64: 16, 1024>}, {pipeline_mode = #tpu.pipeline_mode<synchronous>, transform_indices = @transform_2, window_bounds = array<i64: 1, 1024>}, {pipeline_mode = #tpu.pipeline_mode<synchronous>, transform_indices = @transform_3, window_bounds = array<i64: 1024, 128>}, {pipeline_mode = #tpu.pipeline_mode<synchronous>, transform_indices = @transform_4, window_bounds = array<i64: 1, 128>}, {transform_indices = @transform_5, window_bounds = array<i64: 1, 16, 1>}, {pipeline_mode = #tpu.pipeline_mode<synchronous>, transform_indices = @transform_6, window_bounds = array<i64: 1, 128>}, {pipeline_mode = #tpu.pipeline_mode<synchronous>, transform_indices = @transform_7, window_bounds = array<i64: 1, 128>}, {transform_indices = @transform_8, window_bounds = array<i64: 1, 16, 16>}, {pipeline_mode = #tpu.pipeline_mode<synchronous>, transform_indices = @transform_9, window_bounds = array<i64: 3, 1, 128>}, {pipeline_mode = #tpu.pipeline_mode<synchronous>, transform_indices = @transform_10, window_bounds = array<i64: 3, 1, 128>}, {pipeline_mode = #tpu.pipeline_mode<synchronous>, transform_indices = @transform_11, window_bounds = array<i64: 3, 128, 256>}, {pipeline_mode = #tpu.pipeline_mode<synchronous>, transform_indices = @transform_12, window_bounds = array<i64: 3, 1, 256>}, {pipeline_mode = #tpu.pipeline_mode<synchronous>, transform_indices = @transform_13, window_bounds = array<i64: 3, 256, 128>}, {pipeline_mode = #tpu.pipeline_mode<synchronous>, transform_indices = @transform_14, window_bounds = array<i64: 3, 1, 128>}, {pipeline_mode = #tpu.pipeline_mode<synchronous>, transform_indices = @transform_15, window_bounds = array<i64: 128, 128>}, {pipeline_mode = #tpu.pipeline_mode<synchronous>, transform_indices = @transform_16, window_bounds = array<i64: 1, 128>}, {transform_indices = @transform_17, window_bounds = array<i64: 1, 8, 128>}]} {
    %c0 = arith.constant 0 : index
    %c0_0 = arith.constant 0 : index
    %c0_1 = arith.constant 0 : index
    %0 = vector.load %arg1[%c0, %c0_0, %c0_1] : memref<1x8x16xf32, #tpu.memory_space<vmem>>, vector<1x8x16xf32>
    %1 = vector.shape_cast %0 : vector<1x8x16xf32> to vector<8x16xf32>
    %2 = arith.truncf %1 : vector<8x16xf32> to vector<8x16xbf16>
    %c0_2 = arith.constant 0 : index
    %c0_3 = arith.constant 0 : index
    %3 = vector.load %arg2[%c0_2, %c0_3] : memref<16x1024xbf16, #tpu.memory_space<vmem>>, vector<16x1024xbf16>
    %cst = arith.constant dense<0.000000e+00> : vector<8x1024xf32>
    %4 = tpu.matmul %2, %3, %cst {dimension_numbers = #tpu.dot_dimension_numbers<[1], [0], [0], [1], [0, 0, 1, 1], [], []>} : vector<8x16xbf16>, vector<16x1024xbf16>, vector<8x1024xf32> -> vector<8x1024xf32>
    %c0_4 = arith.constant 0 : index
    %c0_5 = arith.constant 0 : index
    %5 = vector.load %arg3[%c0_4, %c0_5] : memref<1x1024xf32, #tpu.memory_space<vmem>>, vector<1x1024xf32>
    %6 = vector.broadcast %5 : vector<1x1024xf32> to vector<8x1024xf32>
    %7 = arith.addf %4, %6 : vector<8x1024xf32>
    %cst_6 = arith.constant 0.000000e+00 : f32
    %8 = vector.broadcast %cst_6 : f32 to vector<8x1024xf32>
    %9 = arith.cmpf oge, %7, %8 : vector<8x1024xf32>
    %cst_7 = arith.constant 0.00999999977 : f32
    %10 = vector.broadcast %cst_7 : f32 to vector<8x1024xf32>
    %11 = arith.mulf %10, %7 : vector<8x1024xf32>
    %12 = arith.select %9, %7, %11 : vector<8x1024xi1>, vector<8x1024xf32>
    %13 = arith.truncf %12 : vector<8x1024xf32> to vector<8x1024xbf16>
    %c0_8 = arith.constant 0 : index
    %c0_9 = arith.constant 0 : index
    %14 = vector.load %arg4[%c0_8, %c0_9] : memref<1024x128xbf16, #tpu.memory_space<vmem>>, vector<1024x128xbf16>
    %cst_10 = arith.constant dense<0.000000e+00> : vector<8x128xf32>
    %15 = tpu.matmul %13, %14, %cst_10 {dimension_numbers = #tpu.dot_dimension_numbers<[1], [0], [0], [1], [0, 0, 1, 1], [], []>} : vector<8x1024xbf16>, vector<1024x128xbf16>, vector<8x128xf32> -> vector<8x128xf32>
    %c0_11 = arith.constant 0 : index
    %c0_12 = arith.constant 0 : index
    %16 = vector.load %arg5[%c0_11, %c0_12] : memref<1x128xf32, #tpu.memory_space<vmem>>, vector<1x128xf32>
    %17 = vector.broadcast %16 : vector<1x128xf32> to vector<8x128xf32>
    %18 = arith.addf %15, %17 : vector<8x128xf32>
    %cst_13 = arith.constant 0.000000e+00 : f32
    %19 = vector.broadcast %cst_13 : f32 to vector<8x128xf32>
    %20 = arith.cmpf oge, %18, %19 : vector<8x128xf32>
    %cst_14 = arith.constant 0.00999999977 : f32
    %21 = vector.broadcast %cst_14 : f32 to vector<8x128xf32>
    %22 = arith.mulf %21, %18 : vector<8x128xf32>
    %23 = arith.select %20, %18, %22 : vector<8x128xi1>, vector<8x128xf32>
    %c0_15 = arith.constant 0 : index
    %c0_16 = arith.constant 0 : index
    %c0_17 = arith.constant 0 : index
    %24 = vector.load %arg6[%c0_15, %c0_16, %c0_17] : memref<1x16x1xf32, #tpu.memory_space<vmem>>, vector<1x16x1xf32>
    %25 = vector.shape_cast %24 : vector<1x16x1xf32> to vector<16x1xf32>
    %c0_18 = arith.constant 0 : index
    %c0_19 = arith.constant 0 : index
    %26 = vector.load %arg7[%c0_18, %c0_19] : memref<1x128xf32, #tpu.memory_space<vmem>>, vector<1x128xf32>
    %27 = vector.broadcast %25 : vector<16x1xf32> to vector<16x128xf32>
    %28 = vector.broadcast %26 : vector<1x128xf32> to vector<16x128xf32>
    %29 = arith.mulf %27, %28 : vector<16x128xf32>
    %c0_20 = arith.constant 0 : index
    %c0_21 = arith.constant 0 : index
    %30 = vector.load %arg8[%c0_20, %c0_21] : memref<1x128xf32, #tpu.memory_space<vmem>>, vector<1x128xf32>
    %31 = vector.broadcast %30 : vector<1x128xf32> to vector<16x128xf32>
    %32 = arith.addf %29, %31 : vector<16x128xf32>
    %c0_22 = arith.constant 0 : index
    %c0_23 = arith.constant 0 : index
    %c0_24 = arith.constant 0 : index
    %33 = vector.load %arg9[%c0_22, %c0_23, %c0_24] : memref<1x16x16xbf16, #tpu.memory_space<vmem>>, vector<1x16x16xbf16>
    %34 = vector.shape_cast %33 : vector<1x16x16xbf16> to vector<16x16xbf16>
    %35 = tpu.iota {dimensions = array<i32: 1>} : vector<1x128xi32>
    %c100_i32 = arith.constant 100 : i32
    %36 = vector.broadcast %c100_i32 : i32 to vector<1x128xi32>
    %37 = arith.cmpi slt, %35, %36 : vector<1x128xi32>
    %38 = arith.extui %37 : vector<1x128xi1> to vector<1x128xi32>
    %39 = arith.sitofp %38 : vector<1x128xi32> to vector<1x128xf32>
    %40 = tpu.iota {dimensions = array<i32: 0>} : vector<16x128xi32>
    %c16_i32 = arith.constant 16 : i32
    %41 = vector.broadcast %c16_i32 : i32 to vector<16x128xi32>
    %42 = arith.cmpi slt, %40, %41 : vector<16x128xi32>
    %43 = arith.extui %42 : vector<16x128xi1> to vector<16x128xi32>
    %44 = arith.sitofp %43 : vector<16x128xi32> to vector<16x128xf32>
    %cst_25 = arith.constant dense<0.000000e+00> : vector<16xf32>
    %45 = vector.multi_reduction <add>, %32, %cst_25 [1] : vector<16x128xf32> to vector<16xf32>
    %46 = vector.shape_cast %45 : vector<16xf32> to vector<16x1xf32>
    %cst_26 = arith.constant 0.00999999977 : f32
    %47 = vector.broadcast %cst_26 : f32 to vector<16x1xf32>
    %48 = arith.mulf %46, %47 : vector<16x1xf32>
    %49 = vector.broadcast %48 : vector<16x1xf32> to vector<16x128xf32>
    %50 = arith.subf %32, %49 : vector<16x128xf32>
    %51 = vector.broadcast %39 : vector<1x128xf32> to vector<16x128xf32>
    %52 = arith.mulf %51, %50 : vector<16x128xf32>
    %53 = arith.mulf %52, %50 : vector<16x128xf32>
    %cst_27 = arith.constant dense<0.000000e+00> : vector<16xf32>
    %54 = vector.multi_reduction <add>, %53, %cst_27 [1] : vector<16x128xf32> to vector<16xf32>
    %55 = vector.shape_cast %54 : vector<16xf32> to vector<16x1xf32>
    %cst_28 = arith.constant 0.00999999977 : f32
    %56 = vector.broadcast %cst_28 : f32 to vector<16x1xf32>
    %57 = arith.mulf %55, %56 : vector<16x1xf32>
    %cst_29 = arith.constant 9.99999974E-6 : f32
    %58 = vector.broadcast %cst_29 : f32 to vector<16x1xf32>
    %59 = arith.addf %57, %58 : vector<16x1xf32>
    %60 = math.rsqrt %59 : vector<16x1xf32>
    %61 = vector.broadcast %60 : vector<16x1xf32> to vector<16x128xf32>
    %62 = arith.mulf %50, %61 : vector<16x128xf32>
    %c0_30 = arith.constant 0 : index
    %c0_31 = arith.constant 0 : index
    %c0_32 = arith.constant 0 : index
    %63 = vector.load %arg10[%c0_30, %c0_31, %c0_32] : memref<3x1x128xf32, #tpu.memory_space<vmem>>, vector<1x1x128xf32>
    %64 = vector.shape_cast %63 : vector<1x1x128xf32> to vector<1x128xf32>
    %65 = vector.broadcast %64 : vector<1x128xf32> to vector<16x128xf32>
    %66 = arith.mulf %62, %65 : vector<16x128xf32>
    %c0_33 = arith.constant 0 : index
    %c0_34 = arith.constant 0 : index
    %c0_35 = arith.constant 0 : index
    %67 = vector.load %arg11[%c0_33, %c0_34, %c0_35] : memref<3x1x128xf32, #tpu.memory_space<vmem>>, vector<1x1x128xf32>
    %68 = vector.shape_cast %67 : vector<1x1x128xf32> to vector<1x128xf32>
    %69 = vector.broadcast %68 : vector<1x128xf32> to vector<16x128xf32>
    %70 = arith.addf %66, %69 : vector<16x128xf32>
    %cst_36 = arith.constant 0.000000e+00 : f32
    %71 = vector.broadcast %cst_36 : f32 to vector<16x128xf32>
    %72 = arith.maximumf %70, %71 : vector<16x128xf32>
    %cst_37 = arith.constant 1.000000e-07 : f32
    %73 = vector.broadcast %cst_37 : f32 to vector<16x128xf32>
    %74 = arith.addf %72, %73 : vector<16x128xf32>
    %75 = arith.mulf %74, %44 : vector<16x128xf32>
    %cst_38 = arith.constant dense<0xFF800000> : vector<128xf32>
    %76 = vector.multi_reduction <maximumf>, %75, %cst_38 [0] : vector<16x128xf32> to vector<128xf32>
    %77 = vector.shape_cast %76 : vector<128xf32> to vector<1x128xf32>
    %78 = vector.broadcast %77 : vector<1x128xf32> to vector<16x128xf32>
    %79 = arith.subf %74, %78 : vector<16x128xf32>
    %80 = math.exp %79 : vector<16x128xf32>
    %81 = arith.mulf %80, %74 : vector<16x128xf32>
    %82 = arith.truncf %81 : vector<16x128xf32> to vector<16x128xbf16>
    %c0_39 = arith.constant 0 : index
    %c0_40 = arith.constant 0 : index
    %83 = vector.load %arg19[%c0_39, %c0_40] : memref<16x256xbf16, #tpu.memory_space<vmem>>, vector<16x128xbf16>
    tpu.vector_store %arg19[%c0_39, %c0_40], %82 {strides = array<i32>} : memref<16x256xbf16, #tpu.memory_space<vmem>>, vector<16x128xbf16>,
    %84 = arith.truncf %80 : vector<16x128xf32> to vector<16x128xbf16>
    %c0_41 = arith.constant 0 : index
    %c128 = arith.constant 128 : index
    %85 = vector.load %arg19[%c0_41, %c128] : memref<16x256xbf16, #tpu.memory_space<vmem>>, vector<16x128xbf16>
    tpu.vector_store %arg19[%c0_41, %c128], %84 {strides = array<i32>} : memref<16x256xbf16, #tpu.memory_space<vmem>>, vector<16x128xbf16>,
    %c0_42 = arith.constant 0 : index
    %c0_43 = arith.constant 0 : index
    %86 = vector.load %arg19[%c0_42, %c0_43] : memref<16x256xbf16, #tpu.memory_space<vmem>>, vector<16x256xbf16>
    %cst_44 = arith.constant dense<0.000000e+00> : vector<16x256xf32>
    %87 = tpu.matmul %34, %86, %cst_44 {dimension_numbers = #tpu.dot_dimension_numbers<[1], [0], [0], [1], [0, 0, 1, 1], [], []>} : vector<16x16xbf16>, vector<16x256xbf16>, vector<16x256xf32> -> vector<16x256xf32>
    %88 = vector.extract_strided_slice %87 {offsets = [0, 0], sizes = [16, 128], strides = [1, 1]} : vector<16x256xf32> to vector<16x128xf32>
    %89 = vector.extract_strided_slice %87 {offsets = [0, 128], sizes = [16, 128], strides = [1, 1]} : vector<16x256xf32> to vector<16x128xf32>
    %cst_45 = arith.constant 0.000000e+00 : f32
    %90 = vector.broadcast %cst_45 : f32 to vector<16x128xf32>
    %91 = arith.cmpf ogt, %89, %90 : vector<16x128xf32>
    %cst_46 = arith.constant 1.000000e+00 : f32
    %92 = vector.broadcast %cst_46 : f32 to vector<16x128xf32>
    %93 = arith.select %91, %89, %92 : vector<16x128xi1>, vector<16x128xf32>
    %94 = tpu.reciprocal %93 {approx = true} : vector<16x128xf32> -> vector<16x128xf32>
    %95 = arith.mulf %88, %94 : vector<16x128xf32>
    %cst_47 = arith.constant 0.000000e+00 : f32
    %96 = vector.broadcast %cst_47 : f32 to vector<16x128xf32>
    %97 = arith.select %91, %95, %96 : vector<16x128xi1>, vector<16x128xf32>
    %98 = arith.addf %97, %72 : vector<16x128xf32>
    %99 = arith.truncf %98 : vector<16x128xf32> to vector<16x128xbf16>
    %c0_48 = arith.constant 0 : index
    %c0_49 = arith.constant 0 : index
    %c0_50 = arith.constant 0 : index
    %100 = vector.load %arg12[%c0_48, %c0_49, %c0_50] : memref<3x128x256xbf16, #tpu.memory_space<vmem>>, vector<1x128x256xbf16>
    %101 = vector.shape_cast %100 : vector<1x128x256xbf16> to vector<128x256xbf16>
    %cst_51 = arith.constant dense<0.000000e+00> : vector<16x256xf32>
    %102 = tpu.matmul %99, %101, %cst_51 {dimension_numbers = #tpu.dot_dimension_numbers<[1], [0], [0], [1], [0, 0, 1, 1], [], []>} : vector<16x128xbf16>, vector<128x256xbf16>, vector<16x256xf32> -> vector<16x256xf32>
    %c0_52 = arith.constant 0 : index
    %c0_53 = arith.constant 0 : index
    %c0_54 = arith.constant 0 : index
    %103 = vector.load %arg13[%c0_52, %c0_53, %c0_54] : memref<3x1x256xf32, #tpu.memory_space<vmem>>, vector<1x1x256xf32>
    %104 = vector.shape_cast %103 : vector<1x1x256xf32> to vector<1x256xf32>
    %105 = vector.broadcast %104 : vector<1x256xf32> to vector<16x256xf32>
    %106 = arith.addf %102, %105 : vector<16x256xf32>
    %cst_55 = arith.constant 0.000000e+00 : f32
    %107 = vector.broadcast %cst_55 : f32 to vector<16x256xf32>
    %108 = arith.maximumf %106, %107 : vector<16x256xf32>
    %109 = arith.truncf %108 : vector<16x256xf32> to vector<16x256xbf16>
    %c0_56 = arith.constant 0 : index
    %c0_57 = arith.constant 0 : index
    %c0_58 = arith.constant 0 : index
    %110 = vector.load %arg14[%c0_56, %c0_57, %c0_58] : memref<3x256x128xbf16, #tpu.memory_space<vmem>>, vector<1x256x128xbf16>
    %111 = vector.shape_cast %110 : vector<1x256x128xbf16> to vector<256x128xbf16>
    %cst_59 = arith.constant dense<0.000000e+00> : vector<16x128xf32>
    %112 = tpu.matmul %109, %111, %cst_59 {dimension_numbers = #tpu.dot_dimension_numbers<[1], [0], [0], [1], [0, 0, 1, 1], [], []>} : vector<16x256xbf16>, vector<256x128xbf16>, vector<16x128xf32> -> vector<16x128xf32>
    %c0_60 = arith.constant 0 : index
    %c0_61 = arith.constant 0 : index
    %c0_62 = arith.constant 0 : index
    %113 = vector.load %arg15[%c0_60, %c0_61, %c0_62] : memref<3x1x128xf32, #tpu.memory_space<vmem>>, vector<1x1x128xf32>
    %114 = vector.shape_cast %113 : vector<1x1x128xf32> to vector<1x128xf32>
    %115 = vector.broadcast %114 : vector<1x128xf32> to vector<16x128xf32>
    %116 = arith.addf %112, %115 : vector<16x128xf32>
    %117 = arith.addf %32, %116 : vector<16x128xf32>
    %cst_63 = arith.constant dense<0.000000e+00> : vector<16xf32>
    %118 = vector.multi_reduction <add>, %117, %cst_63 [1] : vector<16x128xf32> to vector<16xf32>
    %119 = vector.shape_cast %118 : vector<16xf32> to vector<16x1xf32>
    %cst_64 = arith.constant 0.00999999977 : f32
    %120 = vector.broadcast %cst_64 : f32 to vector<16x1xf32>
    %121 = arith.mulf %119, %120 : vector<16x1xf32>
    %122 = vector.broadcast %121 : vector<16x1xf32> to vector<16x128xf32>
    %123 = arith.subf %117, %122 : vector<16x128xf32>
    %124 = vector.broadcast %39 : vector<1x128xf32> to vector<16x128xf32>
    %125 = arith.mulf %124, %123 : vector<16x128xf32>
    %126 = arith.mulf %125, %123 : vector<16x128xf32>
    %cst_65 = arith.constant dense<0.000000e+00> : vector<16xf32>
    %127 = vector.multi_reduction <add>, %126, %cst_65 [1] : vector<16x128xf32> to vector<16xf32>
    %128 = vector.shape_cast %127 : vector<16xf32> to vector<16x1xf32>
    %cst_66 = arith.constant 0.00999999977 : f32
    %129 = vector.broadcast %cst_66 : f32 to vector<16x1xf32>
    %130 = arith.mulf %128, %129 : vector<16x1xf32>
    %cst_67 = arith.constant 9.99999974E-6 : f32
    %131 = vector.broadcast %cst_67 : f32 to vector<16x1xf32>
    %132 = arith.addf %130, %131 : vector<16x1xf32>
    %133 = math.rsqrt %132 : vector<16x1xf32>
    %134 = vector.broadcast %133 : vector<16x1xf32> to vector<16x128xf32>
    %135 = arith.mulf %123, %134 : vector<16x128xf32>
    %c1 = arith.constant 1 : index
    %c0_68 = arith.constant 0 : index
    %c0_69 = arith.constant 0 : index
    %136 = vector.load %arg10[%c1, %c0_68, %c0_69] : memref<3x1x128xf32, #tpu.memory_space<vmem>>, vector<1x1x128xf32>
    %137 = vector.shape_cast %136 : vector<1x1x128xf32> to vector<1x128xf32>
    %138 = vector.broadcast %137 : vector<1x128xf32> to vector<16x128xf32>
    %139 = arith.mulf %135, %138 : vector<16x128xf32>
    %c1_70 = arith.constant 1 : index
    %c0_71 = arith.constant 0 : index
    %c0_72 = arith.constant 0 : index
    %140 = vector.load %arg11[%c1_70, %c0_71, %c0_72] : memref<3x1x128xf32, #tpu.memory_space<vmem>>, vector<1x1x128xf32>
    %141 = vector.shape_cast %140 : vector<1x1x128xf32> to vector<1x128xf32>
    %142 = vector.broadcast %141 : vector<1x128xf32> to vector<16x128xf32>
    %143 = arith.addf %139, %142 : vector<16x128xf32>
    %cst_73 = arith.constant 0.000000e+00 : f32
    %144 = vector.broadcast %cst_73 : f32 to vector<16x128xf32>
    %145 = arith.maximumf %143, %144 : vector<16x128xf32>
    %cst_74 = arith.constant 1.000000e-07 : f32
    %146 = vector.broadcast %cst_74 : f32 to vector<16x128xf32>
    %147 = arith.addf %145, %146 : vector<16x128xf32>
    %148 = arith.mulf %147, %44 : vector<16x128xf32>
    %cst_75 = arith.constant dense<0xFF800000> : vector<128xf32>
    %149 = vector.multi_reduction <maximumf>, %148, %cst_75 [0] : vector<16x128xf32> to vector<128xf32>
    %150 = vector.shape_cast %149 : vector<128xf32> to vector<1x128xf32>
    %151 = vector.broadcast %150 : vector<1x128xf32> to vector<16x128xf32>
    %152 = arith.subf %147, %151 : vector<16x128xf32>
    %153 = math.exp %152 : vector<16x128xf32>
    %154 = arith.mulf %153, %147 : vector<16x128xf32>
    %155 = arith.truncf %154 : vector<16x128xf32> to vector<16x128xbf16>
    %c0_76 = arith.constant 0 : index
    %c0_77 = arith.constant 0 : index
    %156 = vector.load %arg19[%c0_76, %c0_77] : memref<16x256xbf16, #tpu.memory_space<vmem>>, vector<16x128xbf16>
    tpu.vector_store %arg19[%c0_76, %c0_77], %155 {strides = array<i32>} : memref<16x256xbf16, #tpu.memory_space<vmem>>, vector<16x128xbf16>,
    %157 = arith.truncf %153 : vector<16x128xf32> to vector<16x128xbf16>
    %c0_78 = arith.constant 0 : index
    %c128_79 = arith.constant 128 : index
    %158 = vector.load %arg19[%c0_78, %c128_79] : memref<16x256xbf16, #tpu.memory_space<vmem>>, vector<16x128xbf16>
    tpu.vector_store %arg19[%c0_78, %c128_79], %157 {strides = array<i32>} : memref<16x256xbf16, #tpu.memory_space<vmem>>, vector<16x128xbf16>,
    %c0_80 = arith.constant 0 : index
    %c0_81 = arith.constant 0 : index
    %159 = vector.load %arg19[%c0_80, %c0_81] : memref<16x256xbf16, #tpu.memory_space<vmem>>, vector<16x256xbf16>
    %cst_82 = arith.constant dense<0.000000e+00> : vector<16x256xf32>
    %160 = tpu.matmul %34, %159, %cst_82 {dimension_numbers = #tpu.dot_dimension_numbers<[1], [0], [0], [1], [0, 0, 1, 1], [], []>} : vector<16x16xbf16>, vector<16x256xbf16>, vector<16x256xf32> -> vector<16x256xf32>
    %161 = vector.extract_strided_slice %160 {offsets = [0, 0], sizes = [16, 128], strides = [1, 1]} : vector<16x256xf32> to vector<16x128xf32>
    %162 = vector.extract_strided_slice %160 {offsets = [0, 128], sizes = [16, 128], strides = [1, 1]} : vector<16x256xf32> to vector<16x128xf32>
    %cst_83 = arith.constant 0.000000e+00 : f32
    %163 = vector.broadcast %cst_83 : f32 to vector<16x128xf32>
    %164 = arith.cmpf ogt, %162, %163 : vector<16x128xf32>
    %cst_84 = arith.constant 1.000000e+00 : f32
    %165 = vector.broadcast %cst_84 : f32 to vector<16x128xf32>
    %166 = arith.select %164, %162, %165 : vector<16x128xi1>, vector<16x128xf32>
    %167 = tpu.reciprocal %166 {approx = true} : vector<16x128xf32> -> vector<16x128xf32>
    %168 = arith.mulf %161, %167 : vector<16x128xf32>
    %cst_85 = arith.constant 0.000000e+00 : f32
    %169 = vector.broadcast %cst_85 : f32 to vector<16x128xf32>
    %170 = arith.select %164, %168, %169 : vector<16x128xi1>, vector<16x128xf32>
    %171 = arith.addf %170, %145 : vector<16x128xf32>
    %172 = arith.truncf %171 : vector<16x128xf32> to vector<16x128xbf16>
    %c1_86 = arith.constant 1 : index
    %c0_87 = arith.constant 0 : index
    %c0_88 = arith.constant 0 : index
    %173 = vector.load %arg12[%c1_86, %c0_87, %c0_88] : memref<3x128x256xbf16, #tpu.memory_space<vmem>>, vector<1x128x256xbf16>
    %174 = vector.shape_cast %173 : vector<1x128x256xbf16> to vector<128x256xbf16>
    %cst_89 = arith.constant dense<0.000000e+00> : vector<16x256xf32>
    %175 = tpu.matmul %172, %174, %cst_89 {dimension_numbers = #tpu.dot_dimension_numbers<[1], [0], [0], [1], [0, 0, 1, 1], [], []>} : vector<16x128xbf16>, vector<128x256xbf16>, vector<16x256xf32> -> vector<16x256xf32>
    %c1_90 = arith.constant 1 : index
    %c0_91 = arith.constant 0 : index
    %c0_92 = arith.constant 0 : index
    %176 = vector.load %arg13[%c1_90, %c0_91, %c0_92] : memref<3x1x256xf32, #tpu.memory_space<vmem>>, vector<1x1x256xf32>
    %177 = vector.shape_cast %176 : vector<1x1x256xf32> to vector<1x256xf32>
    %178 = vector.broadcast %177 : vector<1x256xf32> to vector<16x256xf32>
    %179 = arith.addf %175, %178 : vector<16x256xf32>
    %cst_93 = arith.constant 0.000000e+00 : f32
    %180 = vector.broadcast %cst_93 : f32 to vector<16x256xf32>
    %181 = arith.maximumf %179, %180 : vector<16x256xf32>
    %182 = arith.truncf %181 : vector<16x256xf32> to vector<16x256xbf16>
    %c1_94 = arith.constant 1 : index
    %c0_95 = arith.constant 0 : index
    %c0_96 = arith.constant 0 : index
    %183 = vector.load %arg14[%c1_94, %c0_95, %c0_96] : memref<3x256x128xbf16, #tpu.memory_space<vmem>>, vector<1x256x128xbf16>
    %184 = vector.shape_cast %183 : vector<1x256x128xbf16> to vector<256x128xbf16>
    %cst_97 = arith.constant dense<0.000000e+00> : vector<16x128xf32>
    %185 = tpu.matmul %182, %184, %cst_97 {dimension_numbers = #tpu.dot_dimension_numbers<[1], [0], [0], [1], [0, 0, 1, 1], [], []>} : vector<16x256xbf16>, vector<256x128xbf16>, vector<16x128xf32> -> vector<16x128xf32>
    %c1_98 = arith.constant 1 : index
    %c0_99 = arith.constant 0 : index
    %c0_100 = arith.constant 0 : index
    %186 = vector.load %arg15[%c1_98, %c0_99, %c0_100] : memref<3x1x128xf32, #tpu.memory_space<vmem>>, vector<1x1x128xf32>
    %187 = vector.shape_cast %186 : vector<1x1x128xf32> to vector<1x128xf32>
    %188 = vector.broadcast %187 : vector<1x128xf32> to vector<16x128xf32>
    %189 = arith.addf %185, %188 : vector<16x128xf32>
    %190 = arith.addf %117, %189 : vector<16x128xf32>
    %cst_101 = arith.constant dense<0.000000e+00> : vector<16xf32>
    %191 = vector.multi_reduction <add>, %190, %cst_101 [1] : vector<16x128xf32> to vector<16xf32>
    %192 = vector.shape_cast %191 : vector<16xf32> to vector<16x1xf32>
    %cst_102 = arith.constant 0.00999999977 : f32
    %193 = vector.broadcast %cst_102 : f32 to vector<16x1xf32>
    %194 = arith.mulf %192, %193 : vector<16x1xf32>
    %195 = vector.broadcast %194 : vector<16x1xf32> to vector<16x128xf32>
    %196 = arith.subf %190, %195 : vector<16x128xf32>
    %197 = vector.broadcast %39 : vector<1x128xf32> to vector<16x128xf32>
    %198 = arith.mulf %197, %196 : vector<16x128xf32>
    %199 = arith.mulf %198, %196 : vector<16x128xf32>
    %cst_103 = arith.constant dense<0.000000e+00> : vector<16xf32>
    %200 = vector.multi_reduction <add>, %199, %cst_103 [1] : vector<16x128xf32> to vector<16xf32>
    %201 = vector.shape_cast %200 : vector<16xf32> to vector<16x1xf32>
    %cst_104 = arith.constant 0.00999999977 : f32
    %202 = vector.broadcast %cst_104 : f32 to vector<16x1xf32>
    %203 = arith.mulf %201, %202 : vector<16x1xf32>
    %cst_105 = arith.constant 9.99999974E-6 : f32
    %204 = vector.broadcast %cst_105 : f32 to vector<16x1xf32>
    %205 = arith.addf %203, %204 : vector<16x1xf32>
    %206 = math.rsqrt %205 : vector<16x1xf32>
    %207 = vector.broadcast %206 : vector<16x1xf32> to vector<16x128xf32>
    %208 = arith.mulf %196, %207 : vector<16x128xf32>
    %c2 = arith.constant 2 : index
    %c0_106 = arith.constant 0 : index
    %c0_107 = arith.constant 0 : index
    %209 = vector.load %arg10[%c2, %c0_106, %c0_107] : memref<3x1x128xf32, #tpu.memory_space<vmem>>, vector<1x1x128xf32>
    %210 = vector.shape_cast %209 : vector<1x1x128xf32> to vector<1x128xf32>
    %211 = vector.broadcast %210 : vector<1x128xf32> to vector<16x128xf32>
    %212 = arith.mulf %208, %211 : vector<16x128xf32>
    %c2_108 = arith.constant 2 : index
    %c0_109 = arith.constant 0 : index
    %c0_110 = arith.constant 0 : index
    %213 = vector.load %arg11[%c2_108, %c0_109, %c0_110] : memref<3x1x128xf32, #tpu.memory_space<vmem>>, vector<1x1x128xf32>
    %214 = vector.shape_cast %213 : vector<1x1x128xf32> to vector<1x128xf32>
    %215 = vector.broadcast %214 : vector<1x128xf32> to vector<16x128xf32>
    %216 = arith.addf %212, %215 : vector<16x128xf32>
    %cst_111 = arith.constant 0.000000e+00 : f32
    %217 = vector.broadcast %cst_111 : f32 to vector<16x128xf32>
    %218 = arith.maximumf %216, %217 : vector<16x128xf32>
    %cst_112 = arith.constant 1.000000e-07 : f32
    %219 = vector.broadcast %cst_112 : f32 to vector<16x128xf32>
    %220 = arith.addf %218, %219 : vector<16x128xf32>
    %221 = arith.mulf %220, %44 : vector<16x128xf32>
    %cst_113 = arith.constant dense<0xFF800000> : vector<128xf32>
    %222 = vector.multi_reduction <maximumf>, %221, %cst_113 [0] : vector<16x128xf32> to vector<128xf32>
    %223 = vector.shape_cast %222 : vector<128xf32> to vector<1x128xf32>
    %224 = vector.broadcast %223 : vector<1x128xf32> to vector<16x128xf32>
    %225 = arith.subf %220, %224 : vector<16x128xf32>
    %226 = math.exp %225 : vector<16x128xf32>
    %227 = arith.mulf %226, %220 : vector<16x128xf32>
    %228 = arith.truncf %227 : vector<16x128xf32> to vector<16x128xbf16>
    %c0_114 = arith.constant 0 : index
    %c0_115 = arith.constant 0 : index
    %229 = vector.load %arg19[%c0_114, %c0_115] : memref<16x256xbf16, #tpu.memory_space<vmem>>, vector<16x128xbf16>
    tpu.vector_store %arg19[%c0_114, %c0_115], %228 {strides = array<i32>} : memref<16x256xbf16, #tpu.memory_space<vmem>>, vector<16x128xbf16>,
    %230 = arith.truncf %226 : vector<16x128xf32> to vector<16x128xbf16>
    %c0_116 = arith.constant 0 : index
    %c128_117 = arith.constant 128 : index
    %231 = vector.load %arg19[%c0_116, %c128_117] : memref<16x256xbf16, #tpu.memory_space<vmem>>, vector<16x128xbf16>
    tpu.vector_store %arg19[%c0_116, %c128_117], %230 {strides = array<i32>} : memref<16x256xbf16, #tpu.memory_space<vmem>>, vector<16x128xbf16>,
    %c0_118 = arith.constant 0 : index
    %c0_119 = arith.constant 0 : index
    %232 = vector.load %arg19[%c0_118, %c0_119] : memref<16x256xbf16, #tpu.memory_space<vmem>>, vector<16x256xbf16>
    %cst_120 = arith.constant dense<0.000000e+00> : vector<16x256xf32>
    %233 = tpu.matmul %34, %232, %cst_120 {dimension_numbers = #tpu.dot_dimension_numbers<[1], [0], [0], [1], [0, 0, 1, 1], [], []>} : vector<16x16xbf16>, vector<16x256xbf16>, vector<16x256xf32> -> vector<16x256xf32>
    %234 = vector.extract_strided_slice %233 {offsets = [0, 0], sizes = [16, 128], strides = [1, 1]} : vector<16x256xf32> to vector<16x128xf32>
    %235 = vector.extract_strided_slice %233 {offsets = [0, 128], sizes = [16, 128], strides = [1, 1]} : vector<16x256xf32> to vector<16x128xf32>
    %cst_121 = arith.constant 0.000000e+00 : f32
    %236 = vector.broadcast %cst_121 : f32 to vector<16x128xf32>
    %237 = arith.cmpf ogt, %235, %236 : vector<16x128xf32>
    %cst_122 = arith.constant 1.000000e+00 : f32
    %238 = vector.broadcast %cst_122 : f32 to vector<16x128xf32>
    %239 = arith.select %237, %235, %238 : vector<16x128xi1>, vector<16x128xf32>
    %240 = tpu.reciprocal %239 {approx = true} : vector<16x128xf32> -> vector<16x128xf32>
    %241 = arith.mulf %234, %240 : vector<16x128xf32>
    %cst_123 = arith.constant 0.000000e+00 : f32
    %242 = vector.broadcast %cst_123 : f32 to vector<16x128xf32>
    %243 = arith.select %237, %241, %242 : vector<16x128xi1>, vector<16x128xf32>
    %244 = arith.addf %243, %218 : vector<16x128xf32>
    %245 = arith.truncf %244 : vector<16x128xf32> to vector<16x128xbf16>
    %c2_124 = arith.constant 2 : index
    %c0_125 = arith.constant 0 : index
    %c0_126 = arith.constant 0 : index
    %246 = vector.load %arg12[%c2_124, %c0_125, %c0_126] : memref<3x128x256xbf16, #tpu.memory_space<vmem>>, vector<1x128x256xbf16>
    %247 = vector.shape_cast %246 : vector<1x128x256xbf16> to vector<128x256xbf16>
    %cst_127 = arith.constant dense<0.000000e+00> : vector<16x256xf32>
    %248 = tpu.matmul %245, %247, %cst_127 {dimension_numbers = #tpu.dot_dimension_numbers<[1], [0], [0], [1], [0, 0, 1, 1], [], []>} : vector<16x128xbf16>, vector<128x256xbf16>, vector<16x256xf32> -> vector<16x256xf32>
    %c2_128 = arith.constant 2 : index
    %c0_129 = arith.constant 0 : index
    %c0_130 = arith.constant 0 : index
    %249 = vector.load %arg13[%c2_128, %c0_129, %c0_130] : memref<3x1x256xf32, #tpu.memory_space<vmem>>, vector<1x1x256xf32>
    %250 = vector.shape_cast %249 : vector<1x1x256xf32> to vector<1x256xf32>
    %251 = vector.broadcast %250 : vector<1x256xf32> to vector<16x256xf32>
    %252 = arith.addf %248, %251 : vector<16x256xf32>
    %cst_131 = arith.constant 0.000000e+00 : f32
    %253 = vector.broadcast %cst_131 : f32 to vector<16x256xf32>
    %254 = arith.maximumf %252, %253 : vector<16x256xf32>
    %255 = arith.truncf %254 : vector<16x256xf32> to vector<16x256xbf16>
    %c2_132 = arith.constant 2 : index
    %c0_133 = arith.constant 0 : index
    %c0_134 = arith.constant 0 : index
    %256 = vector.load %arg14[%c2_132, %c0_133, %c0_134] : memref<3x256x128xbf16, #tpu.memory_space<vmem>>, vector<1x256x128xbf16>
    %257 = vector.shape_cast %256 : vector<1x256x128xbf16> to vector<256x128xbf16>
    %cst_135 = arith.constant dense<0.000000e+00> : vector<16x128xf32>
    %258 = tpu.matmul %255, %257, %cst_135 {dimension_numbers = #tpu.dot_dimension_numbers<[1], [0], [0], [1], [0, 0, 1, 1], [], []>} : vector<16x256xbf16>, vector<256x128xbf16>, vector<16x128xf32> -> vector<16x128xf32>
    %c2_136 = arith.constant 2 : index
    %c0_137 = arith.constant 0 : index
    %c0_138 = arith.constant 0 : index
    %259 = vector.load %arg15[%c2_136, %c0_137, %c0_138] : memref<3x1x128xf32, #tpu.memory_space<vmem>>, vector<1x1x128xf32>
    %260 = vector.shape_cast %259 : vector<1x1x128xf32> to vector<1x128xf32>
    %261 = vector.broadcast %260 : vector<1x128xf32> to vector<16x128xf32>
    %262 = arith.addf %258, %261 : vector<16x128xf32>
    %263 = arith.addf %190, %262 : vector<16x128xf32>
    %264 = arith.mulf %263, %44 : vector<16x128xf32>
    %cst_139 = arith.constant dense<0.000000e+00> : vector<128xf32>
    %265 = vector.multi_reduction <add>, %264, %cst_139 [0] : vector<16x128xf32> to vector<128xf32>
    %266 = vector.shape_cast %265 : vector<128xf32> to vector<1x128xf32>
    %cst_140 = arith.constant 6.250000e-02 : f32
    %267 = vector.broadcast %cst_140 : f32 to vector<1x128xf32>
    %268 = arith.mulf %266, %267 : vector<1x128xf32>
    %269 = vector.broadcast %268 : vector<1x128xf32> to vector<8x128xf32>
    %270 = arith.addf %23, %269 : vector<8x128xf32>
    %271 = arith.truncf %270 : vector<8x128xf32> to vector<8x128xbf16>
    %c0_141 = arith.constant 0 : index
    %c0_142 = arith.constant 0 : index
    %272 = vector.load %arg16[%c0_141, %c0_142] : memref<128x128xbf16, #tpu.memory_space<vmem>>, vector<128x128xbf16>
    %cst_143 = arith.constant dense<0.000000e+00> : vector<8x128xf32>
    %273 = tpu.matmul %271, %272, %cst_143 {dimension_numbers = #tpu.dot_dimension_numbers<[1], [0], [0], [1], [0, 0, 1, 1], [], []>} : vector<8x128xbf16>, vector<128x128xbf16>, vector<8x128xf32> -> vector<8x128xf32>
    %c0_144 = arith.constant 0 : index
    %c0_145 = arith.constant 0 : index
    %274 = vector.load %arg17[%c0_144, %c0_145] : memref<1x128xf32, #tpu.memory_space<vmem>>, vector<1x128xf32>
    %275 = vector.broadcast %274 : vector<1x128xf32> to vector<8x128xf32>
    %276 = arith.addf %273, %275 : vector<8x128xf32>
    %277 = vector.shape_cast %276 : vector<8x128xf32> to vector<1x8x128xf32>
    %c0_146 = arith.constant 0 : index
    %c0_147 = arith.constant 0 : index
    %c0_148 = arith.constant 0 : index
    %278 = vector.load %arg18[%c0_146, %c0_147, %c0_148] : memref<1x8x128xf32, #tpu.memory_space<vmem>>, vector<1x8x128xf32>
    tpu.vector_store %arg18[%c0_146, %c0_147, %c0_148], %277 {strides = array<i32>} : memref<1x8x128xf32, #tpu.memory_space<vmem>>, vector<1x8x128xf32>,
    return
  }
  func.func @transform_0(%arg0: i32) -> (i32, i32, i32) {
    %c0_i32 = arith.constant 0 : i32
    %c0_i32_0 = arith.constant 0 : i32
    %c0_i32_1 = arith.constant 0 : i32
    return %arg0, %c0_i32, %c0_i32_0 : i32, i32, i32
  }
  func.func @transform_1(%arg0: i32) -> (i32, i32) {
    %c0_i32 = arith.constant 0 : i32
    %c0_i32_0 = arith.constant 0 : i32
    %c0_i32_1 = arith.constant 0 : i32
    return %c0_i32, %c0_i32_0 : i32, i32
  }
  func.func @transform_2(%arg0: i32) -> (i32, i32) {
    %c0_i32 = arith.constant 0 : i32
    %c0_i32_0 = arith.constant 0 : i32
    %c0_i32_1 = arith.constant 0 : i32
    return %c0_i32, %c0_i32_0 : i32, i32
  }
  func.func @transform_3(%arg0: i32) -> (i32, i32) {
    %c0_i32 = arith.constant 0 : i32
    %c0_i32_0 = arith.constant 0 : i32
    %c0_i32_1 = arith.constant 0 : i32
    return %c0_i32, %c0_i32_0 : i32, i32
  }
  func.func @transform_4(%arg0: i32) -> (i32, i32) {
    %c0_i32 = arith.constant 0 : i32
    %c0_i32_0 = arith.constant 0 : i32
    %c0_i32_1 = arith.constant 0 : i32
    return %c0_i32, %c0_i32_0 : i32, i32
  }
  func.func @transform_5(%arg0: i32) -> (i32, i32, i32) {
    %c0_i32 = arith.constant 0 : i32
    %c0_i32_0 = arith.constant 0 : i32
    %c0_i32_1 = arith.constant 0 : i32
    return %arg0, %c0_i32, %c0_i32_0 : i32, i32, i32
  }
  func.func @transform_6(%arg0: i32) -> (i32, i32) {
    %c0_i32 = arith.constant 0 : i32
    %c0_i32_0 = arith.constant 0 : i32
    %c0_i32_1 = arith.constant 0 : i32
    return %c0_i32, %c0_i32_0 : i32, i32
  }
  func.func @transform_7(%arg0: i32) -> (i32, i32) {
    %c0_i32 = arith.constant 0 : i32
    %c0_i32_0 = arith.constant 0 : i32
    %c0_i32_1 = arith.constant 0 : i32
    return %c0_i32, %c0_i32_0 : i32, i32
  }
  func.func @transform_8(%arg0: i32) -> (i32, i32, i32) {
    %c0_i32 = arith.constant 0 : i32
    %c0_i32_0 = arith.constant 0 : i32
    %c0_i32_1 = arith.constant 0 : i32
    return %arg0, %c0_i32, %c0_i32_0 : i32, i32, i32
  }
  func.func @transform_9(%arg0: i32) -> (i32, i32, i32) {
    %c0_i32 = arith.constant 0 : i32
    %c0_i32_0 = arith.constant 0 : i32
    %c0_i32_1 = arith.constant 0 : i32
    %c0_i32_2 = arith.constant 0 : i32
    return %c0_i32, %c0_i32_0, %c0_i32_1 : i32, i32, i32
  }
  func.func @transform_10(%arg0: i32) -> (i32, i32, i32) {
    %c0_i32 = arith.constant 0 : i32
    %c0_i32_0 = arith.constant 0 : i32
    %c0_i32_1 = arith.constant 0 : i32
    %c0_i32_2 = arith.constant 0 : i32
    return %c0_i32, %c0_i32_0, %c0_i32_1 : i32, i32, i32
  }
  func.func @transform_11(%arg0: i32) -> (i32, i32, i32) {
    %c0_i32 = arith.constant 0 : i32
    %c0_i32_0 = arith.constant 0 : i32
    %c0_i32_1 = arith.constant 0 : i32
    %c0_i32_2 = arith.constant 0 : i32
    return %c0_i32, %c0_i32_0, %c0_i32_1 : i32, i32, i32
  }
  func.func @transform_12(%arg0: i32) -> (i32, i32, i32) {
    %c0_i32 = arith.constant 0 : i32
    %c0_i32_0 = arith.constant 0 : i32
    %c0_i32_1 = arith.constant 0 : i32
    %c0_i32_2 = arith.constant 0 : i32
    return %c0_i32, %c0_i32_0, %c0_i32_1 : i32, i32, i32
  }
  func.func @transform_13(%arg0: i32) -> (i32, i32, i32) {
    %c0_i32 = arith.constant 0 : i32
    %c0_i32_0 = arith.constant 0 : i32
    %c0_i32_1 = arith.constant 0 : i32
    %c0_i32_2 = arith.constant 0 : i32
    return %c0_i32, %c0_i32_0, %c0_i32_1 : i32, i32, i32
  }
  func.func @transform_14(%arg0: i32) -> (i32, i32, i32) {
    %c0_i32 = arith.constant 0 : i32
    %c0_i32_0 = arith.constant 0 : i32
    %c0_i32_1 = arith.constant 0 : i32
    %c0_i32_2 = arith.constant 0 : i32
    return %c0_i32, %c0_i32_0, %c0_i32_1 : i32, i32, i32
  }
  func.func @transform_15(%arg0: i32) -> (i32, i32) {
    %c0_i32 = arith.constant 0 : i32
    %c0_i32_0 = arith.constant 0 : i32
    %c0_i32_1 = arith.constant 0 : i32
    return %c0_i32, %c0_i32_0 : i32, i32
  }
  func.func @transform_16(%arg0: i32) -> (i32, i32) {
    %c0_i32 = arith.constant 0 : i32
    %c0_i32_0 = arith.constant 0 : i32
    %c0_i32_1 = arith.constant 0 : i32
    return %c0_i32, %c0_i32_0 : i32, i32
  }
  func.func @transform_17(%arg0: i32) -> (i32, i32, i32) {
    %c0_i32 = arith.constant 0 : i32
    %c0_i32_0 = arith.constant 0 : i32
    %c0_i32_1 = arith.constant 0 : i32
    return %arg0, %c0_i32, %c0_i32_0 : i32, i32, i32
  }
}

</mosaic_0001>

<llo_original>
// kernel: tpu_custom_call.1
$region0: #{tpu_custom_call.1}
  #allocation0 [shape = 'u32[]', space=smem, size = 0x4, offset = 0x4, fixed_abs, tag = 'smem constant byte address 0x4 - core index']
  #allocation1 [shape = 'u32[144,128]{1,0:T(1,128)}', space=vmem, size = 0x12000, scoped, tag = 'internal scratch']
  #allocation2 [shape = 'bf16[16,256]{1,0:T(8,128)(2,1)}', space=vmem, size = 0x2000, scoped, tag = 'scratch operand']
  %s0 = inlined_call_operand.vmem [shape: f32[2,8,16], index: 0, kind: input, shape index: {}]
  %s1 = inlined_call_operand.hbm [shape: bf16[16,1024], index: 1, kind: input, shape index: {}]
  %s2 = inlined_call_operand.hbm [shape: f32[1,1024], index: 2, kind: input, shape index: {}]
  %s3 = inlined_call_operand.hbm [shape: bf16[1024,128], index: 3, kind: input, shape index: {}]
  %s4 = inlined_call_operand.hbm [shape: f32[1,128], index: 4, kind: input, shape index: {}]
  %s5 = inlined_call_operand.vmem [shape: f32[2,16,1], index: 5, kind: input, shape index: {}]
  %s6 = inlined_call_operand.hbm [shape: f32[1,128], index: 6, kind: input, shape index: {}]
  %s7 = inlined_call_operand.vmem [shape: f32[1,128], index: 7, kind: input, shape index: {}]
  %s8 = inlined_call_operand.vmem [shape: bf16[2,16,16], index: 8, kind: input, shape index: {}]
  %s9 = inlined_call_operand.vmem [shape: f32[3,1,128], index: 9, kind: input, shape index: {}]
  %s10 = inlined_call_operand.vmem [shape: f32[3,1,128], index: 10, kind: input, shape index: {}]
  %s11 = inlined_call_operand.hbm [shape: bf16[3,128,256], index: 11, kind: input, shape index: {}]
  %s12 = inlined_call_operand.vmem [shape: f32[3,1,256], index: 12, kind: input, shape index: {}]
  %s13 = inlined_call_operand.hbm [shape: bf16[3,256,128], index: 13, kind: input, shape index: {}]
  %s14 = inlined_call_operand.vmem [shape: f32[3,1,128], index: 14, kind: input, shape index: {}]
  %s15 = inlined_call_operand.hbm [shape: bf16[128,128], index: 15, kind: input, shape index: {}]
  %s16 = inlined_call_operand.vmem [shape: f32[1,128], index: 16, kind: input, shape index: {}]
  %s17 = inlined_call_operand.hbm [shape: f32[2,8,128], index: 17, kind: output, shape index: {}]
  %s18 = sld [smem:[#allocation0]]
  $region133: #{tpu_custom_call.1} parent=0
    _
  %s20 = ssub.s32 1, %s18
  %s21 = scalar_select 0, %s20, %s18
  $region1: #{tpu_custom_call.1} parent=0
    #allocation3 [shape = 'u8[32768]{0}', space=vmem, size = 0x8000, scoped, tag = 'input window, operand 1, single buffered']
    #allocation4 [shape = 's32[2]{0}', space=sflag, size = 0x8, scoped, tag = 'scoped memory for tpu_custom_call.1']
    #allocation5 [shape = 's32[2]{0}', space=sflag, size = 0x8, scoped, tag = 'scoped memory for tpu_custom_call.1']
    #allocation6 [shape = 'u8[4096]{0}', space=vmem, size = 0x1000, scoped, tag = 'input window, operand 2, single buffered']
    #allocation7 [shape = 's32[1]{0}', space=sflag, size = 0x4, scoped, tag = 'scoped memory for tpu_custom_call.1']
    #allocation8 [shape = 'u8[262144]{0}', space=vmem, size = 0x40000, scoped, tag = 'input window, operand 3, single buffered']
    #allocation9 [shape = 'u8[512]{0}', space=vmem, size = 0x400, scoped, tag = 'input window, operand 4, single buffered']
    #allocation10 [shape = 's32[1]{0}', space=sflag, size = 0x4, scoped, tag = 'scoped memory for tpu_custom_call.1']
    #allocation11 [shape = 'u8[512]{0}', space=vmem, size = 0x400, scoped, tag = 'input window, operand 6, single buffered']
    #allocation12 [shape = 'u8[196608]{0}', space=vmem, size = 0x30000, scoped, tag = 'input window, operand 11, single buffered']
    #allocation13 [shape = 's32[1]{0}', space=sflag, size = 0x4, scoped, tag = 'scoped memory for tpu_custom_call.1']
    #allocation14 [shape = 'u8[196608]{0}', space=vmem, size = 0x30000, scoped, tag = 'input window, operand 13, single buffered']
    #allocation15 [shape = 'u8[32768]{0}', space=vmem, size = 0x8000, scoped, tag = 'input window, operand 15, single buffered']
    #allocation16 [shape = 's32[1]{0}', space=sflag, size = 0x4, scoped, tag = 'scoped memory for tpu_custom_call.1']
    #allocation17 [shape = 'u8[8192]{0}', space=vmem, size = 0x2000, scoped, tag = 'output window, operand 0']
    %22 = vsyncpa [#allocation4], 0
    %23 = vsyncpa [#allocation7], 0
    %24 = vsyncpa [#allocation10], 0
    %25 = vsyncpa [#allocation13], 0
    %26 = vsyncpa [#allocation16], 0
    %27 = vsyncpa [#allocation5], 0
    %s28 = scalar_lea.sflag [#allocation5], 1
    %29 = vsyncpa %s28, 0
    loop: start=0, step=1, limit=4
    $region2: #{tpu_custom_call.1} parent=1 // loop_pre_header
      _
    $region3: #{tpu_custom_call.1} parent=1 // loop_header
      %s31 = sphi 0, %s35
      %p32 = scmp.ge.s32.totalorder %s31, 4
      %s41 = sphi 0, %s43
      %s44 = sphi 0, %s41
      %s45 = sphi 0, %s44
      %s61 = sphi 0, %s45
      %s65 = sphi 0, %s65
      %s67 = sphi 0, %s65
      %s68 = sphi 0, %s67
      %s82 = sphi 0, %s68
      %s86 = sphi 0, %s86
      %s88 = sphi 0, %s86
      %s89 = sphi 0, %s88
      %s103 = sphi 0, %s89
      %s107 = sphi 0, %s107
      %s109 = sphi 0, %s107
      %s110 = sphi 0, %s109
      %s124 = sphi 0, %s110
      %s128 = sphi 0, %s128
      %s130 = sphi 0, %s128
      %s131 = sphi 0, %s130
      %s145 = sphi 0, %s131
      %s151 = sphi 0, %s153
      %s154 = sphi 0, %s151
      %s155 = sphi 0, %s154
      %s171 = sphi 0, %s155
      %s175 = sphi 0, %s175
      %s177 = sphi 0, %s175
      %s178 = sphi 0, %s177
      %s192 = sphi 0, %s178
      %s196 = sphi 0, %s196
      %s198 = sphi 0, %s196
      %s199 = sphi 0, %s198
      %s213 = sphi 0, %s199
      %s219 = sphi 0, %s221
      %s222 = sphi 0, %s219
      %s223 = sphi 0, %s222
      %s239 = sphi 0, %s223
      %s243 = sphi 0, %s243
      %s245 = sphi 0, %s243
      %s246 = sphi 0, %s245
      %s260 = sphi 0, %s246
      %s264 = sphi 0, %s264
      %s266 = sphi 0, %s264
      %s267 = sphi 0, %s266
      %s281 = sphi 0, %s267
      %s285 = sphi 0, %s285
      %s287 = sphi 0, %s285
      %s288 = sphi 0, %s287
      %s302 = sphi 0, %s288
      %s306 = sphi 0, %s306
      %s308 = sphi 0, %s306
      %s309 = sphi 0, %s308
      %s323 = sphi 0, %s309
      %s327 = sphi 0, %s327
      %s329 = sphi 0, %s327
      %s330 = sphi 0, %s329
      %s344 = sphi 0, %s330
      %s348 = sphi 0, %s348
      %s350 = sphi 0, %s348
      %s351 = sphi 0, %s350
      %s365 = sphi 0, %s351
      %s369 = sphi 0, %s369
      %s371 = sphi 0, %s369
      %s372 = sphi 0, %s371
      %s386 = sphi 0, %s372
      %s390 = sphi 0, %s390
      %s392 = sphi 0, %s390
      %s393 = sphi 0, %s392
      %s407 = sphi 0, %s393
      %s413 = sphi 0, %s415
      %s416 = sphi 0, %s413
      %s417 = sphi 0, %s416
      %s433 = sphi 0, %s417
    $region4: #{tpu_custom_call.1} parent=1 // loop_header_branch
      %34 = sbr.rel (%p32) target = $region8
    $region5: #{tpu_custom_call.1} parent=1 // loop_body
      %s36 = ssub.s32 %s31, 1
      %s37 = ssub.s32 %s31, 2
      %s38 = sadd.s32 %s31, 1
      %s39 = ssub.s32 %s31, %s38
      %p40 = scmp.eq.s32.totalorder %s39, 0
      %s42 = sadd.s32 %s41, 1
      %s43 = scalar_select %p40, %s41, %s42
      %p46 = pneg %p40
      %p47 = scmp.eq.s32.totalorder %s31, 1
      %p48 = por %p46, %p47
      %p49 = scmp.ne.s32.totalorder %s41, %s44
      %p50 = scmp.eq.s32.totalorder %s31, 0
      %p51 = por %p49, %p50
      %p52 = scmp.ne.s32.totalorder %s41, %s44
      %p53 = scmp.eq.s32.totalorder %s36, 1
      %p54 = por %p52, %p53
      %p55 = scmp.ne.s32.totalorder %s44, %s45
      %p56 = scmp.eq.s32.totalorder %s36, 0
      %p57 = por %p55, %p56
      %p58 = scmp.ne.s32.totalorder %s44, %s45
      %p59 = scmp.eq.s32.totalorder %s37, 1
      %p60 = por %p58, %p59
      %p62 = scmp.ne.s32.totalorder %s45, %s61
      %p63 = scmp.eq.s32.totalorder %s37, 0
      %p64 = por %p62, %p63
      %s66 = sadd.s32 %s65, 1
      %p69 = scmp.eq.s32.totalorder %s31, 1
      %p70 = scmp.ne.s32.totalorder %s65, %s67
      %p71 = scmp.eq.s32.totalorder %s31, 0
      %p72 = por %p70, %p71
      %p73 = scmp.ne.s32.totalorder %s65, %s67
      %p74 = scmp.eq.s32.totalorder %s36, 1
      %p75 = por %p73, %p74
      %p76 = scmp.ne.s32.totalorder %s67, %s68
      %p77 = scmp.eq.s32.totalorder %s36, 0
      %p78 = por %p76, %p77
      %p79 = scmp.ne.s32.totalorder %s67, %s68
      %p80 = scmp.eq.s32.totalorder %s37, 1
      %p81 = por %p79, %p80
      %p83 = scmp.ne.s32.totalorder %s68, %s82
      %p84 = scmp.eq.s32.totalorder %s37, 0
      %p85 = por %p83, %p84
      %s87 = sadd.s32 %s86, 1
      %p90 = scmp.eq.s32.totalorder %s31, 1
      %p91 = scmp.ne.s32.totalorder %s86, %s88
      %p92 = scmp.eq.s32.totalorder %s31, 0
      %p93 = por %p91, %p92
      %p94 = scmp.ne.s32.totalorder %s86, %s88
      %p95 = scmp.eq.s32.totalorder %s36, 1
      %p96 = por %p94, %p95
      %p97 = scmp.ne.s32.totalorder %s88, %s89
      %p98 = scmp.eq.s32.totalorder %s36, 0
      %p99 = por %p97, %p98
      %p100 = scmp.ne.s32.totalorder %s88, %s89
      %p101 = scmp.eq.s32.totalorder %s37, 1
      %p102 = por %p100, %p101
      %p104 = scmp.ne.s32.totalorder %s89, %s103
      %p105 = scmp.eq.s32.totalorder %s37, 0
      %p106 = por %p104, %p105
      %s108 = sadd.s32 %s107, 1
      %p111 = scmp.eq.s32.totalorder %s31, 1
      %p112 = scmp.ne.s32.totalorder %s107, %s109
      %p113 = scmp.eq.s32.totalorder %s31, 0
      %p114 = por %p112, %p113
      %p115 = scmp.ne.s32.totalorder %s107, %s109
      %p116 = scmp.eq.s32.totalorder %s36, 1
      %p117 = por %p115, %p116
      %p118 = scmp.ne.s32.totalorder %s109, %s110
      %p119 = scmp.eq.s32.totalorder %s36, 0
      %p120 = por %p118, %p119
      %p121 = scmp.ne.s32.totalorder %s109, %s110
      %p122 = scmp.eq.s32.totalorder %s37, 1
      %p123 = por %p121, %p122
      %p125 = scmp.ne.s32.totalorder %s110, %s124
      %p126 = scmp.eq.s32.totalorder %s37, 0
      %p127 = por %p125, %p126
      %s129 = sadd.s32 %s128, 1
      %p132 = scmp.eq.s32.totalorder %s31, 1
      %p133 = scmp.ne.s32.totalorder %s128, %s130
      %p134 = scmp.eq.s32.totalorder %s31, 0
      %p135 = por %p133, %p134
      %p136 = scmp.ne.s32.totalorder %s128, %s130
      %p137 = scmp.eq.s32.totalorder %s36, 1
      %p138 = por %p136, %p137
      %p139 = scmp.ne.s32.totalorder %s130, %s131
      %p140 = scmp.eq.s32.totalorder %s36, 0
      %p141 = por %p139, %p140
      %p142 = scmp.ne.s32.totalorder %s130, %s131
      %p143 = scmp.eq.s32.totalorder %s37, 1
      %p144 = por %p142, %p143
      %p146 = scmp.ne.s32.totalorder %s131, %s145
      %p147 = scmp.eq.s32.totalorder %s37, 0
      %p148 = por %p146, %p147
      %s149 = ssub.s32 %s31, %s38
      %p150 = scmp.eq.s32.totalorder %s149, 0
      %s152 = sadd.s32 %s151, 1
      %s153 = scalar_select %p150, %s151, %s152
      %p156 = pneg %p150
      %p157 = scmp.eq.s32.totalorder %s31, 1
      %p158 = por %p156, %p157
      %p159 = scmp.ne.s32.totalorder %s151, %s154
      %p160 = scmp.eq.s32.totalorder %s31, 0
      %p161 = por %p159, %p160
      %p162 = scmp.ne.s32.totalorder %s151, %s154
      %p163 = scmp.eq.s32.totalorder %s36, 1
      %p164 = por %p162, %p163
      %p165 = scmp.ne.s32.totalorder %s154, %s155
      %p166 = scmp.eq.s32.totalorder %s36, 0
      %p167 = por %p165, %p166
      %p168 = scmp.ne.s32.totalorder %s154, %s155
      %p169 = scmp.eq.s32.totalorder %s37, 1
      %p170 = por %p168, %p169
      %p172 = scmp.ne.s32.totalorder %s155, %s171
      %p173 = scmp.eq.s32.totalorder %s37, 0
      %p174 = por %p172, %p173
      %s176 = sadd.s32 %s175, 1
      %p179 = scmp.eq.s32.totalorder %s31, 1
      %p180 = scmp.ne.s32.totalorder %s175, %s177
      %p181 = scmp.eq.s32.totalorder %s31, 0
      %p182 = por %p180, %p181
      %p183 = scmp.ne.s32.totalorder %s175, %s177
      %p184 = scmp.eq.s32.totalorder %s36, 1
      %p185 = por %p183, %p184
      %p186 = scmp.ne.s32.totalorder %s177, %s178
      %p187 = scmp.eq.s32.totalorder %s36, 0
      %p188 = por %p186, %p187
      %p189 = scmp.ne.s32.totalorder %s177, %s178
      %p190 = scmp.eq.s32.totalorder %s37, 1
      %p191 = por %p189, %p190
      %p193 = scmp.ne.s32.totalorder %s178, %s192
      %p194 = scmp.eq.s32.totalorder %s37, 0
      %p195 = por %p193, %p194
      %s197 = sadd.s32 %s196, 1
      %p200 = scmp.eq.s32.totalorder %s31, 1
      %p201 = scmp.ne.s32.totalorder %s196, %s198
      %p202 = scmp.eq.s32.totalorder %s31, 0
      %p203 = por %p201, %p202
      %p204 = scmp.ne.s32.totalorder %s196, %s198
      %p205 = scmp.eq.s32.totalorder %s36, 1
      %p206 = por %p204, %p205
      %p207 = scmp.ne.s32.totalorder %s198, %s199
      %p208 = scmp.eq.s32.totalorder %s36, 0
      %p209 = por %p207, %p208
      %p210 = scmp.ne.s32.totalorder %s198, %s199
      %p211 = scmp.eq.s32.totalorder %s37, 1
      %p212 = por %p210, %p211
      %p214 = scmp.ne.s32.totalorder %s199, %s213
      %p215 = scmp.eq.s32.totalorder %s37, 0
      %p216 = por %p214, %p215
      %s217 = ssub.s32 %s31, %s38
      %p218 = scmp.eq.s32.totalorder %s217, 0
      %s220 = sadd.s32 %s219, 1
      %s221 = scalar_select %p218, %s219, %s220
      %p224 = pneg %p218
      %p225 = scmp.eq.s32.totalorder %s31, 1
      %p226 = por %p224, %p225
      %p227 = scmp.ne.s32.totalorder %s219, %s222
      %p228 = scmp.eq.s32.totalorder %s31, 0
      %p229 = por %p227, %p228
      %p230 = scmp.ne.s32.totalorder %s219, %s222
      %p231 = scmp.eq.s32.totalorder %s36, 1
      %p232 = por %p230, %p231
      %p233 = scmp.ne.s32.totalorder %s222, %s223
      %p234 = scmp.eq.s32.totalorder %s36, 0
      %p235 = por %p233, %p234
      %p236 = scmp.ne.s32.totalorder %s222, %s223
      %p237 = scmp.eq.s32.totalorder %s37, 1
      %p238 = por %p236, %p237
      %p240 = scmp.ne.s32.totalorder %s223, %s239
      %p241 = scmp.eq.s32.totalorder %s37, 0
      %p242 = por %p240, %p241
      %s244 = sadd.s32 %s243, 1
      %p247 = scmp.eq.s32.totalorder %s31, 1
      %p248 = scmp.ne.s32.totalorder %s243, %s245
      %p249 = scmp.eq.s32.totalorder %s31, 0
      %p250 = por %p248, %p249
      %p251 = scmp.ne.s32.totalorder %s243, %s245
      %p252 = scmp.eq.s32.totalorder %s36, 1
      %p253 = por %p251, %p252
      %p254 = scmp.ne.s32.totalorder %s245, %s246
      %p255 = scmp.eq.s32.totalorder %s36, 0
      %p256 = por %p254, %p255
      %p257 = scmp.ne.s32.totalorder %s245, %s246
      %p258 = scmp.eq.s32.totalorder %s37, 1
      %p259 = por %p257, %p258
      %p261 = scmp.ne.s32.totalorder %s246, %s260
      %p262 = scmp.eq.s32.totalorder %s37, 0
      %p263 = por %p261, %p262
      %s265 = sadd.s32 %s264, 1
      %p268 = scmp.eq.s32.totalorder %s31, 1
      %p269 = scmp.ne.s32.totalorder %s264, %s266
      %p270 = scmp.eq.s32.totalorder %s31, 0
      %p271 = por %p269, %p270
      %p272 = scmp.ne.s32.totalorder %s264, %s266
      %p273 = scmp.eq.s32.totalorder %s36, 1
      %p274 = por %p272, %p273
      %p275 = scmp.ne.s32.totalorder %s266, %s267
      %p276 = scmp.eq.s32.totalorder %s36, 0
      %p277 = por %p275, %p276
      %p278 = scmp.ne.s32.totalorder %s266, %s267
      %p279 = scmp.eq.s32.totalorder %s37, 1
      %p280 = por %p278, %p279
      %p282 = scmp.ne.s32.totalorder %s267, %s281
      %p283 = scmp.eq.s32.totalorder %s37, 0
      %p284 = por %p282, %p283
      %s286 = sadd.s32 %s285, 1
      %p289 = scmp.eq.s32.totalorder %s31, 1
      %p290 = scmp.ne.s32.totalorder %s285, %s287
      %p291 = scmp.eq.s32.totalorder %s31, 0
      %p292 = por %p290, %p291
      %p293 = scmp.ne.s32.totalorder %s285, %s287
      %p294 = scmp.eq.s32.totalorder %s36, 1
      %p295 = por %p293, %p294
      %p296 = scmp.ne.s32.totalorder %s287, %s288
      %p297 = scmp.eq.s32.totalorder %s36, 0
      %p298 = por %p296, %p297
      %p299 = scmp.ne.s32.totalorder %s287, %s288
      %p300 = scmp.eq.s32.totalorder %s37, 1
      %p301 = por %p299, %p300
      %p303 = scmp.ne.s32.totalorder %s288, %s302
      %p304 = scmp.eq.s32.totalorder %s37, 0
      %p305 = por %p303, %p304
      %s307 = sadd.s32 %s306, 1
      %p310 = scmp.eq.s32.totalorder %s31, 1
      %p311 = scmp.ne.s32.totalorder %s306, %s308
      %p312 = scmp.eq.s32.totalorder %s31, 0
      %p313 = por %p311, %p312
      %p314 = scmp.ne.s32.totalorder %s306, %s308
      %p315 = scmp.eq.s32.totalorder %s36, 1
      %p316 = por %p314, %p315
      %p317 = scmp.ne.s32.totalorder %s308, %s309
      %p318 = scmp.eq.s32.totalorder %s36, 0
      %p319 = por %p317, %p318
      %p320 = scmp.ne.s32.totalorder %s308, %s309
      %p321 = scmp.eq.s32.totalorder %s37, 1
      %p322 = por %p320, %p321
      %p324 = scmp.ne.s32.totalorder %s309, %s323
      %p325 = scmp.eq.s32.totalorder %s37, 0
      %p326 = por %p324, %p325
      %s328 = sadd.s32 %s327, 1
      %p331 = scmp.eq.s32.totalorder %s31, 1
      %p332 = scmp.ne.s32.totalorder %s327, %s329
      %p333 = scmp.eq.s32.totalorder %s31, 0
      %p334 = por %p332, %p333
      %p335 = scmp.ne.s32.totalorder %s327, %s329
      %p336 = scmp.eq.s32.totalorder %s36, 1
      %p337 = por %p335, %p336
      %p338 = scmp.ne.s32.totalorder %s329, %s330
      %p339 = scmp.eq.s32.totalorder %s36, 0
      %p340 = por %p338, %p339
      %p341 = scmp.ne.s32.totalorder %s329, %s330
      %p342 = scmp.eq.s32.totalorder %s37, 1
      %p343 = por %p341, %p342
      %p345 = scmp.ne.s32.totalorder %s330, %s344
      %p346 = scmp.eq.s32.totalorder %s37, 0
      %p347 = por %p345, %p346
      %s349 = sadd.s32 %s348, 1
      %p352 = scmp.eq.s32.totalorder %s31, 1
      %p353 = scmp.ne.s32.totalorder %s348, %s350
      %p354 = scmp.eq.s32.totalorder %s31, 0
      %p355 = por %p353, %p354
      %p356 = scmp.ne.s32.totalorder %s348, %s350
      %p357 = scmp.eq.s32.totalorder %s36, 1
      %p358 = por %p356, %p357
      %p359 = scmp.ne.s32.totalorder %s350, %s351
      %p360 = scmp.eq.s32.totalorder %s36, 0
      %p361 = por %p359, %p360
      %p362 = scmp.ne.s32.totalorder %s350, %s351
      %p363 = scmp.eq.s32.totalorder %s37, 1
      %p364 = por %p362, %p363
      %p366 = scmp.ne.s32.totalorder %s351, %s365
      %p367 = scmp.eq.s32.totalorder %s37, 0
      %p368 = por %p366, %p367
      %s370 = sadd.s32 %s369, 1
      %p373 = scmp.eq.s32.totalorder %s31, 1
      %p374 = scmp.ne.s32.totalorder %s369, %s371
      %p375 = scmp.eq.s32.totalorder %s31, 0
      %p376 = por %p374, %p375
      %p377 = scmp.ne.s32.totalorder %s369, %s371
      %p378 = scmp.eq.s32.totalorder %s36, 1
      %p379 = por %p377, %p378
      %p380 = scmp.ne.s32.totalorder %s371, %s372
      %p381 = scmp.eq.s32.totalorder %s36, 0
      %p382 = por %p380, %p381
      %p383 = scmp.ne.s32.totalorder %s371, %s372
      %p384 = scmp.eq.s32.totalorder %s37, 1
      %p385 = por %p383, %p384
      %p387 = scmp.ne.s32.totalorder %s372, %s386
      %p388 = scmp.eq.s32.totalorder %s37, 0
      %p389 = por %p387, %p388
      %s391 = sadd.s32 %s390, 1
      %p394 = scmp.eq.s32.totalorder %s31, 1
      %p395 = scmp.ne.s32.totalorder %s390, %s392
      %p396 = scmp.eq.s32.totalorder %s31, 0
      %p397 = por %p395, %p396
      %p398 = scmp.ne.s32.totalorder %s390, %s392
      %p399 = scmp.eq.s32.totalorder %s36, 1
      %p400 = por %p398, %p399
      %p401 = scmp.ne.s32.totalorder %s392, %s393
      %p402 = scmp.eq.s32.totalorder %s36, 0
      %p403 = por %p401, %p402
      %p404 = scmp.ne.s32.totalorder %s392, %s393
      %p405 = scmp.eq.s32.totalorder %s37, 1
      %p406 = por %p404, %p405
      %p408 = scmp.ne.s32.totalorder %s393, %s407
      %p409 = scmp.eq.s32.totalorder %s37, 0
      %p410 = por %p408, %p409
      %s411 = ssub.s32 %s31, %s38
      %p412 = scmp.eq.s32.totalorder %s411, 0
      %s414 = sadd.s32 %s413, 1
      %s415 = scalar_select %p412, %s413, %s414
      %p418 = pneg %p412
      %p419 = scmp.eq.s32.totalorder %s31, 1
      %p420 = por %p418, %p419
      %p421 = scmp.ne.s32.totalorder %s413, %s416
      %p422 = scmp.eq.s32.totalorder %s31, 0
      %p423 = por %p421, %p422
      %p424 = scmp.ne.s32.totalorder %s413, %s416
      %p425 = scmp.eq.s32.totalorder %s36, 1
      %p426 = por %p424, %p425
      %p427 = scmp.ne.s32.totalorder %s416, %s417
      %p428 = scmp.eq.s32.totalorder %s36, 0
      %p429 = por %p427, %p428
      %p430 = scmp.ne.s32.totalorder %s416, %s417
      %p431 = scmp.eq.s32.totalorder %s37, 1
      %p432 = por %p430, %p431
      %p434 = scmp.ne.s32.totalorder %s417, %s433
      %p435 = scmp.eq.s32.totalorder %s37, 0
      %p436 = por %p434, %p435
      %p437 = scmp.le.s32.totalorder 1, %s31
      %p438 = scmp.lt.s32.totalorder %s31, 3
      %p439 = pnand %p437, %p438
      %p440 = pneg %p439
      // Predicated region
      $region9: #{tpu_custom_call.1} parent=5 // pred_check
        _
      $region10: #{tpu_custom_call.1} parent=5 // pred_check_branch
        %442 = sbr.rel (%p439) target = $region12
      $region11: #{tpu_custom_call.1} parent=5 // pred_region
        %s443 = ssub.s32 %s31, 1
        // Predicated region
        $region13: #{tpu_custom_call.1} parent=11 // pred_check
          %p444 = pneg %p78
        $region14: #{tpu_custom_call.1} parent=11 // pred_check_branch
          %446 = sbr.rel (%p444) target = $region16
        $region15: #{tpu_custom_call.1} parent=11 // pred_region
          %s448 = ssub.s32 1024, 1024
          %449 = vsyncadd [#allocation4], %s448
          %s450 = sshll.u32 [#allocation3], 4
          %s451 = int_to_ptr.vmem [resolvable:$true] %s450
          %456 = dma.hbm_to_vmem [thread:$0]  %s1, 1024, %s451, [#allocation4], 512, 512, 32
        $region16: #{tpu_custom_call.1} parent=11 // pred_fallthru
          _
        // Predicated region
        $region17: #{tpu_custom_call.1} parent=11 // pred_check
          %p457 = pneg %p99
        $region18: #{tpu_custom_call.1} parent=11 // pred_check_branch
          %459 = sbr.rel (%p457) target = $region20
        $region19: #{tpu_custom_call.1} parent=11 // pred_region
          %s461 = ssub.s32 128, 128
          %462 = vsyncadd [#allocation7], %s461
          %s464 = sshll.u32 [#allocation6], 4
          %s465 = int_to_ptr.vmem [resolvable:$true] %s464
          %467 = dma.hbm_to_vmem [thread:$0]  %s2, 128, %s465, [#allocation7]
        $region20: #{tpu_custom_call.1} parent=11 // pred_fallthru
          _
        // Predicated region
        $region21: #{tpu_custom_call.1} parent=11 // pred_check
          %p468 = pneg %p120
        $region22: #{tpu_custom_call.1} parent=11 // pred_check_branch
          %470 = sbr.rel (%p468) target = $region24
        $region23: #{tpu_custom_call.1} parent=11 // pred_region
          %s472 = ssub.s32 8192, 8192
          %473 = vsyncadd [#allocation7], %s472
          %s474 = sshll.u32 [#allocation8], 4
          %s475 = int_to_ptr.vmem [resolvable:$true] %s474
          %480 = dma.hbm_to_vmem [thread:$0]  %s3, 8192, %s475, [#allocation7], 64, 64, 4
        $region24: #{tpu_custom_call.1} parent=11 // pred_fallthru
          _
        // Predicated region
        $region25: #{tpu_custom_call.1} parent=11 // pred_check
          %p481 = pneg %p141
        $region26: #{tpu_custom_call.1} parent=11 // pred_check_branch
          %483 = sbr.rel (%p481) target = $region28
        $region27: #{tpu_custom_call.1} parent=11 // pred_region
          %s485 = ssub.s32 16, 16
          %486 = vsyncadd [#allocation10], %s485
          %s488 = sshll.u32 [#allocation9], 4
          %s489 = int_to_ptr.vmem [resolvable:$true] %s488
          %491 = dma.hbm_to_vmem [thread:$0]  %s4, 16, %s489, [#allocation10]
        $region28: #{tpu_custom_call.1} parent=11 // pred_fallthru
          _
        // Predicated region
        $region29: #{tpu_custom_call.1} parent=11 // pred_check
          %p492 = pneg %p188
        $region30: #{tpu_custom_call.1} parent=11 // pred_check_branch
          %494 = sbr.rel (%p492) target = $region32
        $region31: #{tpu_custom_call.1} parent=11 // pred_region
          %s496 = ssub.s32 16, 16
          %497 = vsyncadd [#allocation10], %s496
          %s499 = sshll.u32 [#allocation11], 4
          %s500 = int_to_ptr.vmem [resolvable:$true] %s499
          %502 = dma.hbm_to_vmem [thread:$0]  %s6, 16, %s500, [#allocation10]
        $region32: #{tpu_custom_call.1} parent=11 // pred_fallthru
          _
        // Predicated region
        $region33: #{tpu_custom_call.1} parent=11 // pred_check
          %p503 = pneg %p209
        $region34: #{tpu_custom_call.1} parent=11 // pred_check_branch
          %505 = sbr.rel (%p503) target = $region36
        $region35: #{tpu_custom_call.1} parent=11 // pred_region
          _
        $region36: #{tpu_custom_call.1} parent=11 // pred_fallthru
          _
        // Predicated region
        $region37: #{tpu_custom_call.1} parent=11 // pred_check
          %p506 = pneg %p256
        $region38: #{tpu_custom_call.1} parent=11 // pred_check_branch
          %508 = sbr.rel (%p506) target = $region40
        $region39: #{tpu_custom_call.1} parent=11 // pred_region
          _
        $region40: #{tpu_custom_call.1} parent=11 // pred_fallthru
          _
        // Predicated region
        $region41: #{tpu_custom_call.1} parent=11 // pred_check
          %p509 = pneg %p277
        $region42: #{tpu_custom_call.1} parent=11 // pred_check_branch
          %511 = sbr.rel (%p509) target = $region44
        $region43: #{tpu_custom_call.1} parent=11 // pred_region
          _
        $region44: #{tpu_custom_call.1} parent=11 // pred_fallthru
          _
        // Predicated region
        $region45: #{tpu_custom_call.1} parent=11 // pred_check
          %p512 = pneg %p298
        $region46: #{tpu_custom_call.1} parent=11 // pred_check_branch
          %514 = sbr.rel (%p512) target = $region48
        $region47: #{tpu_custom_call.1} parent=11 // pred_region
          %s516 = ssub.s32 6144, 6144
          %517 = vsyncadd [#allocation13], %s516
          %s518 = sshll.u32 [#allocation12], 4
          %s519 = int_to_ptr.vmem [resolvable:$true] %s518
          %524 = dma.hbm_to_vmem [thread:$0]  %s11, 6144, %s519, [#allocation13], 128, 128, 8
        $region48: #{tpu_custom_call.1} parent=11 // pred_fallthru
          _
        // Predicated region
        $region49: #{tpu_custom_call.1} parent=11 // pred_check
          %p525 = pneg %p319
        $region50: #{tpu_custom_call.1} parent=11 // pred_check_branch
          %527 = sbr.rel (%p525) target = $region52
        $region51: #{tpu_custom_call.1} parent=11 // pred_region
          _
        $region52: #{tpu_custom_call.1} parent=11 // pred_fallthru
          _
        // Predicated region
        $region53: #{tpu_custom_call.1} parent=11 // pred_check
          %p528 = pneg %p340
        $region54: #{tpu_custom_call.1} parent=11 // pred_check_branch
          %530 = sbr.rel (%p528) target = $region56
        $region55: #{tpu_custom_call.1} parent=11 // pred_region
          %s532 = ssub.s32 6144, 6144
          %533 = vsyncadd [#allocation13], %s532
          %s534 = sshll.u32 [#allocation14], 4
          %s535 = int_to_ptr.vmem [resolvable:$true] %s534
          %540 = dma.hbm_to_vmem [thread:$0]  %s13, 6144, %s535, [#allocation13], 64, 64, 4
        $region56: #{tpu_custom_call.1} parent=11 // pred_fallthru
          _
        // Predicated region
        $region57: #{tpu_custom_call.1} parent=11 // pred_check
          %p541 = pneg %p361
        $region58: #{tpu_custom_call.1} parent=11 // pred_check_branch
          %543 = sbr.rel (%p541) target = $region60
        $region59: #{tpu_custom_call.1} parent=11 // pred_region
          _
        $region60: #{tpu_custom_call.1} parent=11 // pred_fallthru
          _
        // Predicated region
        $region61: #{tpu_custom_call.1} parent=11 // pred_check
          %p544 = pneg %p382
        $region62: #{tpu_custom_call.1} parent=11 // pred_check_branch
          %546 = sbr.rel (%p544) target = $region64
        $region63: #{tpu_custom_call.1} parent=11 // pred_region
          %s548 = ssub.s32 1024, 1024
          %549 = vsyncadd [#allocation16], %s548
          %s550 = sshll.u32 [#allocation15], 4
          %s551 = int_to_ptr.vmem [resolvable:$true] %s550
          %556 = dma.hbm_to_vmem [thread:$0]  %s15, 1024, %s551, [#allocation16], 64, 64, 4
        $region64: #{tpu_custom_call.1} parent=11 // pred_fallthru
          _
        // Predicated region
        $region65: #{tpu_custom_call.1} parent=11 // pred_check
          %p557 = pneg %p403
        $region66: #{tpu_custom_call.1} parent=11 // pred_check_branch
          %559 = sbr.rel (%p557) target = $region68
        $region67: #{tpu_custom_call.1} parent=11 // pred_region
          _
        $region68: #{tpu_custom_call.1} parent=11 // pred_fallthru
          _
      $region12: #{tpu_custom_call.1} parent=5 // pred_fallthru
        _
      %p560 = scmp.lt.s32.totalorder %s31, 2
      // Predicated region
      $region69: #{tpu_custom_call.1} parent=5 // pred_check
        %p561 = pneg %p560
      $region70: #{tpu_custom_call.1} parent=5 // pred_check_branch
        %563 = sbr.rel (%p561) target = $region72
      $region71: #{tpu_custom_call.1} parent=5 // pred_region
        // Predicated region
        $region73: #{tpu_custom_call.1} parent=71 // pred_check
          %p564 = pneg %p51
        $region74: #{tpu_custom_call.1} parent=71 // pred_check_branch
          %566 = sbr.rel (%p564) target = $region76
        $region75: #{tpu_custom_call.1} parent=71 // pred_region
          %p567 = scmp.lt.s32.totalorder %s31, 1
          %s568 = scalar_select %p567, %s31, 1
          %s569 = smul.addr %s568, 8
          %s570 = scalar_lea.vmem %s0, %s569
        $region76: #{tpu_custom_call.1} parent=71 // pred_fallthru
          _
        // Predicated region
        $region77: #{tpu_custom_call.1} parent=71 // pred_check
          %p571 = pneg %p161
        $region78: #{tpu_custom_call.1} parent=71 // pred_check_branch
          %573 = sbr.rel (%p571) target = $region80
        $region79: #{tpu_custom_call.1} parent=71 // pred_region
          %p574 = scmp.lt.s32.totalorder %s31, 1
          %s575 = scalar_select %p574, %s31, 1
          %s576 = smul.addr %s575, 2
          %s577 = smul.addr %s576, 8
          %s578 = scalar_lea.vmem %s5, %s577
        $region80: #{tpu_custom_call.1} parent=71 // pred_fallthru
          _
        // Predicated region
        $region81: #{tpu_custom_call.1} parent=71 // pred_check
          %p579 = pneg %p229
        $region82: #{tpu_custom_call.1} parent=71 // pred_check_branch
          %581 = sbr.rel (%p579) target = $region84
        $region83: #{tpu_custom_call.1} parent=71 // pred_region
          %p582 = scmp.lt.s32.totalorder %s31, 1
          %s583 = scalar_select %p582, %s31, 1
          %s584 = smul.addr %s583, 2
          %s585 = smul.addr %s584, 4
          %s586 = scalar_lea.vmem %s8, %s585
        $region84: #{tpu_custom_call.1} parent=71 // pred_fallthru
          _
      $region72: #{tpu_custom_call.1} parent=5 // pred_fallthru
        _
      %p587 = scmp.le.s32.totalorder 1, %s31
      %p588 = scmp.lt.s32.totalorder %s31, 3
      %p589 = pnand %p587, %p588
      %p590 = pneg %p589
      // Predicated region
      $region85: #{tpu_custom_call.1} parent=5 // pred_check
        _
      $region86: #{tpu_custom_call.1} parent=5 // pred_check_branch
        %592 = sbr.rel (%p589) target = $region88
      $region87: #{tpu_custom_call.1} parent=5 // pred_region
        %s593 = ssub.s32 %s31, 1
        // Predicated region
        $region89: #{tpu_custom_call.1} parent=87 // pred_check
          %p594 = pneg %p78
        $region90: #{tpu_custom_call.1} parent=87 // pred_check_branch
          %596 = sbr.rel (%p594) target = $region92
        $region91: #{tpu_custom_call.1} parent=87 // pred_region
          %597 = dma.done [#allocation4], 1024
        $region92: #{tpu_custom_call.1} parent=87 // pred_fallthru
          _
        // Predicated region
        $region93: #{tpu_custom_call.1} parent=87 // pred_check
          %p598 = pneg %p99
        $region94: #{tpu_custom_call.1} parent=87 // pred_check_branch
          %600 = sbr.rel (%p598) target = $region96
        $region95: #{tpu_custom_call.1} parent=87 // pred_region
          %601 = dma.done [#allocation7], 128
        $region96: #{tpu_custom_call.1} parent=87 // pred_fallthru
          _
        // Predicated region
        $region97: #{tpu_custom_call.1} parent=87 // pred_check
          %p602 = pneg %p120
        $region98: #{tpu_custom_call.1} parent=87 // pred_check_branch
          %604 = sbr.rel (%p602) target = $region100
        $region99: #{tpu_custom_call.1} parent=87 // pred_region
          %605 = dma.done [#allocation7], 8192
        $region100: #{tpu_custom_call.1} parent=87 // pred_fallthru
          _
        // Predicated region
        $region101: #{tpu_custom_call.1} parent=87 // pred_check
          %p606 = pneg %p141
        $region102: #{tpu_custom_call.1} parent=87 // pred_check_branch
          %608 = sbr.rel (%p606) target = $region104
        $region103: #{tpu_custom_call.1} parent=87 // pred_region
          %609 = dma.done [#allocation10], 16
        $region104: #{tpu_custom_call.1} parent=87 // pred_fallthru
          _
        // Predicated region
        $region105: #{tpu_custom_call.1} parent=87 // pred_check
          %p610 = pneg %p188
        $region106: #{tpu_custom_call.1} parent=87 // pred_check_branch
          %612 = sbr.rel (%p610) target = $region108
        $region107: #{tpu_custom_call.1} parent=87 // pred_region
          %613 = dma.done [#allocation10], 16
        $region108: #{tpu_custom_call.1} parent=87 // pred_fallthru
          _
        // Predicated region
        $region109: #{tpu_custom_call.1} parent=87 // pred_check
          %p614 = pneg %p298
        $region110: #{tpu_custom_call.1} parent=87 // pred_check_branch
          %616 = sbr.rel (%p614) target = $region112
        $region111: #{tpu_custom_call.1} parent=87 // pred_region
          %617 = dma.done [#allocation13], 6144
        $region112: #{tpu_custom_call.1} parent=87 // pred_fallthru
          _
        // Predicated region
        $region113: #{tpu_custom_call.1} parent=87 // pred_check
          %p618 = pneg %p340
        $region114: #{tpu_custom_call.1} parent=87 // pred_check_branch
          %620 = sbr.rel (%p618) target = $region116
        $region115: #{tpu_custom_call.1} parent=87 // pred_region
          %621 = dma.done [#allocation13], 6144
        $region116: #{tpu_custom_call.1} parent=87 // pred_fallthru
          _
        // Predicated region
        $region117: #{tpu_custom_call.1} parent=87 // pred_check
          %p622 = pneg %p382
        $region118: #{tpu_custom_call.1} parent=87 // pred_check_branch
          %624 = sbr.rel (%p622) target = $region120
        $region119: #{tpu_custom_call.1} parent=87 // pred_region
          %625 = dma.done [#allocation16], 1024
        $region120: #{tpu_custom_call.1} parent=87 // pred_fallthru
          _
        %p626 = scmp.lt.s32.totalorder %s36, 1
        %s627 = scalar_select %p626, %s36, 1
        %s628 = smul.addr %s627, 8
        %s629 = scalar_lea.vmem %s0, %s628
        %p630 = pneg %p57
        %p631 = pneg %p54
        %p632 = pneg %p78
        %p633 = pneg %p75
        %p634 = pneg %p99
        %p635 = pneg %p96
        %p636 = pneg %p120
        %p637 = pneg %p117
        %p638 = pneg %p141
        %p639 = pneg %p138
        %p640 = scmp.lt.s32.totalorder %s36, 1
        %s641 = scalar_select %p640, %s36, 1
        %s642 = smul.addr %s641, 2
        %s643 = smul.addr %s642, 8
        %s644 = scalar_lea.vmem %s5, %s643
        %p645 = pneg %p167
        %p646 = pneg %p164
        %p647 = pneg %p188
        %p648 = pneg %p185
        %p649 = pneg %p209
        %p650 = pneg %p206
        %p651 = scmp.lt.s32.totalorder %s36, 1
        %s652 = scalar_select %p651, %s36, 1
        %s653 = smul.addr %s652, 2
        %s654 = smul.addr %s653, 4
        %s655 = scalar_lea.vmem %s8, %s654
        %p656 = pneg %p235
        %p657 = pneg %p232
        %p658 = pneg %p256
        %p659 = pneg %p253
        %p660 = pneg %p277
        %p661 = pneg %p274
        %p662 = pneg %p298
        %p663 = pneg %p295
        %p664 = pneg %p319
        %p665 = pneg %p316
        %p666 = pneg %p340
        %p667 = pneg %p337
        %p668 = pneg %p361
        %p669 = pneg %p358
        %p670 = pneg %p382
        %p671 = pneg %p379
        %p672 = pneg %p403
        %p673 = pneg %p400
        %p674 = pneg %p429
        %p675 = pneg %p426
        %s676 = sand.u32 %s416, 1
        %s677 = scalar_lea.sflag [#allocation5], %s676
        %s678 = sand.u32 %s416, 1
        %s679 = smul.addr %s678, 8
        %s680 = scalar_lea.vmem [#allocation17], %s679
        %p681 = scmp.lt.s32.totalorder %s36, 1
        %s682 = scalar_select %p681, %s36, 1
        %s683 = smul.addr %s682, 8
        %s684 = scalar_lea.vmem %s0, %s683
        %p685 = scmp.lt.s32.totalorder %s36, 1
        %s686 = scalar_select %p685, %s36, 1
        %s687 = smul.addr %s686, 2
        %s688 = smul.addr %s687, 8
        %s689 = scalar_lea.vmem %s5, %s688
        %p690 = scmp.lt.s32.totalorder %s36, 1
        %s691 = scalar_select %p690, %s36, 1
        %s692 = smul.addr %s691, 2
        %s693 = smul.addr %s692, 4
        %s694 = scalar_lea.vmem %s8, %s693
        %v696 = vld [vmem:[%s684] sm:$0xff]
        %v697 = vpack.c.bf16 %v696, %v696
        %v698 = vld [vmem:[#allocation3] sm:$0xff]
        %v699 = vld [vmem:[#allocation3 + $0x8] sm:$0xff]
        %v700 = vld [vmem:[#allocation3 + $0x10] sm:$0xff]
        %v701 = vld [vmem:[#allocation3 + $0x18] sm:$0xff]
        %v702 = vld [vmem:[#allocation3 + $0x20] sm:$0xff]
        %v703 = vld [vmem:[#allocation3 + $0x28] sm:$0xff]
        %v704 = vld [vmem:[#allocation3 + $0x30] sm:$0xff]
        %v705 = vld [vmem:[#allocation3 + $0x38] sm:$0xff]
        %v706 = vld [vmem:[#allocation6] sm:$0xff]
        %v708 = vlaneseq
        %v709 = vshrl.u32 %v708, 7
        %v710 = vsub.s32 0, %v709
        %v711 = vrot.slane %v706, %v710
        %v712 = vlaneseq
        %v713 = vshrl.u32 %v712, 7
        %v714 = vsub.s32 1, %v713
        %v715 = vrot.slane %v706, %v714
        %v716 = vlaneseq
        %v717 = vshrl.u32 %v716, 7
        %v718 = vsub.s32 2, %v717
        %v719 = vrot.slane %v706, %v718
        %v720 = vlaneseq
        %v721 = vshrl.u32 %v720, 7
        %v722 = vsub.s32 3, %v721
        %v723 = vrot.slane %v706, %v722
        %v724 = vlaneseq
        %v725 = vshrl.u32 %v724, 7
        %v726 = vsub.s32 4, %v725
        %v727 = vrot.slane %v706, %v726
        %v728 = vlaneseq
        %v729 = vshrl.u32 %v728, 7
        %v730 = vsub.s32 5, %v729
        %v731 = vrot.slane %v706, %v730
        %v732 = vlaneseq
        %v733 = vshrl.u32 %v732, 7
        %v734 = vsub.s32 6, %v733
        %v735 = vrot.slane %v706, %v734
        %v736 = vlaneseq
        %v737 = vshrl.u32 %v736, 7
        %v738 = vsub.s32 7, %v737
        %v739 = vrot.slane %v706, %v738
        %v756 = vunpack.c.l.b16 %v698
        %v757 = vunpack.c.h.b16 %v698
        %v758 = vunpack.c.l.b16 %v699
        %v759 = vunpack.c.h.b16 %v699
        %v760 = vunpack.c.l.b16 %v700
        %v761 = vunpack.c.h.b16 %v700
        %v762 = vunpack.c.l.b16 %v701
        %v763 = vunpack.c.h.b16 %v701
        %v764 = vunpack.c.l.b16 %v702
        %v765 = vunpack.c.h.b16 %v702
        %v766 = vunpack.c.l.b16 %v703
        %v767 = vunpack.c.h.b16 %v703
        %v768 = vunpack.c.l.b16 %v704
        %v769 = vunpack.c.h.b16 %v704
        %v770 = vunpack.c.l.b16 %v705
        %v771 = vunpack.c.h.b16 %v705
        %v772 = vpack.c.b16 %v764, %v756
        %v773 = vpack.c.b16 %v765, %v757
        %v774 = vpack.c.b16 %v766, %v758
        %v775 = vpack.c.b16 %v767, %v759
        %v776 = vpack.c.b16 %v768, %v760
        %v777 = vpack.c.b16 %v769, %v761
        %v778 = vpack.c.b16 %v770, %v762
        %v779 = vpack.c.b16 %v771, %v763
        %vm788 = vcmask 130048
        %v790 = vsel %vm788, %v697, 0
        %792 = vmatprep.subr.bf16.mxu0 0
        %793 = vmatpush1.bf16.msra.mxu0 0
        %794 = vmatprep.subr.bf16.mxu0 0
        %795 = vmatpush1.bf16.msra.mxu0 0
        %796 = vmatprep.subr.bf16.mxu0 0
        %797 = vmatpush1.bf16.msra.mxu0 0
        %798 = vmatprep.subr.bf16.mxu0 0
        %799 = vmatpush1.bf16.msra.mxu0 0
        %800 = vmatprep.subr.bf16.mxu0 0
        %801 = vmatpush1.bf16.msra.mxu0 0
        %802 = vmatprep.subr.bf16.mxu0 0
        %803 = vmatpush1.bf16.msra.mxu0 0
        %804 = vmatprep.subr.bf16.mxu0 0
        %805 = vmatpush1.bf16.msra.mxu0 0
        %806 = vmatprep.subr.bf16.mxu0 %v773
        %807 = vmatpush1.bf16.msra.mxu0 %v772
        %808 = vmatprep.subr.bf16.mxu0 0
        %809 = vmatpush2.bf16.msra.mxu0 0
        %810 = vmatprep.subr.bf16.mxu0 0
        %811 = vmatpush2.bf16.msra.mxu0 0
        %812 = vmatprep.subr.bf16.mxu0 0
        %813 = vmatpush2.bf16.msra.mxu0 0
        %814 = vmatprep.subr.bf16.mxu0 0
        %815 = vmatpush2.bf16.msra.mxu0 0
        %816 = vmatprep.subr.bf16.mxu0 0
        %817 = vmatpush2.bf16.msra.mxu0 0
        %818 = vmatprep.subr.bf16.mxu0 0
        %819 = vmatpush2.bf16.msra.mxu0 0
        %820 = vmatprep.subr.bf16.mxu0 0
        %821 = vmatpush2.bf16.msra.mxu0 0
        %822 = vmatprep.subr.bf16.mxu0 0
        %823 = vmatpush2.bf16.msra.mxu0 0
        %824 = vmatprep.mubr.bf16.mxu0 0
        %825 = vmatmul.mubr.bf16.gmra.mxu0 %v790
        %v826 = vpop.f32.mrf.mxu0
        %v827 = vadd.f32 %v711, %v826
        %v828 = vpop.f32.mrf.mxu0
        %v829 = vadd.f32 %v715, %v828
        %v830 = vpop.f32.mrf.mxu0
        %v831 = vpop.f32.mrf.mxu0
        %832 = vdwg.mxu0
        %833 = vmatprep.subr.bf16.mxu0 0
        %834 = vmatpush1.bf16.msra.mxu0 0
        %835 = vmatprep.subr.bf16.mxu0 0
        %836 = vmatpush1.bf16.msra.mxu0 0
        %837 = vmatprep.subr.bf16.mxu0 0
        %838 = vmatpush1.bf16.msra.mxu0 0
        %839 = vmatprep.subr.bf16.mxu0 0
        %840 = vmatpush1.bf16.msra.mxu0 0
        %841 = vmatprep.subr.bf16.mxu0 0
        %842 = vmatpush1.bf16.msra.mxu0 0
        %843 = vmatprep.subr.bf16.mxu0 0
        %844 = vmatpush1.bf16.msra.mxu0 0
        %845 = vmatprep.subr.bf16.mxu0 0
        %846 = vmatpush1.bf16.msra.mxu0 0
        %847 = vmatprep.subr.bf16.mxu0 %v775
        %848 = vmatpush1.bf16.msra.mxu0 %v774
        %849 = vmatprep.subr.bf16.mxu0 0
        %850 = vmatpush2.bf16.msra.mxu0 0
        %851 = vmatprep.subr.bf16.mxu0 0
        %852 = vmatpush2.bf16.msra.mxu0 0
        %853 = vmatprep.subr.bf16.mxu0 0
        %854 = vmatpush2.bf16.msra.mxu0 0
        %855 = vmatprep.subr.bf16.mxu0 0
        %856 = vmatpush2.bf16.msra.mxu0 0
        %857 = vmatprep.subr.bf16.mxu0 0
        %858 = vmatpush2.bf16.msra.mxu0 0
        %859 = vmatprep.subr.bf16.mxu0 0
        %860 = vmatpush2.bf16.msra.mxu0 0
        %861 = vmatprep.subr.bf16.mxu0 0
        %862 = vmatpush2.bf16.msra.mxu0 0
        %863 = vmatprep.subr.bf16.mxu0 0
        %864 = vmatpush2.bf16.msra.mxu0 0
        %865 = vmatprep.mubr.bf16.mxu0 0
        %866 = vmatmul.mubr.bf16.gmra.mxu0 %v790
        %v867 = vpop.f32.mrf.mxu0
        %v868 = vadd.f32 %v719, %v867
        %v869 = vpop.f32.mrf.mxu0
        %v870 = vadd.f32 %v723, %v869
        %v871 = vpop.f32.mrf.mxu0
        %v872 = vpop.f32.mrf.mxu0
        %873 = vdwg.mxu0
        %874 = vmatprep.subr.bf16.mxu0 0
        %875 = vmatpush1.bf16.msra.mxu0 0
        %876 = vmatprep.subr.bf16.mxu0 0
        %877 = vmatpush1.bf16.msra.mxu0 0
        %878 = vmatprep.subr.bf16.mxu0 0
        %879 = vmatpush1.bf16.msra.mxu0 0
        %880 = vmatprep.subr.bf16.mxu0 0
        %881 = vmatpush1.bf16.msra.mxu0 0
        %882 = vmatprep.subr.bf16.mxu0 0
        %883 = vmatpush1.bf16.msra.mxu0 0
        %884 = vmatprep.subr.bf16.mxu0 0
        %885 = vmatpush1.bf16.msra.mxu0 0
        %886 = vmatprep.subr.bf16.mxu0 0
        %887 = vmatpush1.bf16.msra.mxu0 0
        %888 = vmatprep.subr.bf16.mxu0 %v777
        %889 = vmatpush1.bf16.msra.mxu0 %v776
        %890 = vmatprep.subr.bf16.mxu0 0
        %891 = vmatpush2.bf16.msra.mxu0 0
        %892 = vmatprep.subr.bf16.mxu0 0
        %893 = vmatpush2.bf16.msra.mxu0 0
        %894 = vmatprep.subr.bf16.mxu0 0
        %895 = vmatpush2.bf16.msra.mxu0 0
        %896 = vmatprep.subr.bf16.mxu0 0
        %897 = vmatpush2.bf16.msra.mxu0 0
        %898 = vmatprep.subr.bf16.mxu0 0
        %899 = vmatpush2.bf16.msra.mxu0 0
        %900 = vmatprep.subr.bf16.mxu0 0
        %901 = vmatpush2.bf16.msra.mxu0 0
        %902 = vmatprep.subr.bf16.mxu0 0
        %903 = vmatpush2.bf16.msra.mxu0 0
        %904 = vmatprep.subr.bf16.mxu0 0
        %905 = vmatpush2.bf16.msra.mxu0 0
        %906 = vmatprep.mubr.bf16.mxu0 0
        %907 = vmatmul.mubr.bf16.gmra.mxu0 %v790
        %v908 = vpop.f32.mrf.mxu0
        %v909 = vadd.f32 %v727, %v908
        %v910 = vpop.f32.mrf.mxu0
        %v911 = vadd.f32 %v731, %v910
        %v912 = vpop.f32.mrf.mxu0
        %v913 = vpop.f32.mrf.mxu0
        %914 = vdwg.mxu0
        %915 = vmatprep.subr.bf16.mxu0 0
        %916 = vmatpush1.bf16.msra.mxu0 0
        %917 = vmatprep.subr.bf16.mxu0 0
        %918 = vmatpush1.bf16.msra.mxu0 0
        %919 = vmatprep.subr.bf16.mxu0 0
        %920 = vmatpush1.bf16.msra.mxu0 0
        %921 = vmatprep.subr.bf16.mxu0 0
        %922 = vmatpush1.bf16.msra.mxu0 0
        %923 = vmatprep.subr.bf16.mxu0 0
        %924 = vmatpush1.bf16.msra.mxu0 0
        %925 = vmatprep.subr.bf16.mxu0 0
        %926 = vmatpush1.bf16.msra.mxu0 0
        %927 = vmatprep.subr.bf16.mxu0 0
        %928 = vmatpush1.bf16.msra.mxu0 0
        %929 = vmatprep.subr.bf16.mxu0 %v779
        %930 = vmatpush1.bf16.msra.mxu0 %v778
        %931 = vmatprep.subr.bf16.mxu0 0
        %932 = vmatpush2.bf16.msra.mxu0 0
        %933 = vmatprep.subr.bf16.mxu0 0
        %934 = vmatpush2.bf16.msra.mxu0 0
        %935 = vmatprep.subr.bf16.mxu0 0
        %936 = vmatpush2.bf16.msra.mxu0 0
        %937 = vmatprep.subr.bf16.mxu0 0
        %938 = vmatpush2.bf16.msra.mxu0 0
        %939 = vmatprep.subr.bf16.mxu0 0
        %940 = vmatpush2.bf16.msra.mxu0 0
        %941 = vmatprep.subr.bf16.mxu0 0
        %942 = vmatpush2.bf16.msra.mxu0 0
        %943 = vmatprep.subr.bf16.mxu0 0
        %944 = vmatpush2.bf16.msra.mxu0 0
        %945 = vmatprep.subr.bf16.mxu0 0
        %946 = vmatpush2.bf16.msra.mxu0 0
        %947 = vmatprep.mubr.bf16.mxu0 0
        %948 = vmatmul.mubr.bf16.gmra.mxu0 %v790
        %v949 = vpop.f32.mrf.mxu0
        %v950 = vadd.f32 %v735, %v949
        %v951 = vpop.f32.mrf.mxu0
        %v952 = vadd.f32 %v739, %v951
        %v953 = vpop.f32.mrf.mxu0
        %v954 = vpop.f32.mrf.mxu0
        %955 = vdwg.mxu0
        %vm956 = vcmp.ge.f32.partialorder %v827, 0.0
        %vm957 = vcmp.ge.f32.partialorder %v829, 0.0
        %vm958 = vcmp.ge.f32.partialorder %v868, 0.0
        %vm959 = vcmp.ge.f32.partialorder %v870, 0.0
        %vm960 = vcmp.ge.f32.partialorder %v909, 0.0
        %vm961 = vcmp.ge.f32.partialorder %v911, 0.0
        %vm962 = vcmp.ge.f32.partialorder %v950, 0.0
        %vm963 = vcmp.ge.f32.partialorder %v952, 0.0
        %v964 = vmul.f32 %v827, 0.01
        %v965 = vmul.f32 %v829, 0.01
        %v966 = vmul.f32 %v868, 0.01
        %v967 = vmul.f32 %v870, 0.01
        %v968 = vmul.f32 %v909, 0.01
        %v969 = vmul.f32 %v911, 0.01
        %v970 = vmul.f32 %v950, 0.01
        %v971 = vmul.f32 %v952, 0.01
        %v972 = vsel %vm956, %v827, %v964
        %v973 = vsel %vm957, %v829, %v965
        %v974 = vsel %vm958, %v868, %v966
        %v975 = vsel %vm959, %v870, %v967
        %v976 = vsel %vm960, %v909, %v968
        %v977 = vsel %vm961, %v911, %v969
        %v978 = vsel %vm962, %v950, %v970
        %v979 = vsel %vm963, %v952, %v971
        %v980 = vpack.c.bf16 %v972, %v972
        %v981 = vpack.c.bf16 %v973, %v973
        %v982 = vpack.c.bf16 %v974, %v974
        %v983 = vpack.c.bf16 %v975, %v975
        %v984 = vpack.c.bf16 %v976, %v976
        %v985 = vpack.c.bf16 %v977, %v977
        %v986 = vpack.c.bf16 %v978, %v978
        %v987 = vpack.c.bf16 %v979, %v979
        %v988 = vld [vmem:[#allocation8] sm:$0xf]
        %v989 = vld [vmem:[#allocation8 + $0x4] sm:$0xf]
        %v990 = vld [vmem:[#allocation8 + $0x8] sm:$0xf]
        %v991 = vld [vmem:[#allocation8 + $0xc] sm:$0xf]
        %v992 = vld [vmem:[#allocation8 + $0x10] sm:$0xf]
        %v993 = vld [vmem:[#allocation8 + $0x14] sm:$0xf]
        %v994 = vld [vmem:[#allocation8 + $0x18] sm:$0xf]
        %v995 = vld [vmem:[#allocation8 + $0x1c] sm:$0xf]
        %v996 = vld [vmem:[#allocation8 + $0x20] sm:$0xf]
        %v997 = vld [vmem:[#allocation8 + $0x24] sm:$0xf]
        %v998 = vld [vmem:[#allocation8 + $0x28] sm:$0xf]
        %v999 = vld [vmem:[#allocation8 + $0x2c] sm:$0xf]
        %v1000 = vld [vmem:[#allocation8 + $0x30] sm:$0xf]
        %v1001 = vld [vmem:[#allocation8 + $0x34] sm:$0xf]
        %v1002 = vld [vmem:[#allocation8 + $0x38] sm:$0xf]
        %v1003 = vld [vmem:[#allocation8 + $0x3c] sm:$0xf]
        %v1004 = vld [vmem:[#allocation8 + $0x40] sm:$0xf]
        %v1005 = vld [vmem:[#allocation8 + $0x44] sm:$0xf]
        %v1006 = vld [vmem:[#allocation8 + $0x48] sm:$0xf]
        %v1007 = vld [vmem:[#allocation8 + $0x4c] sm:$0xf]
        %v1008 = vld [vmem:[#allocation8 + $0x50] sm:$0xf]
        %v1009 = vld [vmem:[#allocation8 + $0x54] sm:$0xf]
        %v1010 = vld [vmem:[#allocation8 + $0x58] sm:$0xf]
        %v1011 = vld [vmem:[#allocation8 + $0x5c] sm:$0xf]
        %v1012 = vld [vmem:[#allocation8 + $0x60] sm:$0xf]
        %v1013 = vld [vmem:[#allocation8 + $0x64] sm:$0xf]
        %v1014 = vld [vmem:[#allocation8 + $0x68] sm:$0xf]
        %v1015 = vld [vmem:[#allocation8 + $0x6c] sm:$0xf]
        %v1016 = vld [vmem:[#allocation8 + $0x70] sm:$0xf]
        %v1017 = vld [vmem:[#allocation8 + $0x74] sm:$0xf]
        %v1018 = vld [vmem:[#allocation8 + $0x78] sm:$0xf]
        %v1019 = vld [vmem:[#allocation8 + $0x7c] sm:$0xf]
        %v1020 = vld [vmem:[#allocation8 + $0x80] sm:$0xf]
        %v1021 = vld [vmem:[#allocation8 + $0x84] sm:$0xf]
        %v1022 = vld [vmem:[#allocation8 + $0x88] sm:$0xf]
        %v1023 = vld [vmem:[#allocation8 + $0x8c] sm:$0xf]
        %v1024 = vld [vmem:[#allocation8 + $0x90] sm:$0xf]
        %v1025 = vld [vmem:[#allocation8 + $0x94] sm:$0xf]
        %v1026 = vld [vmem:[#allocation8 + $0x98] sm:$0xf]
        %v1027 = vld [vmem:[#allocation8 + $0x9c] sm:$0xf]
        %v1028 = vld [vmem:[#allocation8 + $0xa0] sm:$0xf]
        %v1029 = vld [vmem:[#allocation8 + $0xa4] sm:$0xf]
        %v1030 = vld [vmem:[#allocation8 + $0xa8] sm:$0xf]
        %v1031 = vld [vmem:[#allocation8 + $0xac] sm:$0xf]
        %v1032 = vld [vmem:[#allocation8 + $0xb0] sm:$0xf]
        %v1033 = vld [vmem:[#allocation8 + $0xb4] sm:$0xf]
        %v1034 = vld [vmem:[#allocation8 + $0xb8] sm:$0xf]
        %v1035 = vld [vmem:[#allocation8 + $0xbc] sm:$0xf]
        %v1036 = vld [vmem:[#allocation8 + $0xc0] sm:$0xf]
        %v1037 = vld [vmem:[#allocation8 + $0xc4] sm:$0xf]
        %v1038 = vld [vmem:[#allocation8 + $0xc8] sm:$0xf]
        %v1039 = vld [vmem:[#allocation8 + $0xcc] sm:$0xf]
        %v1040 = vld [vmem:[#allocation8 + $0xd0] sm:$0xf]
        %v1041 = vld [vmem:[#allocation8 + $0xd4] sm:$0xf]
        %v1042 = vld [vmem:[#allocation8 + $0xd8] sm:$0xf]
        %v1043 = vld [vmem:[#allocation8 + $0xdc] sm:$0xf]
        %v1044 = vld [vmem:[#allocation8 + $0xe0] sm:$0xf]
        %v1045 = vld [vmem:[#allocation8 + $0xe4] sm:$0xf]
        %v1046 = vld [vmem:[#allocation8 + $0xe8] sm:$0xf]
        %v1047 = vld [vmem:[#allocation8 + $0xec] sm:$0xf]
        %v1048 = vld [vmem:[#allocation8 + $0xf0] sm:$0xf]
        %v1049 = vld [vmem:[#allocation8 + $0xf4] sm:$0xf]
        %v1050 = vld [vmem:[#allocation8 + $0xf8] sm:$0xf]
        %v1051 = vld [vmem:[#allocation8 + $0xfc] sm:$0xf]
        %v1052 = vld [vmem:[#allocation8 + $0x100] sm:$0xf]
        %v1053 = vld [vmem:[#allocation8 + $0x104] sm:$0xf]
        %v1054 = vld [vmem:[#allocation8 + $0x108] sm:$0xf]
        %v1055 = vld [vmem:[#allocation8 + $0x10c] sm:$0xf]
        %v1056 = vld [vmem:[#allocation8 + $0x110] sm:$0xf]
        %v1057 = vld [vmem:[#allocation8 + $0x114] sm:$0xf]
        %v1058 = vld [vmem:[#allocation8 + $0x118] sm:$0xf]
        %v1059 = vld [vmem:[#allocation8 + $0x11c] sm:$0xf]
        %v1060 = vld [vmem:[#allocation8 + $0x120] sm:$0xf]
        %v1061 = vld [vmem:[#allocation8 + $0x124] sm:$0xf]
        %v1062 = vld [vmem:[#allocation8 + $0x128] sm:$0xf]
        %v1063 = vld [vmem:[#allocation8 + $0x12c] sm:$0xf]
        %v1064 = vld [vmem:[#allocation8 + $0x130] sm:$0xf]
        %v1065 = vld [vmem:[#allocation8 + $0x134] sm:$0xf]
        %v1066 = vld [vmem:[#allocation8 + $0x138] sm:$0xf]
        %v1067 = vld [vmem:[#allocation8 + $0x13c] sm:$0xf]
        %v1068 = vld [vmem:[#allocation8 + $0x140] sm:$0xf]
        %v1069 = vld [vmem:[#allocation8 + $0x144] sm:$0xf]
        %v1070 = vld [vmem:[#allocation8 + $0x148] sm:$0xf]
        %v1071 = vld [vmem:[#allocation8 + $0x14c] sm:$0xf]
        %v1072 = vld [vmem:[#allocation8 + $0x150] sm:$0xf]
        %v1073 = vld [vmem:[#allocation8 + $0x154] sm:$0xf]
        %v1074 = vld [vmem:[#allocation8 + $0x158] sm:$0xf]
        %v1075 = vld [vmem:[#allocation8 + $0x15c] sm:$0xf]
        %v1076 = vld [vmem:[#allocation8 + $0x160] sm:$0xf]
        %v1077 = vld [vmem:[#allocation8 + $0x164] sm:$0xf]
        %v1078 = vld [vmem:[#allocation8 + $0x168] sm:$0xf]
        %v1079 = vld [vmem:[#allocation8 + $0x16c] sm:$0xf]
        %v1080 = vld [vmem:[#allocation8 + $0x170] sm:$0xf]
        %v1081 = vld [vmem:[#allocation8 + $0x174] sm:$0xf]
        %v1082 = vld [vmem:[#allocation8 + $0x178] sm:$0xf]
        %v1083 = vld [vmem:[#allocation8 + $0x17c] sm:$0xf]
        %v1084 = vld [vmem:[#allocation8 + $0x180] sm:$0xf]
        %v1085 = vld [vmem:[#allocation8 + $0x184] sm:$0xf]
        %v1086 = vld [vmem:[#allocation8 + $0x188] sm:$0xf]
        %v1087 = vld [vmem:[#allocation8 + $0x18c] sm:$0xf]
        %v1088 = vld [vmem:[#allocation8 + $0x190] sm:$0xf]
        %v1089 = vld [vmem:[#allocation8 + $0x194] sm:$0xf]
        %v1090 = vld [vmem:[#allocation8 + $0x198] sm:$0xf]
        %v1091 = vld [vmem:[#allocation8 + $0x19c] sm:$0xf]
        %v1092 = vld [vmem:[#allocation8 + $0x1a0] sm:$0xf]
        %v1093 = vld [vmem:[#allocation8 + $0x1a4] sm:$0xf]
        %v1094 = vld [vmem:[#allocation8 + $0x1a8] sm:$0xf]
        %v1095 = vld [vmem:[#allocation8 + $0x1ac] sm:$0xf]
        %v1096 = vld [vmem:[#allocation8 + $0x1b0] sm:$0xf]
        %v1097 = vld [vmem:[#allocation8 + $0x1b4] sm:$0xf]
        %v1098 = vld [vmem:[#allocation8 + $0x1b8] sm:$0xf]
        %v1099 = vld [vmem:[#allocation8 + $0x1bc] sm:$0xf]
        %v1100 = vld [vmem:[#allocation8 + $0x1c0] sm:$0xf]
        %v1101 = vld [vmem:[#allocation8 + $0x1c4] sm:$0xf]
        %v1102 = vld [vmem:[#allocation8 + $0x1c8] sm:$0xf]
        %v1103 = vld [vmem:[#allocation8 + $0x1cc] sm:$0xf]
        %v1104 = vld [vmem:[#allocation8 + $0x1d0] sm:$0xf]
        %v1105 = vld [vmem:[#allocation8 + $0x1d4] sm:$0xf]
        %v1106 = vld [vmem:[#allocation8 + $0x1d8] sm:$0xf]
        %v1107 = vld [vmem:[#allocation8 + $0x1dc] sm:$0xf]
        %v1108 = vld [vmem:[#allocation8 + $0x1e0] sm:$0xf]
        %v1109 = vld [vmem:[#allocation8 + $0x1e4] sm:$0xf]
        %v1110 = vld [vmem:[#allocation8 + $0x1e8] sm:$0xf]
        %v1111 = vld [vmem:[#allocation8 + $0x1ec] sm:$0xf]
        %v1112 = vld [vmem:[#allocation8 + $0x1f0] sm:$0xf]
        %v1113 = vld [vmem:[#allocation8 + $0x1f4] sm:$0xf]
        %v1114 = vld [vmem:[#allocation8 + $0x1f8] sm:$0xf]
        %v1115 = vld [vmem:[#allocation8 + $0x1fc] sm:$0xf]
        %v1116 = vld [vmem:[#allocation9] sm:$0x1]
        %v1118 = vlaneseq
        %v1119 = vshrl.u32 %v1118, 7
        %v1120 = vsub.s32 0, %v1119
        %v1121 = vrot.slane %v1116, %v1120
        %v1251 = vunpack.c.l.b16 %v988
        %v1252 = vunpack.c.l.b16 %v989
        %v1253 = vunpack.c.l.b16 %v990
        %v1254 = vunpack.c.l.b16 %v991
        %v1255 = vunpack.c.l.b16 %v992
        %v1256 = vunpack.c.l.b16 %v993
        %v1257 = vunpack.c.l.b16 %v994
        %v1258 = vunpack.c.l.b16 %v995
        %v1259 = vunpack.c.l.b16 %v996
        %v1260 = vunpack.c.l.b16 %v997
        %v1261 = vunpack.c.l.b16 %v998
        %v1262 = vunpack.c.l.b16 %v999
        %v1263 = vunpack.c.l.b16 %v1000
        %v1264 = vunpack.c.l.b16 %v1001
        %v1265 = vunpack.c.l.b16 %v1002
        %v1266 = vunpack.c.l.b16 %v1003
        %v1267 = vunpack.c.l.b16 %v1004
        %v1268 = vunpack.c.l.b16 %v1005
        %v1269 = vunpack.c.l.b16 %v1006
        %v1270 = vunpack.c.l.b16 %v1007
        %v1271 = vunpack.c.l.b16 %v1008
        %v1272 = vunpack.c.l.b16 %v1009
        %v1273 = vunpack.c.l.b16 %v1010
        %v1274 = vunpack.c.l.b16 %v1011
        %v1275 = vunpack.c.l.b16 %v1012
        %v1276 = vunpack.c.l.b16 %v1013
        %v1277 = vunpack.c.l.b16 %v1014
        %v1278 = vunpack.c.l.b16 %v1015
        %v1279 = vunpack.c.l.b16 %v1016
        %v1280 = vunpack.c.l.b16 %v1017
        %v1281 = vunpack.c.l.b16 %v1018
        %v1282 = vunpack.c.l.b16 %v1019
        %v1283 = vunpack.c.l.b16 %v1020
        %v1284 = vunpack.c.l.b16 %v1021
        %v1285 = vunpack.c.l.b16 %v1022
        %v1286 = vunpack.c.l.b16 %v1023
        %v1287 = vunpack.c.l.b16 %v1024
        %v1288 = vunpack.c.l.b16 %v1025
        %v1289 = vunpack.c.l.b16 %v1026
        %v1290 = vunpack.c.l.b16 %v1027
        %v1291 = vunpack.c.l.b16 %v1028
        %v1292 = vunpack.c.l.b16 %v1029
        %v1293 = vunpack.c.l.b16 %v1030
        %v1294 = vunpack.c.l.b16 %v1031
        %v1295 = vunpack.c.l.b16 %v1032
        %v1296 = vunpack.c.l.b16 %v1033
        %v1297 = vunpack.c.l.b16 %v1034
        %v1298 = vunpack.c.l.b16 %v1035
        %v1299 = vunpack.c.l.b16 %v1036
        %v1300 = vunpack.c.l.b16 %v1037
        %v1301 = vunpack.c.l.b16 %v1038
        %v1302 = vunpack.c.l.b16 %v1039
        %v1303 = vunpack.c.l.b16 %v1040
        %v1304 = vunpack.c.l.b16 %v1041
        %v1305 = vunpack.c.l.b16 %v1042
        %v1306 = vunpack.c.l.b16 %v1043
        %v1307 = vunpack.c.l.b16 %v1044
        %v1308 = vunpack.c.l.b16 %v1045
        %v1309 = vunpack.c.l.b16 %v1046
        %v1310 = vunpack.c.l.b16 %v1047
        %v1311 = vunpack.c.l.b16 %v1048
        %v1312 = vunpack.c.l.b16 %v1049
        %v1313 = vunpack.c.l.b16 %v1050
        %v1314 = vunpack.c.l.b16 %v1051
        %v1315 = vunpack.c.l.b16 %v1052
        %v1316 = vunpack.c.l.b16 %v1053
        %v1317 = vunpack.c.l.b16 %v1054
        %v1318 = vunpack.c.l.b16 %v1055
        %v1319 = vunpack.c.l.b16 %v1056
        %v1320 = vunpack.c.l.b16 %v1057
        %v1321 = vunpack.c.l.b16 %v1058
        %v1322 = vunpack.c.l.b16 %v1059
        %v1323 = vunpack.c.l.b16 %v1060
        %v1324 = vunpack.c.l.b16 %v1061
        %v1325 = vunpack.c.l.b16 %v1062
        %v1326 = vunpack.c.l.b16 %v1063
        %v1327 = vunpack.c.l.b16 %v1064
        %v1328 = vunpack.c.l.b16 %v1065
        %v1329 = vunpack.c.l.b16 %v1066
        %v1330 = vunpack.c.l.b16 %v1067
        %v1331 = vunpack.c.l.b16 %v1068
        %v1332 = vunpack.c.l.b16 %v1069
        %v1333 = vunpack.c.l.b16 %v1070
        %v1334 = vunpack.c.l.b16 %v1071
        %v1335 = vunpack.c.l.b16 %v1072
        %v1336 = vunpack.c.l.b16 %v1073
        %v1337 = vunpack.c.l.b16 %v1074
        %v1338 = vunpack.c.l.b16 %v1075
        %v1339 = vunpack.c.l.b16 %v1076
        %v1340 = vunpack.c.l.b16 %v1077
        %v1341 = vunpack.c.l.b16 %v1078
        %v1342 = vunpack.c.l.b16 %v1079
        %v1343 = vunpack.c.l.b16 %v1080
        %v1344 = vunpack.c.l.b16 %v1081
        %v1345 = vunpack.c.l.b16 %v1082
        %v1346 = vunpack.c.l.b16 %v1083
        %v1347 = vunpack.c.l.b16 %v1084
        %v1348 = vunpack.c.l.b16 %v1085
        %v1349 = vunpack.c.l.b16 %v1086
        %v1350 = vunpack.c.l.b16 %v1087
        %v1351 = vunpack.c.l.b16 %v1088
        %v1352 = vunpack.c.l.b16 %v1089
        %v1353 = vunpack.c.l.b16 %v1090
        %v1354 = vunpack.c.l.b16 %v1091
        %v1355 = vunpack.c.l.b16 %v1092
        %v1356 = vunpack.c.l.b16 %v1093
        %v1357 = vunpack.c.l.b16 %v1094
        %v1358 = vunpack.c.l.b16 %v1095
        %v1359 = vunpack.c.l.b16 %v1096
        %v1360 = vunpack.c.l.b16 %v1097
        %v1361 = vunpack.c.l.b16 %v1098
        %v1362 = vunpack.c.l.b16 %v1099
        %v1363 = vunpack.c.l.b16 %v1100
        %v1364 = vunpack.c.l.b16 %v1101
        %v1365 = vunpack.c.l.b16 %v1102
        %v1366 = vunpack.c.l.b16 %v1103
        %v1367 = vunpack.c.l.b16 %v1104
        %v1368 = vunpack.c.l.b16 %v1105
        %v1369 = vunpack.c.l.b16 %v1106
        %v1370 = vunpack.c.l.b16 %v1107
        %v1371 = vunpack.c.l.b16 %v1108
        %v1372 = vunpack.c.l.b16 %v1109
        %v1373 = vunpack.c.l.b16 %v1110
        %v1374 = vunpack.c.l.b16 %v1111
        %v1375 = vunpack.c.l.b16 %v1112
        %v1376 = vunpack.c.l.b16 %v1113
        %v1377 = vunpack.c.l.b16 %v1114
        %v1378 = vunpack.c.l.b16 %v1115
        %v1379 = vpack.c.b16 %v1252, %v1251
        %v1380 = vpack.c.b16 %v1254, %v1253
        %v1381 = vpack.c.b16 %v1256, %v1255
        %v1382 = vpack.c.b16 %v1258, %v1257
        %v1383 = vpack.c.b16 %v1260, %v1259
        %v1384 = vpack.c.b16 %v1262, %v1261
        %v1385 = vpack.c.b16 %v1264, %v1263
        %v1386 = vpack.c.b16 %v1266, %v1265
        %v1387 = vpack.c.b16 %v1268, %v1267
        %v1388 = vpack.c.b16 %v1270, %v1269
        %v1389 = vpack.c.b16 %v1272, %v1271
        %v1390 = vpack.c.b16 %v1274, %v1273
        %v1391 = vpack.c.b16 %v1276, %v1275
        %v1392 = vpack.c.b16 %v1278, %v1277
        %v1393 = vpack.c.b16 %v1280, %v1279
        %v1394 = vpack.c.b16 %v1282, %v1281
        %v1395 = vpack.c.b16 %v1284, %v1283
        %v1396 = vpack.c.b16 %v1286, %v1285
        %v1397 = vpack.c.b16 %v1288, %v1287
        %v1398 = vpack.c.b16 %v1290, %v1289
        %v1399 = vpack.c.b16 %v1292, %v1291
        %v1400 = vpack.c.b16 %v1294, %v1293
        %v1401 = vpack.c.b16 %v1296, %v1295
        %v1402 = vpack.c.b16 %v1298, %v1297
        %v1403 = vpack.c.b16 %v1300, %v1299
        %v1404 = vpack.c.b16 %v1302, %v1301
        %v1405 = vpack.c.b16 %v1304, %v1303
        %v1406 = vpack.c.b16 %v1306, %v1305
        %v1407 = vpack.c.b16 %v1308, %v1307
        %v1408 = vpack.c.b16 %v1310, %v1309
        %v1409 = vpack.c.b16 %v1312, %v1311
        %v1410 = vpack.c.b16 %v1314, %v1313
        %v1411 = vpack.c.b16 %v1316, %v1315
        %v1412 = vpack.c.b16 %v1318, %v1317
        %v1413 = vpack.c.b16 %v1320, %v1319
        %v1414 = vpack.c.b16 %v1322, %v1321
        %v1415 = vpack.c.b16 %v1324, %v1323
        %v1416 = vpack.c.b16 %v1326, %v1325
        %v1417 = vpack.c.b16 %v1328, %v1327
        %v1418 = vpack.c.b16 %v1330, %v1329
        %v1419 = vpack.c.b16 %v1332, %v1331
        %v1420 = vpack.c.b16 %v1334, %v1333
        %v1421 = vpack.c.b16 %v1336, %v1335
        %v1422 = vpack.c.b16 %v1338, %v1337
        %v1423 = vpack.c.b16 %v1340, %v1339
        %v1424 = vpack.c.b16 %v1342, %v1341
        %v1425 = vpack.c.b16 %v1344, %v1343
        %v1426 = vpack.c.b16 %v1346, %v1345
        %v1427 = vpack.c.b16 %v1348, %v1347
        %v1428 = vpack.c.b16 %v1350, %v1349
        %v1429 = vpack.c.b16 %v1352, %v1351
        %v1430 = vpack.c.b16 %v1354, %v1353
        %v1431 = vpack.c.b16 %v1356, %v1355
        %v1432 = vpack.c.b16 %v1358, %v1357
        %v1433 = vpack.c.b16 %v1360, %v1359
        %v1434 = vpack.c.b16 %v1362, %v1361
        %v1435 = vpack.c.b16 %v1364, %v1363
        %v1436 = vpack.c.b16 %v1366, %v1365
        %v1437 = vpack.c.b16 %v1368, %v1367
        %v1438 = vpack.c.b16 %v1370, %v1369
        %v1439 = vpack.c.b16 %v1372, %v1371
        %v1440 = vpack.c.b16 %v1374, %v1373
        %v1441 = vpack.c.b16 %v1376, %v1375
        %v1442 = vpack.c.b16 %v1378, %v1377
        %1507 = vmatprep.subr.bf16.mxu0 0
        %1508 = vmatpush1.bf16.msra.mxu0 %v1386
        %1509 = vmatprep.subr.bf16.mxu0 0
        %1510 = vmatpush1.bf16.msra.mxu0 %v1385
        %1511 = vmatprep.subr.bf16.mxu0 0
        %1512 = vmatpush1.bf16.msra.mxu0 %v1384
        %1513 = vmatprep.subr.bf16.mxu0 0
        %1514 = vmatpush1.bf16.msra.mxu0 %v1383
        %1515 = vmatprep.subr.bf16.mxu0 0
        %1516 = vmatpush1.bf16.msra.mxu0 %v1382
        %1517 = vmatprep.subr.bf16.mxu0 0
        %1518 = vmatpush1.bf16.msra.mxu0 %v1381
        %1519 = vmatprep.subr.bf16.mxu0 0
        %1520 = vmatpush1.bf16.msra.mxu0 %v1380
        %1521 = vmatprep.subr.bf16.mxu0 0
        %1522 = vmatpush1.bf16.msra.mxu0 %v1379
        %1523 = vmatprep.subr.bf16.mxu0 0
        %1524 = vmatpush2.bf16.msra.mxu0 %v1394
        %1525 = vmatprep.subr.bf16.mxu0 0
        %1526 = vmatpush2.bf16.msra.mxu0 %v1393
        %1527 = vmatprep.subr.bf16.mxu0 0
        %1528 = vmatpush2.bf16.msra.mxu0 %v1392
        %1529 = vmatprep.subr.bf16.mxu0 0
        %1530 = vmatpush2.bf16.msra.mxu0 %v1391
        %1531 = vmatprep.subr.bf16.mxu0 0
        %1532 = vmatpush2.bf16.msra.mxu0 %v1390
        %1533 = vmatprep.subr.bf16.mxu0 0
        %1534 = vmatpush2.bf16.msra.mxu0 %v1389
        %1535 = vmatprep.subr.bf16.mxu0 0
        %1536 = vmatpush2.bf16.msra.mxu0 %v1388
        %1537 = vmatprep.subr.bf16.mxu0 0
        %1538 = vmatpush2.bf16.msra.mxu0 %v1387
        %1539 = vmatprep.mubr.bf16.mxu0 %v981
        %1540 = vmatmul.mubr.bf16.gmra.mxu0 %v980
        %v1541 = vpop.f32.mrf.mxu0
        %v1542 = vadd.f32 %v1121, %v1541
        %v1543 = vpop.f32.mrf.mxu0
        %v1544 = vpop.f32.mrf.mxu0
        %v1545 = vpop.f32.mrf.mxu0
        %1546 = vdwg.mxu0
        %1547 = vmatprep.subr.bf16.mxu0 0
        %1548 = vmatpush1.bf16.msra.mxu0 %v1402
        %1549 = vmatprep.subr.bf16.mxu0 0
        %1550 = vmatpush1.bf16.msra.mxu0 %v1401
        %1551 = vmatprep.subr.bf16.mxu0 0
        %1552 = vmatpush1.bf16.msra.mxu0 %v1400
        %1553 = vmatprep.subr.bf16.mxu0 0
        %1554 = vmatpush1.bf16.msra.mxu0 %v1399
        %1555 = vmatprep.subr.bf16.mxu0 0
        %1556 = vmatpush1.bf16.msra.mxu0 %v1398
        %1557 = vmatprep.subr.bf16.mxu0 0
        %1558 = vmatpush1.bf16.msra.mxu0 %v1397
        %1559 = vmatprep.subr.bf16.mxu0 0
        %1560 = vmatpush1.bf16.msra.mxu0 %v1396
        %1561 = vmatprep.subr.bf16.mxu0 0
        %1562 = vmatpush1.bf16.msra.mxu0 %v1395
        %1563 = vmatprep.subr.bf16.mxu0 0
        %1564 = vmatpush2.bf16.msra.mxu0 %v1410
        %1565 = vmatprep.subr.bf16.mxu0 0
        %1566 = vmatpush2.bf16.msra.mxu0 %v1409
        %1567 = vmatprep.subr.bf16.mxu0 0
        %1568 = vmatpush2.bf16.msra.mxu0 %v1408
        %1569 = vmatprep.subr.bf16.mxu0 0
        %1570 = vmatpush2.bf16.msra.mxu0 %v1407
        %1571 = vmatprep.subr.bf16.mxu0 0
        %1572 = vmatpush2.bf16.msra.mxu0 %v1406
        %1573 = vmatprep.subr.bf16.mxu0 0
        %1574 = vmatpush2.bf16.msra.mxu0 %v1405
        %1575 = vmatprep.subr.bf16.mxu0 0
        %1576 = vmatpush2.bf16.msra.mxu0 %v1404
        %1577 = vmatprep.subr.bf16.mxu0 0
        %1578 = vmatpush2.bf16.msra.mxu0 %v1403
        %1579 = vmatprep.mubr.bf16.mxu0 %v983
        %1580 = vmatmul.mubr.bf16.gmra.mxu0 %v982
        %v1581 = vpop.f32.mrf.mxu0
        %v1582 = vadd.f32 %v1542, %v1581
        %v1583 = vpop.f32.mrf.mxu0
        %v1584 = vpop.f32.mrf.mxu0
        %v1585 = vpop.f32.mrf.mxu0
        %1586 = vdwg.mxu0
        %1587 = vmatprep.subr.bf16.mxu0 0
        %1588 = vmatpush1.bf16.msra.mxu0 %v1418
        %1589 = vmatprep.subr.bf16.mxu0 0
        %1590 = vmatpush1.bf16.msra.mxu0 %v1417
        %1591 = vmatprep.subr.bf16.mxu0 0
        %1592 = vmatpush1.bf16.msra.mxu0 %v1416
        %1593 = vmatprep.subr.bf16.mxu0 0
        %1594 = vmatpush1.bf16.msra.mxu0 %v1415
        %1595 = vmatprep.subr.bf16.mxu0 0
        %1596 = vmatpush1.bf16.msra.mxu0 %v1414
        %1597 = vmatprep.subr.bf16.mxu0 0
        %1598 = vmatpush1.bf16.msra.mxu0 %v1413
        %1599 = vmatprep.subr.bf16.mxu0 0
        %1600 = vmatpush1.bf16.msra.mxu0 %v1412
        %1601 = vmatprep.subr.bf16.mxu0 0
        %1602 = vmatpush1.bf16.msra.mxu0 %v1411
        %1603 = vmatprep.subr.bf16.mxu0 0
        %1604 = vmatpush2.bf16.msra.mxu0 %v1426
        %1605 = vmatprep.subr.bf16.mxu0 0
        %1606 = vmatpush2.bf16.msra.mxu0 %v1425
        %1607 = vmatprep.subr.bf16.mxu0 0
        %1608 = vmatpush2.bf16.msra.mxu0 %v1424
        %1609 = vmatprep.subr.bf16.mxu0 0
        %1610 = vmatpush2.bf16.msra.mxu0 %v1423
        %1611 = vmatprep.subr.bf16.mxu0 0
        %1612 = vmatpush2.bf16.msra.mxu0 %v1422
        %1613 = vmatprep.subr.bf16.mxu0 0
        %1614 = vmatpush2.bf16.msra.mxu0 %v1421
        %1615 = vmatprep.subr.bf16.mxu0 0
        %1616 = vmatpush2.bf16.msra.mxu0 %v1420
        %1617 = vmatprep.subr.bf16.mxu0 0
        %1618 = vmatpush2.bf16.msra.mxu0 %v1419
        %1619 = vmatprep.mubr.bf16.mxu0 %v985
        %1620 = vmatmul.mubr.bf16.gmra.mxu0 %v984
        %v1621 = vpop.f32.mrf.mxu0
        %v1622 = vadd.f32 %v1582, %v1621
        %v1623 = vpop.f32.mrf.mxu0
        %v1624 = vpop.f32.mrf.mxu0
        %v1625 = vpop.f32.mrf.mxu0
        %1626 = vdwg.mxu0
        %1627 = vmatprep.subr.bf16.mxu0 0
        %1628 = vmatpush1.bf16.msra.mxu0 %v1434
        %1629 = vmatprep.subr.bf16.mxu0 0
        %1630 = vmatpush1.bf16.msra.mxu0 %v1433
        %1631 = vmatprep.subr.bf16.mxu0 0
        %1632 = vmatpush1.bf16.msra.mxu0 %v1432
        %1633 = vmatprep.subr.bf16.mxu0 0
        %1634 = vmatpush1.bf16.msra.mxu0 %v1431
        %1635 = vmatprep.subr.bf16.mxu0 0
        %1636 = vmatpush1.bf16.msra.mxu0 %v1430
        %1637 = vmatprep.subr.bf16.mxu0 0
        %1638 = vmatpush1.bf16.msra.mxu0 %v1429
        %1639 = vmatprep.subr.bf16.mxu0 0
        %1640 = vmatpush1.bf16.msra.mxu0 %v1428
        %1641 = vmatprep.subr.bf16.mxu0 0
        %1642 = vmatpush1.bf16.msra.mxu0 %v1427
        %1643 = vmatprep.subr.bf16.mxu0 0
        %1644 = vmatpush2.bf16.msra.mxu0 %v1442
        %1645 = vmatprep.subr.bf16.mxu0 0
        %1646 = vmatpush2.bf16.msra.mxu0 %v1441
        %1647 = vmatprep.subr.bf16.mxu0 0
        %1648 = vmatpush2.bf16.msra.mxu0 %v1440
        %1649 = vmatprep.subr.bf16.mxu0 0
        %1650 = vmatpush2.bf16.msra.mxu0 %v1439
        %1651 = vmatprep.subr.bf16.mxu0 0
        %1652 = vmatpush2.bf16.msra.mxu0 %v1438
        %1653 = vmatprep.subr.bf16.mxu0 0
        %1654 = vmatpush2.bf16.msra.mxu0 %v1437
        %1655 = vmatprep.subr.bf16.mxu0 0
        %1656 = vmatpush2.bf16.msra.mxu0 %v1436
        %1657 = vmatprep.subr.bf16.mxu0 0
        %1658 = vmatpush2.bf16.msra.mxu0 %v1435
        %1659 = vmatprep.mubr.bf16.mxu0 %v987
        %1660 = vmatmul.mubr.bf16.gmra.mxu0 %v986
        %v1661 = vpop.f32.mrf.mxu0
        %v1662 = vadd.f32 %v1622, %v1661
        %v1663 = vpop.f32.mrf.mxu0
        %v1664 = vpop.f32.mrf.mxu0
        %v1665 = vpop.f32.mrf.mxu0
        %1666 = vdwg.mxu0
        %vm1667 = vcmp.ge.f32.partialorder %v1662, 0.0
        %v1668 = vmul.f32 %v1662, 0.01
        %v1669 = vsel %vm1667, %v1662, %v1668
        %v1670 = vld [vmem:[%s689] sm:$0xff]
        %v1671 = vld [vmem:[%s689 + $0x8] sm:$0xff]
        %v1672 = vld [vmem:[#allocation11] sm:$0x1]
        %1674 = vset.pattern.permute.xlu0 0
        %1675 = vperm.xlu0 %1674, %v1670
        %v1676 = vpop.permute.xlu0 %1675
        %1679 = vset.pattern.permute.xlu0 0
        %1680 = vperm.xlu0 %1679, %v1671
        %v1681 = vpop.permute.xlu0 %1680
        %v1684 = vlaneseq
        %v1685 = vshrl.u32 %v1684, 7
        %v1686 = vsub.s32 0, %v1685
        %v1687 = vrot.slane %v1672, %v1686
        %v1689 = vmul.f32 %v1676, %v1687
        %v1690 = vmul.f32 %v1681, %v1687
        %v1691 = vld [vmem:[%s7] sm:$0x1]
        %v1693 = vlaneseq
        %v1694 = vshrl.u32 %v1693, 7
        %v1695 = vsub.s32 0, %v1694
        %v1696 = vrot.slane %v1691, %v1695
        %v1698 = vadd.f32 %v1689, %v1696
        %v1699 = vadd.f32 %v1690, %v1696
        %v1700 = vld [vmem:[%s694] sm:$0xf]
        %v1701 = vld [vmem:[%s694 + $0x4] sm:$0xf]
        %v1702 = vlaneseq
        %v1703 = vand.u32 %v1702, 127
        %vm1704 = vcmp.lt.s32.totalorder %v1703, 100
        %v1705 = vsel %vm1704, 1, 0
        %v1706 = vcvt.s32.f32 %v1705
        %v1707 = vlaneseq
        %v1708 = vshrl.u32 %v1707, 7
        %v1709 = vadd.s32 %v1708, 8
        %vm1710 = vcmp.lt.s32.totalorder %v1708, 16
        %vm1711 = vcmp.lt.s32.totalorder %v1709, 16
        %v1712 = vsel %vm1710, 1, 0
        %v1713 = vsel %vm1711, 1, 0
        %v1714 = vcvt.s32.f32 %v1712
        %v1715 = vcvt.s32.f32 %v1713
        %1716 = vadd.xlane.f32.xlu0 %v1698
        %v1717 = vpop.xlane.xlu0 %1716
        %1718 = vadd.xlane.f32.xlu0 %v1699
        %v1719 = vpop.xlane.xlu0 %1718
        %v1720 = vmul.f32 %v1717, 0.01
        %v1721 = vmul.f32 %v1719, 0.01
        %v1722 = vsub.f32 %v1698, %v1720
        %v1723 = vsub.f32 %v1699, %v1721
        %v1724 = vmul.f32 %v1706, %v1722
        %v1725 = vmul.f32 %v1706, %v1723
        %v1726 = vmul.f32 %v1724, %v1722
        %v1727 = vmul.f32 %v1725, %v1723
        %1728 = vadd.xlane.f32.xlu0 %v1726
        %v1729 = vpop.xlane.xlu0 %1728
        %1730 = vadd.xlane.f32.xlu0 %v1727
        %v1731 = vpop.xlane.xlu0 %1730
        %v1732 = vmul.f32 %v1729, 0.01
        %v1733 = vmul.f32 %v1731, 0.01
        %v1734 = vadd.f32 %v1732, 1e-05
        %v1735 = vadd.f32 %v1733, 1e-05
        %v1736 = vrsqrt.pop %v1734
        %v1737 = vrsqrt.pop %v1735
        %v1738 = vmul.f32 %v1722, %v1736
        %v1739 = vmul.f32 %v1723, %v1737
        %v1740 = vld [vmem:[%s9] sm:$0x1]
        %v1742 = vlaneseq
        %v1743 = vshrl.u32 %v1742, 7
        %v1744 = vsub.s32 0, %v1743
        %v1745 = vrot.slane %v1740, %v1744
        %v1747 = vmul.f32 %v1738, %v1745
        %v1748 = vmul.f32 %v1739, %v1745
        %v1749 = vld [vmem:[%s10] sm:$0x1]
        %v1751 = vlaneseq
        %v1752 = vshrl.u32 %v1751, 7
        %v1753 = vsub.s32 0, %v1752
        %v1754 = vrot.slane %v1749, %v1753
        %v1756 = vadd.f32 %v1747, %v1754
        %v1757 = vadd.f32 %v1748, %v1754
        %v1758 = vmax.f32 %v1756, 0.0
        %v1759 = vmax.f32 %v1757, 0.0
        %v1760 = vadd.f32 %v1758, 1e-07
        %v1761 = vadd.f32 %v1759, 1e-07
        %v1762 = vmul.f32 %v1760, %v1714
        %v1763 = vmul.f32 %v1761, %v1715
        %v1764 = vmax.f32 %v1762, %v1763
        %v1765 = vrot.slane %v1764, 4
        %v1766 = vmax.f32 %v1764, %v1765
        %v1767 = vrot.slane %v1766, 2
        %v1768 = vmax.f32 %v1766, %v1767
        %v1769 = vrot.slane %v1768, 1
        %v1770 = vmax.f32 %v1768, %v1769
        %v1771 = vsub.f32 %v1760, %v1770
        %v1772 = vsub.f32 %v1761, %v1770
        %v1773 = vmul.f32 %v1771, 1.442695
        %v1774 = vpow.pop %v1773
        %v1775 = vmul.f32 %v1772, 1.442695
        %v1776 = vpow.pop %v1775
        %v1777 = vmul.f32 %v1774, %v1760
        %v1778 = vmul.f32 %v1776, %v1761
        %v1779 = vpack.c.bf16 %v1778, %v1777
        %v1781 = vunpack.c.l.b16 %v1779
        %v1782 = vunpack.c.h.b16 %v1779
        %v1783 = vpack.c.b16 %v1781, %v1781
        %v1784 = vpack.c.b16 %v1782, %v1782
        %1787 = vst [vmem:[#allocation2] sm:$0xf] %v1783
        %1788 = vst [vmem:[#allocation2 + $0x8] sm:$0xf] %v1784
        %v1789 = vpack.c.bf16 %v1776, %v1774
        %v1791 = vunpack.c.l.b16 %v1789
        %v1792 = vunpack.c.h.b16 %v1789
        %v1793 = vpack.c.b16 %v1791, %v1791
        %v1794 = vpack.c.b16 %v1792, %v1792
        %1797 = vst [vmem:[#allocation2 + $0x4] sm:$0xf] %v1793
        %1798 = vst [vmem:[#allocation2 + $0xc] sm:$0xf] %v1794
        %v1799 = vld [vmem:[#allocation2] sm:$0xff]
        %v1800 = vld [vmem:[#allocation2 + $0x8] sm:$0xff]
        %v1803 = vunpack.c.l.b16 %v1700
        %v1804 = vunpack.c.l.b16 %v1701
        %v1805 = vpack.c.b16 %v1804, %v1803
        %v1808 = vunpack.c.l.b16 %v1799
        %v1809 = vunpack.c.h.b16 %v1799
        %v1810 = vunpack.c.l.b16 %v1800
        %v1811 = vunpack.c.h.b16 %v1800
        %v1812 = vpack.c.b16 %v1810, %v1808
        %v1813 = vpack.c.b16 %v1811, %v1809
        %v1817 = vsel %vm788, %v1805, 0
        %1819 = vmatprep.subr.bf16.mxu0 0
        %1820 = vmatpush1.bf16.msra.mxu0 0
        %1821 = vmatprep.subr.bf16.mxu0 0
        %1822 = vmatpush1.bf16.msra.mxu0 0
        %1823 = vmatprep.subr.bf16.mxu0 0
        %1824 = vmatpush1.bf16.msra.mxu0 0
        %1825 = vmatprep.subr.bf16.mxu0 0
        %1826 = vmatpush1.bf16.msra.mxu0 0
        %1827 = vmatprep.subr.bf16.mxu0 0
        %1828 = vmatpush1.bf16.msra.mxu0 0
        %1829 = vmatprep.subr.bf16.mxu0 0
        %1830 = vmatpush1.bf16.msra.mxu0 0
        %1831 = vmatprep.subr.bf16.mxu0 0
        %1832 = vmatpush1.bf16.msra.mxu0 0
        %1833 = vmatprep.subr.bf16.mxu0 %v1813
        %1834 = vmatpush1.bf16.msra.mxu0 %v1812
        %1835 = vmatprep.subr.bf16.mxu0 0
        %1836 = vmatpush2.bf16.msra.mxu0 0
        %1837 = vmatprep.subr.bf16.mxu0 0
        %1838 = vmatpush2.bf16.msra.mxu0 0
        %1839 = vmatprep.subr.bf16.mxu0 0
        %1840 = vmatpush2.bf16.msra.mxu0 0
        %1841 = vmatprep.subr.bf16.mxu0 0
        %1842 = vmatpush2.bf16.msra.mxu0 0
        %1843 = vmatprep.subr.bf16.mxu0 0
        %1844 = vmatpush2.bf16.msra.mxu0 0
        %1845 = vmatprep.subr.bf16.mxu0 0
        %1846 = vmatpush2.bf16.msra.mxu0 0
        %1847 = vmatprep.subr.bf16.mxu0 0
        %1848 = vmatpush2.bf16.msra.mxu0 0
        %1849 = vmatprep.subr.bf16.mxu0 0
        %1850 = vmatpush2.bf16.msra.mxu0 0
        %1851 = vmatprep.mubr.bf16.mxu0 0
        %1852 = vmatmul.mubr.bf16.gmra.mxu0 %v1817
        %v1853 = vpop.f32.mrf.mxu0
        %v1854 = vadd.f32 0.0, %v1853
        %v1855 = vpop.f32.mrf.mxu0
        %v1856 = vadd.f32 0.0, %v1855
        %v1857 = vpop.f32.mrf.mxu0
        %v1858 = vadd.f32 0.0, %v1857
        %v1859 = vpop.f32.mrf.mxu0
        %v1860 = vadd.f32 0.0, %v1859
        %1861 = vdwg.mxu0
        %vm1862 = vcmp.gt.f32.partialorder %v1856, 0.0
        %vm1863 = vcmp.gt.f32.partialorder %v1860, 0.0
        %v1864 = vsel %vm1862, %v1856, 1.0
        %v1865 = vsel %vm1863, %v1860, 1.0
        %v1866 = vrcp.pop %v1864
        %v1867 = vrcp.pop %v1865
        %v1868 = vmul.f32 %v1854, %v1866
        %v1869 = vmul.f32 %v1858, %v1867
        %v1870 = vsel %vm1862, %v1868, 0.0
        %v1871 = vsel %vm1863, %v1869, 0.0
        %v1872 = vadd.f32 %v1870, %v1758
        %v1873 = vadd.f32 %v1871, %v1759
        %v1874 = vpack.c.bf16 %v1873, %v1872
        %v1875 = vld [vmem:[#allocation12] sm:$0xff]
        %v1876 = vld [vmem:[#allocation12 + $0x8] sm:$0xff]
        %v1877 = vld [vmem:[#allocation12 + $0x10] sm:$0xff]
        %v1878 = vld [vmem:[#allocation12 + $0x18] sm:$0xff]
        %v1879 = vld [vmem:[#allocation12 + $0x20] sm:$0xff]
        %v1880 = vld [vmem:[#allocation12 + $0x28] sm:$0xff]
        %v1881 = vld [vmem:[#allocation12 + $0x30] sm:$0xff]
        %v1882 = vld [vmem:[#allocation12 + $0x38] sm:$0xff]
        %v1883 = vld [vmem:[#allocation12 + $0x40] sm:$0xff]
        %v1884 = vld [vmem:[#allocation12 + $0x48] sm:$0xff]
        %v1885 = vld [vmem:[#allocation12 + $0x50] sm:$0xff]
        %v1886 = vld [vmem:[#allocation12 + $0x58] sm:$0xff]
        %v1887 = vld [vmem:[#allocation12 + $0x60] sm:$0xff]
        %v1888 = vld [vmem:[#allocation12 + $0x68] sm:$0xff]
        %v1889 = vld [vmem:[#allocation12 + $0x70] sm:$0xff]
        %v1890 = vld [vmem:[#allocation12 + $0x78] sm:$0xff]
        %v1891 = vld [vmem:[%s12] sm:$0x3]
        %v1893 = vlaneseq
        %v1894 = vshrl.u32 %v1893, 7
        %v1895 = vsub.s32 0, %v1894
        %v1896 = vrot.slane %v1891, %v1895
        %v1897 = vlaneseq
        %v1898 = vshrl.u32 %v1897, 7
        %v1899 = vsub.s32 1, %v1898
        %v1900 = vrot.slane %v1891, %v1899
        %v1919 = vunpack.c.l.b16 %v1875
        %v1920 = vunpack.c.h.b16 %v1875
        %v1921 = vunpack.c.l.b16 %v1876
        %v1922 = vunpack.c.h.b16 %v1876
        %v1923 = vunpack.c.l.b16 %v1877
        %v1924 = vunpack.c.h.b16 %v1877
        %v1925 = vunpack.c.l.b16 %v1878
        %v1926 = vunpack.c.h.b16 %v1878
        %v1927 = vunpack.c.l.b16 %v1879
        %v1928 = vunpack.c.h.b16 %v1879
        %v1929 = vunpack.c.l.b16 %v1880
        %v1930 = vunpack.c.h.b16 %v1880
        %v1931 = vunpack.c.l.b16 %v1881
        %v1932 = vunpack.c.h.b16 %v1881
        %v1933 = vunpack.c.l.b16 %v1882
        %v1934 = vunpack.c.h.b16 %v1882
        %v1935 = vunpack.c.l.b16 %v1883
        %v1936 = vunpack.c.h.b16 %v1883
        %v1937 = vunpack.c.l.b16 %v1884
        %v1938 = vunpack.c.h.b16 %v1884
        %v1939 = vunpack.c.l.b16 %v1885
        %v1940 = vunpack.c.h.b16 %v1885
        %v1941 = vunpack.c.l.b16 %v1886
        %v1942 = vunpack.c.h.b16 %v1886
        %v1943 = vunpack.c.l.b16 %v1887
        %v1944 = vunpack.c.h.b16 %v1887
        %v1945 = vunpack.c.l.b16 %v1888
        %v1946 = vunpack.c.h.b16 %v1888
        %v1947 = vunpack.c.l.b16 %v1889
        %v1948 = vunpack.c.h.b16 %v1889
        %v1949 = vunpack.c.l.b16 %v1890
        %v1950 = vunpack.c.h.b16 %v1890
        %v1951 = vpack.c.b16 %v1921, %v1919
        %v1952 = vpack.c.b16 %v1922, %v1920
        %v1953 = vpack.c.b16 %v1925, %v1923
        %v1954 = vpack.c.b16 %v1926, %v1924
        %v1955 = vpack.c.b16 %v1929, %v1927
        %v1956 = vpack.c.b16 %v1930, %v1928
        %v1957 = vpack.c.b16 %v1933, %v1931
        %v1958 = vpack.c.b16 %v1934, %v1932
        %v1959 = vpack.c.b16 %v1937, %v1935
        %v1960 = vpack.c.b16 %v1938, %v1936
        %v1961 = vpack.c.b16 %v1941, %v1939
        %v1962 = vpack.c.b16 %v1942, %v1940
        %v1963 = vpack.c.b16 %v1945, %v1943
        %v1964 = vpack.c.b16 %v1946, %v1944
        %v1965 = vpack.c.b16 %v1949, %v1947
        %v1966 = vpack.c.b16 %v1950, %v1948
        %1983 = vmatprep.subr.bf16.mxu0 %v1966
        %1984 = vmatpush1.bf16.msra.mxu0 %v1965
        %1985 = vmatprep.subr.bf16.mxu0 %v1964
        %1986 = vmatpush1.bf16.msra.mxu0 %v1963
        %1987 = vmatprep.subr.bf16.mxu0 %v1962
        %1988 = vmatpush1.bf16.msra.mxu0 %v1961
        %1989 = vmatprep.subr.bf16.mxu0 %v1960
        %1990 = vmatpush1.bf16.msra.mxu0 %v1959
        %1991 = vmatprep.subr.bf16.mxu0 %v1958
        %1992 = vmatpush1.bf16.msra.mxu0 %v1957
        %1993 = vmatprep.subr.bf16.mxu0 %v1956
        %1994 = vmatpush1.bf16.msra.mxu0 %v1955
        %1995 = vmatprep.subr.bf16.mxu0 %v1954
        %1996 = vmatpush1.bf16.msra.mxu0 %v1953
        %1997 = vmatprep.subr.bf16.mxu0 %v1952
        %1998 = vmatpush1.bf16.msra.mxu0 %v1951
        %1999 = vmatprep.subr.bf16.mxu0 0
        %2000 = vmatpush2.bf16.msra.mxu0 0
        %2001 = vmatprep.subr.bf16.mxu0 0
        %2002 = vmatpush2.bf16.msra.mxu0 0
        %2003 = vmatprep.subr.bf16.mxu0 0
        %2004 = vmatpush2.bf16.msra.mxu0 0
        %2005 = vmatprep.subr.bf16.mxu0 0
        %2006 = vmatpush2.bf16.msra.mxu0 0
        %2007 = vmatprep.subr.bf16.mxu0 0
        %2008 = vmatpush2.bf16.msra.mxu0 0
        %2009 = vmatprep.subr.bf16.mxu0 0
        %2010 = vmatpush2.bf16.msra.mxu0 0
        %2011 = vmatprep.subr.bf16.mxu0 0
        %2012 = vmatpush2.bf16.msra.mxu0 0
        %2013 = vmatprep.subr.bf16.mxu0 0
        %2014 = vmatpush2.bf16.msra.mxu0 0
        %2015 = vmatprep.mubr.bf16.mxu0 0
        %2016 = vmatmul.mubr.bf16.gmra.mxu0 %v1874
        %v2017 = vpop.f32.mrf.mxu0
        %v2018 = vadd.f32 %v1896, %v2017
        %v2019 = vpop.f32.mrf.mxu0
        %v2020 = vadd.f32 %v1900, %v2019
        %v2021 = vpop.f32.mrf.mxu0
        %v2022 = vadd.f32 %v1896, %v2021
        %v2023 = vpop.f32.mrf.mxu0
        %v2024 = vadd.f32 %v1900, %v2023
        %2025 = vdwg.mxu0
        %v2026 = vmax.f32 %v2018, 0.0
        %v2027 = vmax.f32 %v2020, 0.0
        %v2028 = vmax.f32 %v2022, 0.0
        %v2029 = vmax.f32 %v2024, 0.0
        %v2030 = vpack.c.bf16 %v2028, %v2026
        %v2031 = vpack.c.bf16 %v2029, %v2027
        %v2032 = vld [vmem:[#allocation14] sm:$0xf]
        %v2033 = vld [vmem:[#allocation14 + $0x4] sm:$0xf]
        %v2034 = vld [vmem:[#allocation14 + $0x8] sm:$0xf]
        %v2035 = vld [vmem:[#allocation14 + $0xc] sm:$0xf]
        %v2036 = vld [vmem:[#allocation14 + $0x10] sm:$0xf]
        %v2037 = vld [vmem:[#allocation14 + $0x14] sm:$0xf]
        %v2038 = vld [vmem:[#allocation14 + $0x18] sm:$0xf]
        %v2039 = vld [vmem:[#allocation14 + $0x1c] sm:$0xf]
        %v2040 = vld [vmem:[#allocation14 + $0x20] sm:$0xf]
        %v2041 = vld [vmem:[#allocation14 + $0x24] sm:$0xf]
        %v2042 = vld [vmem:[#allocation14 + $0x28] sm:$0xf]
        %v2043 = vld [vmem:[#allocation14 + $0x2c] sm:$0xf]
        %v2044 = vld [vmem:[#allocation14 + $0x30] sm:$0xf]
        %v2045 = vld [vmem:[#allocation14 + $0x34] sm:$0xf]
        %v2046 = vld [vmem:[#allocation14 + $0x38] sm:$0xf]
        %v2047 = vld [vmem:[#allocation14 + $0x3c] sm:$0xf]
        %v2048 = vld [vmem:[#allocation14 + $0x40] sm:$0xf]
        %v2049 = vld [vmem:[#allocation14 + $0x44] sm:$0xf]
        %v2050 = vld [vmem:[#allocation14 + $0x48] sm:$0xf]
        %v2051 = vld [vmem:[#allocation14 + $0x4c] sm:$0xf]
        %v2052 = vld [vmem:[#allocation14 + $0x50] sm:$0xf]
        %v2053 = vld [vmem:[#allocation14 + $0x54] sm:$0xf]
        %v2054 = vld [vmem:[#allocation14 + $0x58] sm:$0xf]
        %v2055 = vld [vmem:[#allocation14 + $0x5c] sm:$0xf]
        %v2056 = vld [vmem:[#allocation14 + $0x60] sm:$0xf]
        %v2057 = vld [vmem:[#allocation14 + $0x64] sm:$0xf]
        %v2058 = vld [vmem:[#allocation14 + $0x68] sm:$0xf]
        %v2059 = vld [vmem:[#allocation14 + $0x6c] sm:$0xf]
        %v2060 = vld [vmem:[#allocation14 + $0x70] sm:$0xf]
        %v2061 = vld [vmem:[#allocation14 + $0x74] sm:$0xf]
        %v2062 = vld [vmem:[#allocation14 + $0x78] sm:$0xf]
        %v2063 = vld [vmem:[#allocation14 + $0x7c] sm:$0xf]
        %v2064 = vld [vmem:[%s14] sm:$0x1]
        %v2066 = vlaneseq
        %v2067 = vshrl.u32 %v2066, 7
        %v2068 = vsub.s32 0, %v2067
        %v2069 = vrot.slane %v2064, %v2068
        %v2103 = vunpack.c.l.b16 %v2032
        %v2104 = vunpack.c.l.b16 %v2033
        %v2105 = vunpack.c.l.b16 %v2034
        %v2106 = vunpack.c.l.b16 %v2035
        %v2107 = vunpack.c.l.b16 %v2036
        %v2108 = vunpack.c.l.b16 %v2037
        %v2109 = vunpack.c.l.b16 %v2038
        %v2110 = vunpack.c.l.b16 %v2039
        %v2111 = vunpack.c.l.b16 %v2040
        %v2112 = vunpack.c.l.b16 %v2041
        %v2113 = vunpack.c.l.b16 %v2042
        %v2114 = vunpack.c.l.b16 %v2043
        %v2115 = vunpack.c.l.b16 %v2044
        %v2116 = vunpack.c.l.b16 %v2045
        %v2117 = vunpack.c.l.b16 %v2046
        %v2118 = vunpack.c.l.b16 %v2047
        %v2119 = vunpack.c.l.b16 %v2048
        %v2120 = vunpack.c.l.b16 %v2049
        %v2121 = vunpack.c.l.b16 %v2050
        %v2122 = vunpack.c.l.b16 %v2051
        %v2123 = vunpack.c.l.b16 %v2052
        %v2124 = vunpack.c.l.b16 %v2053
        %v2125 = vunpack.c.l.b16 %v2054
        %v2126 = vunpack.c.l.b16 %v2055
        %v2127 = vunpack.c.l.b16 %v2056
        %v2128 = vunpack.c.l.b16 %v2057
        %v2129 = vunpack.c.l.b16 %v2058
        %v2130 = vunpack.c.l.b16 %v2059
        %v2131 = vunpack.c.l.b16 %v2060
        %v2132 = vunpack.c.l.b16 %v2061
        %v2133 = vunpack.c.l.b16 %v2062
        %v2134 = vunpack.c.l.b16 %v2063
        %v2135 = vpack.c.b16 %v2104, %v2103
        %v2136 = vpack.c.b16 %v2106, %v2105
        %v2137 = vpack.c.b16 %v2108, %v2107
        %v2138 = vpack.c.b16 %v2110, %v2109
        %v2139 = vpack.c.b16 %v2112, %v2111
        %v2140 = vpack.c.b16 %v2114, %v2113
        %v2141 = vpack.c.b16 %v2116, %v2115
        %v2142 = vpack.c.b16 %v2118, %v2117
        %v2143 = vpack.c.b16 %v2120, %v2119
        %v2144 = vpack.c.b16 %v2122, %v2121
        %v2145 = vpack.c.b16 %v2124, %v2123
        %v2146 = vpack.c.b16 %v2126, %v2125
        %v2147 = vpack.c.b16 %v2128, %v2127
        %v2148 = vpack.c.b16 %v2130, %v2129
        %v2149 = vpack.c.b16 %v2132, %v2131
        %v2150 = vpack.c.b16 %v2134, %v2133
        %2167 = vmatprep.subr.bf16.mxu0 0
        %2168 = vmatpush1.bf16.msra.mxu0 %v2142
        %2169 = vmatprep.subr.bf16.mxu0 0
        %2170 = vmatpush1.bf16.msra.mxu0 %v2141
        %2171 = vmatprep.subr.bf16.mxu0 0
        %2172 = vmatpush1.bf16.msra.mxu0 %v2140
        %2173 = vmatprep.subr.bf16.mxu0 0
        %2174 = vmatpush1.bf16.msra.mxu0 %v2139
        %2175 = vmatprep.subr.bf16.mxu0 0
        %2176 = vmatpush1.bf16.msra.mxu0 %v2138
        %2177 = vmatprep.subr.bf16.mxu0 0
        %2178 = vmatpush1.bf16.msra.mxu0 %v2137
        %2179 = vmatprep.subr.bf16.mxu0 0
        %2180 = vmatpush1.bf16.msra.mxu0 %v2136
        %2181 = vmatprep.subr.bf16.mxu0 0
        %2182 = vmatpush1.bf16.msra.mxu0 %v2135
        %2183 = vmatprep.subr.bf16.mxu0 0
        %2184 = vmatpush2.bf16.msra.mxu0 %v2150
        %2185 = vmatprep.subr.bf16.mxu0 0
        %2186 = vmatpush2.bf16.msra.mxu0 %v2149
        %2187 = vmatprep.subr.bf16.mxu0 0
        %2188 = vmatpush2.bf16.msra.mxu0 %v2148
        %2189 = vmatprep.subr.bf16.mxu0 0
        %2190 = vmatpush2.bf16.msra.mxu0 %v2147
        %2191 = vmatprep.subr.bf16.mxu0 0
        %2192 = vmatpush2.bf16.msra.mxu0 %v2146
        %2193 = vmatprep.subr.bf16.mxu0 0
        %2194 = vmatpush2.bf16.msra.mxu0 %v2145
        %2195 = vmatprep.subr.bf16.mxu0 0
        %2196 = vmatpush2.bf16.msra.mxu0 %v2144
        %2197 = vmatprep.subr.bf16.mxu0 0
        %2198 = vmatpush2.bf16.msra.mxu0 %v2143
        %2199 = vmatprep.mubr.bf16.mxu0 %v2031
        %2200 = vmatmul.mubr.bf16.gmra.mxu0 %v2030
        %v2201 = vpop.f32.mrf.mxu0
        %v2202 = vadd.f32 %v2069, %v2201
        %v2203 = vpop.f32.mrf.mxu0
        %v2204 = vpop.f32.mrf.mxu0
        %v2205 = vadd.f32 %v2069, %v2204
        %v2206 = vpop.f32.mrf.mxu0
        %2207 = vdwg.mxu0
        %v2208 = vadd.f32 %v1698, %v2202
        %v2209 = vadd.f32 %v1699, %v2205
        %2210 = vadd.xlane.f32.xlu0 %v2208
        %v2211 = vpop.xlane.xlu0 %2210
        %2212 = vadd.xlane.f32.xlu0 %v2209
        %v2213 = vpop.xlane.xlu0 %2212
        %v2214 = vmul.f32 %v2211, 0.01
        %v2215 = vmul.f32 %v2213, 0.01
        %v2216 = vsub.f32 %v2208, %v2214
        %v2217 = vsub.f32 %v2209, %v2215
        %v2218 = vmul.f32 %v1706, %v2216
        %v2219 = vmul.f32 %v1706, %v2217
        %v2220 = vmul.f32 %v2218, %v2216
        %v2221 = vmul.f32 %v2219, %v2217
        %2222 = vadd.xlane.f32.xlu0 %v2220
        %v2223 = vpop.xlane.xlu0 %2222
        %2224 = vadd.xlane.f32.xlu0 %v2221
        %v2225 = vpop.xlane.xlu0 %2224
        %v2226 = vmul.f32 %v2223, 0.01
        %v2227 = vmul.f32 %v2225, 0.01
        %v2228 = vadd.f32 %v2226, 1e-05
        %v2229 = vadd.f32 %v2227, 1e-05
        %v2230 = vrsqrt.pop %v2228
        %v2231 = vrsqrt.pop %v2229
        %v2232 = vmul.f32 %v2216, %v2230
        %v2233 = vmul.f32 %v2217, %v2231
        %s2234 = scalar_lea.vmem %s9, 1
        %v2235 = vld [vmem:[%s2234] sm:$0x1]
        %v2237 = vlaneseq
        %v2238 = vshrl.u32 %v2237, 7
        %v2239 = vsub.s32 0, %v2238
        %v2240 = vrot.slane %v2235, %v2239
        %v2242 = vmul.f32 %v2232, %v2240
        %v2243 = vmul.f32 %v2233, %v2240
        %s2244 = scalar_lea.vmem %s10, 1
        %v2245 = vld [vmem:[%s2244] sm:$0x1]
        %v2247 = vlaneseq
        %v2248 = vshrl.u32 %v2247, 7
        %v2249 = vsub.s32 0, %v2248
        %v2250 = vrot.slane %v2245, %v2249
        %v2252 = vadd.f32 %v2242, %v2250
        %v2253 = vadd.f32 %v2243, %v2250
        %v2254 = vmax.f32 %v2252, 0.0
        %v2255 = vmax.f32 %v2253, 0.0
        %v2256 = vadd.f32 %v2254, 1e-07
        %v2257 = vadd.f32 %v2255, 1e-07
        %v2258 = vmul.f32 %v2256, %v1714
        %v2259 = vmul.f32 %v2257, %v1715
        %v2260 = vmax.f32 %v2258, %v2259
        %v2261 = vrot.slane %v2260, 4
        %v2262 = vmax.f32 %v2260, %v2261
        %v2263 = vrot.slane %v2262, 2
        %v2264 = vmax.f32 %v2262, %v2263
        %v2265 = vrot.slane %v2264, 1
        %v2266 = vmax.f32 %v2264, %v2265
        %v2267 = vsub.f32 %v2256, %v2266
        %v2268 = vsub.f32 %v2257, %v2266
        %v2269 = vmul.f32 %v2267, 1.442695
        %v2270 = vpow.pop %v2269
        %v2271 = vmul.f32 %v2268, 1.442695
        %v2272 = vpow.pop %v2271
        %v2273 = vmul.f32 %v2270, %v2256
        %v2274 = vmul.f32 %v2272, %v2257
        %v2275 = vpack.c.bf16 %v2274, %v2273
        %v2277 = vunpack.c.l.b16 %v2275
        %v2278 = vunpack.c.h.b16 %v2275
        %v2279 = vpack.c.b16 %v2277, %v2277
        %v2280 = vpack.c.b16 %v2278, %v2278
        %2283 = vst [vmem:[#allocation2] sm:$0xf] %v2279
        %2284 = vst [vmem:[#allocation2 + $0x8] sm:$0xf] %v2280
        %v2285 = vpack.c.bf16 %v2272, %v2270
        %v2287 = vunpack.c.l.b16 %v2285
        %v2288 = vunpack.c.h.b16 %v2285
        %v2289 = vpack.c.b16 %v2287, %v2287
        %v2290 = vpack.c.b16 %v2288, %v2288
        %2293 = vst [vmem:[#allocation2 + $0x4] sm:$0xf] %v2289
        %2294 = vst [vmem:[#allocation2 + $0xc] sm:$0xf] %v2290
        %v2295 = vld [vmem:[#allocation2] sm:$0xff]
        %v2296 = vld [vmem:[#allocation2 + $0x8] sm:$0xff]
        %v2299 = vunpack.c.l.b16 %v2295
        %v2300 = vunpack.c.h.b16 %v2295
        %v2301 = vunpack.c.l.b16 %v2296
        %v2302 = vunpack.c.h.b16 %v2296
        %v2303 = vpack.c.b16 %v2301, %v2299
        %v2304 = vpack.c.b16 %v2302, %v2300
        %2307 = vmatprep.subr.bf16.mxu0 0
        %2308 = vmatpush1.bf16.msra.mxu0 0
        %2309 = vmatprep.subr.bf16.mxu0 0
        %2310 = vmatpush1.bf16.msra.mxu0 0
        %2311 = vmatprep.subr.bf16.mxu0 0
        %2312 = vmatpush1.bf16.msra.mxu0 0
        %2313 = vmatprep.subr.bf16.mxu0 0
        %2314 = vmatpush1.bf16.msra.mxu0 0
        %2315 = vmatprep.subr.bf16.mxu0 0
        %2316 = vmatpush1.bf16.msra.mxu0 0
        %2317 = vmatprep.subr.bf16.mxu0 0
        %2318 = vmatpush1.bf16.msra.mxu0 0
        %2319 = vmatprep.subr.bf16.mxu0 0
        %2320 = vmatpush1.bf16.msra.mxu0 0
        %2321 = vmatprep.subr.bf16.mxu0 %v2304
        %2322 = vmatpush1.bf16.msra.mxu0 %v2303
        %2323 = vmatprep.subr.bf16.mxu0 0
        %2324 = vmatpush2.bf16.msra.mxu0 0
        %2325 = vmatprep.subr.bf16.mxu0 0
        %2326 = vmatpush2.bf16.msra.mxu0 0
        %2327 = vmatprep.subr.bf16.mxu0 0
        %2328 = vmatpush2.bf16.msra.mxu0 0
        %2329 = vmatprep.subr.bf16.mxu0 0
        %2330 = vmatpush2.bf16.msra.mxu0 0
        %2331 = vmatprep.subr.bf16.mxu0 0
        %2332 = vmatpush2.bf16.msra.mxu0 0
        %2333 = vmatprep.subr.bf16.mxu0 0
        %2334 = vmatpush2.bf16.msra.mxu0 0
        %2335 = vmatprep.subr.bf16.mxu0 0
        %2336 = vmatpush2.bf16.msra.mxu0 0
        %2337 = vmatprep.subr.bf16.mxu0 0
        %2338 = vmatpush2.bf16.msra.mxu0 0
        %2339 = vmatprep.mubr.bf16.mxu0 0
        %2340 = vmatmul.mubr.bf16.gmra.mxu0 %v1817
        %v2341 = vpop.f32.mrf.mxu0
        %v2342 = vadd.f32 0.0, %v2341
        %v2343 = vpop.f32.mrf.mxu0
        %v2344 = vadd.f32 0.0, %v2343
        %v2345 = vpop.f32.mrf.mxu0
        %v2346 = vadd.f32 0.0, %v2345
        %v2347 = vpop.f32.mrf.mxu0
        %v2348 = vadd.f32 0.0, %v2347
        %2349 = vdwg.mxu0
        %vm2350 = vcmp.gt.f32.partialorder %v2344, 0.0
        %vm2351 = vcmp.gt.f32.partialorder %v2348, 0.0
        %v2352 = vsel %vm2350, %v2344, 1.0
        %v2353 = vsel %vm2351, %v2348, 1.0
        %v2354 = vrcp.pop %v2352
        %v2355 = vrcp.pop %v2353
        %v2356 = vmul.f32 %v2342, %v2354
        %v2357 = vmul.f32 %v2346, %v2355
        %v2358 = vsel %vm2350, %v2356, 0.0
        %v2359 = vsel %vm2351, %v2357, 0.0
        %v2360 = vadd.f32 %v2358, %v2254
        %v2361 = vadd.f32 %v2359, %v2255
        %v2362 = vpack.c.bf16 %v2361, %v2360
        %s2363 = scalar_lea.vmem [#allocation12], 128
        %v2364 = vld [vmem:[%s2363] sm:$0xff]
        %v2365 = vld [vmem:[%s2363 + $0x8] sm:$0xff]
        %v2366 = vld [vmem:[%s2363 + $0x10] sm:$0xff]
        %v2367 = vld [vmem:[%s2363 + $0x18] sm:$0xff]
        %v2368 = vld [vmem:[%s2363 + $0x20] sm:$0xff]
        %v2369 = vld [vmem:[%s2363 + $0x28] sm:$0xff]
        %v2370 = vld [vmem:[%s2363 + $0x30] sm:$0xff]
        %v2371 = vld [vmem:[%s2363 + $0x38] sm:$0xff]
        %v2372 = vld [vmem:[%s2363 + $0x40] sm:$0xff]
        %v2373 = vld [vmem:[%s2363 + $0x48] sm:$0xff]
        %v2374 = vld [vmem:[%s2363 + $0x50] sm:$0xff]
        %v2375 = vld [vmem:[%s2363 + $0x58] sm:$0xff]
        %v2376 = vld [vmem:[%s2363 + $0x60] sm:$0xff]
        %v2377 = vld [vmem:[%s2363 + $0x68] sm:$0xff]
        %v2378 = vld [vmem:[%s2363 + $0x70] sm:$0xff]
        %v2379 = vld [vmem:[%s2363 + $0x78] sm:$0xff]
        %s2380 = scalar_lea.vmem %s12, 2
        %v2381 = vld [vmem:[%s2380] sm:$0x3]
        %v2383 = vlaneseq
        %v2384 = vshrl.u32 %v2383, 7
        %v2385 = vsub.s32 0, %v2384
        %v2386 = vrot.slane %v2381, %v2385
        %v2387 = vlaneseq
        %v2388 = vshrl.u32 %v2387, 7
        %v2389 = vsub.s32 1, %v2388
        %v2390 = vrot.slane %v2381, %v2389
        %v2409 = vunpack.c.l.b16 %v2364
        %v2410 = vunpack.c.h.b16 %v2364
        %v2411 = vunpack.c.l.b16 %v2365
        %v2412 = vunpack.c.h.b16 %v2365
        %v2413 = vunpack.c.l.b16 %v2366
        %v2414 = vunpack.c.h.b16 %v2366
        %v2415 = vunpack.c.l.b16 %v2367
        %v2416 = vunpack.c.h.b16 %v2367
        %v2417 = vunpack.c.l.b16 %v2368
        %v2418 = vunpack.c.h.b16 %v2368
        %v2419 = vunpack.c.l.b16 %v2369
        %v2420 = vunpack.c.h.b16 %v2369
        %v2421 = vunpack.c.l.b16 %v2370
        %v2422 = vunpack.c.h.b16 %v2370
        %v2423 = vunpack.c.l.b16 %v2371
        %v2424 = vunpack.c.h.b16 %v2371
        %v2425 = vunpack.c.l.b16 %v2372
        %v2426 = vunpack.c.h.b16 %v2372
        %v2427 = vunpack.c.l.b16 %v2373
        %v2428 = vunpack.c.h.b16 %v2373
        %v2429 = vunpack.c.l.b16 %v2374
        %v2430 = vunpack.c.h.b16 %v2374
        %v2431 = vunpack.c.l.b16 %v2375
        %v2432 = vunpack.c.h.b16 %v2375
        %v2433 = vunpack.c.l.b16 %v2376
        %v2434 = vunpack.c.h.b16 %v2376
        %v2435 = vunpack.c.l.b16 %v2377
        %v2436 = vunpack.c.h.b16 %v2377
        %v2437 = vunpack.c.l.b16 %v2378
        %v2438 = vunpack.c.h.b16 %v2378
        %v2439 = vunpack.c.l.b16 %v2379
        %v2440 = vunpack.c.h.b16 %v2379
        %v2441 = vpack.c.b16 %v2411, %v2409
        %v2442 = vpack.c.b16 %v2412, %v2410
        %v2443 = vpack.c.b16 %v2415, %v2413
        %v2444 = vpack.c.b16 %v2416, %v2414
        %v2445 = vpack.c.b16 %v2419, %v2417
        %v2446 = vpack.c.b16 %v2420, %v2418
        %v2447 = vpack.c.b16 %v2423, %v2421
        %v2448 = vpack.c.b16 %v2424, %v2422
        %v2449 = vpack.c.b16 %v2427, %v2425
        %v2450 = vpack.c.b16 %v2428, %v2426
        %v2451 = vpack.c.b16 %v2431, %v2429
        %v2452 = vpack.c.b16 %v2432, %v2430
        %v2453 = vpack.c.b16 %v2435, %v2433
        %v2454 = vpack.c.b16 %v2436, %v2434
        %v2455 = vpack.c.b16 %v2439, %v2437
        %v2456 = vpack.c.b16 %v2440, %v2438
        %2473 = vmatprep.subr.bf16.mxu0 %v2456
        %2474 = vmatpush1.bf16.msra.mxu0 %v2455
        %2475 = vmatprep.subr.bf16.mxu0 %v2454
        %2476 = vmatpush1.bf16.msra.mxu0 %v2453
        %2477 = vmatprep.subr.bf16.mxu0 %v2452
        %2478 = vmatpush1.bf16.msra.mxu0 %v2451
        %2479 = vmatprep.subr.bf16.mxu0 %v2450
        %2480 = vmatpush1.bf16.msra.mxu0 %v2449
        %2481 = vmatprep.subr.bf16.mxu0 %v2448
        %2482 = vmatpush1.bf16.msra.mxu0 %v2447
        %2483 = vmatprep.subr.bf16.mxu0 %v2446
        %2484 = vmatpush1.bf16.msra.mxu0 %v2445
        %2485 = vmatprep.subr.bf16.mxu0 %v2444
        %2486 = vmatpush1.bf16.msra.mxu0 %v2443
        %2487 = vmatprep.subr.bf16.mxu0 %v2442
        %2488 = vmatpush1.bf16.msra.mxu0 %v2441
        %2489 = vmatprep.subr.bf16.mxu0 0
        %2490 = vmatpush2.bf16.msra.mxu0 0
        %2491 = vmatprep.subr.bf16.mxu0 0
        %2492 = vmatpush2.bf16.msra.mxu0 0
        %2493 = vmatprep.subr.bf16.mxu0 0
        %2494 = vmatpush2.bf16.msra.mxu0 0
        %2495 = vmatprep.subr.bf16.mxu0 0
        %2496 = vmatpush2.bf16.msra.mxu0 0
        %2497 = vmatprep.subr.bf16.mxu0 0
        %2498 = vmatpush2.bf16.msra.mxu0 0
        %2499 = vmatprep.subr.bf16.mxu0 0
        %2500 = vmatpush2.bf16.msra.mxu0 0
        %2501 = vmatprep.subr.bf16.mxu0 0
        %2502 = vmatpush2.bf16.msra.mxu0 0
        %2503 = vmatprep.subr.bf16.mxu0 0
        %2504 = vmatpush2.bf16.msra.mxu0 0
        %2505 = vmatprep.mubr.bf16.mxu0 0
        %2506 = vmatmul.mubr.bf16.gmra.mxu0 %v2362
        %v2507 = vpop.f32.mrf.mxu0
        %v2508 = vadd.f32 %v2386, %v2507
        %v2509 = vpop.f32.mrf.mxu0
        %v2510 = vadd.f32 %v2390, %v2509
        %v2511 = vpop.f32.mrf.mxu0
        %v2512 = vadd.f32 %v2386, %v2511
        %v2513 = vpop.f32.mrf.mxu0
        %v2514 = vadd.f32 %v2390, %v2513
        %2515 = vdwg.mxu0
        %v2516 = vmax.f32 %v2508, 0.0
        %v2517 = vmax.f32 %v2510, 0.0
        %v2518 = vmax.f32 %v2512, 0.0
        %v2519 = vmax.f32 %v2514, 0.0
        %v2520 = vpack.c.bf16 %v2518, %v2516
        %v2521 = vpack.c.bf16 %v2519, %v2517
        %s2522 = scalar_lea.vmem [#allocation14], 128
        %v2523 = vld [vmem:[%s2522] sm:$0xf]
        %v2524 = vld [vmem:[%s2522 + $0x4] sm:$0xf]
        %v2525 = vld [vmem:[%s2522 + $0x8] sm:$0xf]
        %v2526 = vld [vmem:[%s2522 + $0xc] sm:$0xf]
        %v2527 = vld [vmem:[%s2522 + $0x10] sm:$0xf]
        %v2528 = vld [vmem:[%s2522 + $0x14] sm:$0xf]
        %v2529 = vld [vmem:[%s2522 + $0x18] sm:$0xf]
        %v2530 = vld [vmem:[%s2522 + $0x1c] sm:$0xf]
        %v2531 = vld [vmem:[%s2522 + $0x20] sm:$0xf]
        %v2532 = vld [vmem:[%s2522 + $0x24] sm:$0xf]
        %v2533 = vld [vmem:[%s2522 + $0x28] sm:$0xf]
        %v2534 = vld [vmem:[%s2522 + $0x2c] sm:$0xf]
        %v2535 = vld [vmem:[%s2522 + $0x30] sm:$0xf]
        %v2536 = vld [vmem:[%s2522 + $0x34] sm:$0xf]
        %v2537 = vld [vmem:[%s2522 + $0x38] sm:$0xf]
        %v2538 = vld [vmem:[%s2522 + $0x3c] sm:$0xf]
        %v2539 = vld [vmem:[%s2522 + $0x40] sm:$0xf]
        %v2540 = vld [vmem:[%s2522 + $0x44] sm:$0xf]
        %v2541 = vld [vmem:[%s2522 + $0x48] sm:$0xf]
        %v2542 = vld [vmem:[%s2522 + $0x4c] sm:$0xf]
        %v2543 = vld [vmem:[%s2522 + $0x50] sm:$0xf]
        %v2544 = vld [vmem:[%s2522 + $0x54] sm:$0xf]
        %v2545 = vld [vmem:[%s2522 + $0x58] sm:$0xf]
        %v2546 = vld [vmem:[%s2522 + $0x5c] sm:$0xf]
        %v2547 = vld [vmem:[%s2522 + $0x60] sm:$0xf]
        %v2548 = vld [vmem:[%s2522 + $0x64] sm:$0xf]
        %v2549 = vld [vmem:[%s2522 + $0x68] sm:$0xf]
        %v2550 = vld [vmem:[%s2522 + $0x6c] sm:$0xf]
        %v2551 = vld [vmem:[%s2522 + $0x70] sm:$0xf]
        %v2552 = vld [vmem:[%s2522 + $0x74] sm:$0xf]
        %v2553 = vld [vmem:[%s2522 + $0x78] sm:$0xf]
        %v2554 = vld [vmem:[%s2522 + $0x7c] sm:$0xf]
        %s2555 = scalar_lea.vmem %s14, 1
        %v2556 = vld [vmem:[%s2555] sm:$0x1]
        %v2558 = vlaneseq
        %v2559 = vshrl.u32 %v2558, 7
        %v2560 = vsub.s32 0, %v2559
        %v2561 = vrot.slane %v2556, %v2560
        %v2595 = vunpack.c.l.b16 %v2523
        %v2596 = vunpack.c.l.b16 %v2524
        %v2597 = vunpack.c.l.b16 %v2525
        %v2598 = vunpack.c.l.b16 %v2526
        %v2599 = vunpack.c.l.b16 %v2527
        %v2600 = vunpack.c.l.b16 %v2528
        %v2601 = vunpack.c.l.b16 %v2529
        %v2602 = vunpack.c.l.b16 %v2530
        %v2603 = vunpack.c.l.b16 %v2531
        %v2604 = vunpack.c.l.b16 %v2532
        %v2605 = vunpack.c.l.b16 %v2533
        %v2606 = vunpack.c.l.b16 %v2534
        %v2607 = vunpack.c.l.b16 %v2535
        %v2608 = vunpack.c.l.b16 %v2536
        %v2609 = vunpack.c.l.b16 %v2537
        %v2610 = vunpack.c.l.b16 %v2538
        %v2611 = vunpack.c.l.b16 %v2539
        %v2612 = vunpack.c.l.b16 %v2540
        %v2613 = vunpack.c.l.b16 %v2541
        %v2614 = vunpack.c.l.b16 %v2542
        %v2615 = vunpack.c.l.b16 %v2543
        %v2616 = vunpack.c.l.b16 %v2544
        %v2617 = vunpack.c.l.b16 %v2545
        %v2618 = vunpack.c.l.b16 %v2546
        %v2619 = vunpack.c.l.b16 %v2547
        %v2620 = vunpack.c.l.b16 %v2548
        %v2621 = vunpack.c.l.b16 %v2549
        %v2622 = vunpack.c.l.b16 %v2550
        %v2623 = vunpack.c.l.b16 %v2551
        %v2624 = vunpack.c.l.b16 %v2552
        %v2625 = vunpack.c.l.b16 %v2553
        %v2626 = vunpack.c.l.b16 %v2554
        %v2627 = vpack.c.b16 %v2596, %v2595
        %v2628 = vpack.c.b16 %v2598, %v2597
        %v2629 = vpack.c.b16 %v2600, %v2599
        %v2630 = vpack.c.b16 %v2602, %v2601
        %v2631 = vpack.c.b16 %v2604, %v2603
        %v2632 = vpack.c.b16 %v2606, %v2605
        %v2633 = vpack.c.b16 %v2608, %v2607
        %v2634 = vpack.c.b16 %v2610, %v2609
        %v2635 = vpack.c.b16 %v2612, %v2611
        %v2636 = vpack.c.b16 %v2614, %v2613
        %v2637 = vpack.c.b16 %v2616, %v2615
        %v2638 = vpack.c.b16 %v2618, %v2617
        %v2639 = vpack.c.b16 %v2620, %v2619
        %v2640 = vpack.c.b16 %v2622, %v2621
        %v2641 = vpack.c.b16 %v2624, %v2623
        %v2642 = vpack.c.b16 %v2626, %v2625
        %2659 = vmatprep.subr.bf16.mxu0 0
        %2660 = vmatpush1.bf16.msra.mxu0 %v2634
        %2661 = vmatprep.subr.bf16.mxu0 0
        %2662 = vmatpush1.bf16.msra.mxu0 %v2633
        %2663 = vmatprep.subr.bf16.mxu0 0
        %2664 = vmatpush1.bf16.msra.mxu0 %v2632
        %2665 = vmatprep.subr.bf16.mxu0 0
        %2666 = vmatpush1.bf16.msra.mxu0 %v2631
        %2667 = vmatprep.subr.bf16.mxu0 0
        %2668 = vmatpush1.bf16.msra.mxu0 %v2630
        %2669 = vmatprep.subr.bf16.mxu0 0
        %2670 = vmatpush1.bf16.msra.mxu0 %v2629
        %2671 = vmatprep.subr.bf16.mxu0 0
        %2672 = vmatpush1.bf16.msra.mxu0 %v2628
        %2673 = vmatprep.subr.bf16.mxu0 0
        %2674 = vmatpush1.bf16.msra.mxu0 %v2627
        %2675 = vmatprep.subr.bf16.mxu0 0
        %2676 = vmatpush2.bf16.msra.mxu0 %v2642
        %2677 = vmatprep.subr.bf16.mxu0 0
        %2678 = vmatpush2.bf16.msra.mxu0 %v2641
        %2679 = vmatprep.subr.bf16.mxu0 0
        %2680 = vmatpush2.bf16.msra.mxu0 %v2640
        %2681 = vmatprep.subr.bf16.mxu0 0
        %2682 = vmatpush2.bf16.msra.mxu0 %v2639
        %2683 = vmatprep.subr.bf16.mxu0 0
        %2684 = vmatpush2.bf16.msra.mxu0 %v2638
        %2685 = vmatprep.subr.bf16.mxu0 0
        %2686 = vmatpush2.bf16.msra.mxu0 %v2637
        %2687 = vmatprep.subr.bf16.mxu0 0
        %2688 = vmatpush2.bf16.msra.mxu0 %v2636
        %2689 = vmatprep.subr.bf16.mxu0 0
        %2690 = vmatpush2.bf16.msra.mxu0 %v2635
        %2691 = vmatprep.mubr.bf16.mxu0 %v2521
        %2692 = vmatmul.mubr.bf16.gmra.mxu0 %v2520
        %v2693 = vpop.f32.mrf.mxu0
        %v2694 = vadd.f32 %v2561, %v2693
        %v2695 = vpop.f32.mrf.mxu0
        %v2696 = vpop.f32.mrf.mxu0
        %v2697 = vadd.f32 %v2561, %v2696
        %v2698 = vpop.f32.mrf.mxu0
        %2699 = vdwg.mxu0
        %v2700 = vadd.f32 %v2208, %v2694
        %v2701 = vadd.f32 %v2209, %v2697
        %2702 = vadd.xlane.f32.xlu0 %v2700
        %v2703 = vpop.xlane.xlu0 %2702
        %2704 = vadd.xlane.f32.xlu0 %v2701
        %v2705 = vpop.xlane.xlu0 %2704
        %v2706 = vmul.f32 %v2703, 0.01
        %v2707 = vmul.f32 %v2705, 0.01
        %v2708 = vsub.f32 %v2700, %v2706
        %v2709 = vsub.f32 %v2701, %v2707
        %v2710 = vmul.f32 %v1706, %v2708
        %v2711 = vmul.f32 %v1706, %v2709
        %v2712 = vmul.f32 %v2710, %v2708
        %v2713 = vmul.f32 %v2711, %v2709
        %2714 = vadd.xlane.f32.xlu0 %v2712
        %v2715 = vpop.xlane.xlu0 %2714
        %2716 = vadd.xlane.f32.xlu0 %v2713
        %v2717 = vpop.xlane.xlu0 %2716
        %v2718 = vmul.f32 %v2715, 0.01
        %v2719 = vmul.f32 %v2717, 0.01
        %v2720 = vadd.f32 %v2718, 1e-05
        %v2721 = vadd.f32 %v2719, 1e-05
        %v2722 = vrsqrt.pop %v2720
        %v2723 = vrsqrt.pop %v2721
        %v2724 = vmul.f32 %v2708, %v2722
        %v2725 = vmul.f32 %v2709, %v2723
        %s2726 = scalar_lea.vmem %s9, 2
        %v2727 = vld [vmem:[%s2726] sm:$0x1]
        %v2729 = vlaneseq
        %v2730 = vshrl.u32 %v2729, 7
        %v2731 = vsub.s32 0, %v2730
        %v2732 = vrot.slane %v2727, %v2731
        %v2734 = vmul.f32 %v2724, %v2732
        %v2735 = vmul.f32 %v2725, %v2732
        %s2736 = scalar_lea.vmem %s10, 2
        %v2737 = vld [vmem:[%s2736] sm:$0x1]
        %v2739 = vlaneseq
        %v2740 = vshrl.u32 %v2739, 7
        %v2741 = vsub.s32 0, %v2740
        %v2742 = vrot.slane %v2737, %v2741
        %v2744 = vadd.f32 %v2734, %v2742
        %v2745 = vadd.f32 %v2735, %v2742
        %v2746 = vmax.f32 %v2744, 0.0
        %v2747 = vmax.f32 %v2745, 0.0
        %v2748 = vadd.f32 %v2746, 1e-07
        %v2749 = vadd.f32 %v2747, 1e-07
        %v2750 = vmul.f32 %v2748, %v1714
        %v2751 = vmul.f32 %v2749, %v1715
        %v2752 = vmax.f32 %v2750, %v2751
        %v2753 = vrot.slane %v2752, 4
        %v2754 = vmax.f32 %v2752, %v2753
        %v2755 = vrot.slane %v2754, 2
        %v2756 = vmax.f32 %v2754, %v2755
        %v2757 = vrot.slane %v2756, 1
        %v2758 = vmax.f32 %v2756, %v2757
        %v2759 = vsub.f32 %v2748, %v2758
        %v2760 = vsub.f32 %v2749, %v2758
        %v2761 = vmul.f32 %v2759, 1.442695
        %v2762 = vpow.pop %v2761
        %v2763 = vmul.f32 %v2760, 1.442695
        %v2764 = vpow.pop %v2763
        %v2765 = vmul.f32 %v2762, %v2748
        %v2766 = vmul.f32 %v2764, %v2749
        %v2767 = vpack.c.bf16 %v2766, %v2765
        %v2769 = vunpack.c.l.b16 %v2767
        %v2770 = vunpack.c.h.b16 %v2767
        %v2771 = vpack.c.b16 %v2769, %v2769
        %v2772 = vpack.c.b16 %v2770, %v2770
        %2775 = vst [vmem:[#allocation2] sm:$0xf] %v2771
        %2776 = vst [vmem:[#allocation2 + $0x8] sm:$0xf] %v2772
        %v2777 = vpack.c.bf16 %v2764, %v2762
        %v2779 = vunpack.c.l.b16 %v2777
        %v2780 = vunpack.c.h.b16 %v2777
        %v2781 = vpack.c.b16 %v2779, %v2779
        %v2782 = vpack.c.b16 %v2780, %v2780
        %2785 = vst [vmem:[#allocation2 + $0x4] sm:$0xf] %v2781
        %2786 = vst [vmem:[#allocation2 + $0xc] sm:$0xf] %v2782
        %v2787 = vld [vmem:[#allocation2] sm:$0xff]
        %v2788 = vld [vmem:[#allocation2 + $0x8] sm:$0xff]
        %v2791 = vunpack.c.l.b16 %v2787
        %v2792 = vunpack.c.h.b16 %v2787
        %v2793 = vunpack.c.l.b16 %v2788
        %v2794 = vunpack.c.h.b16 %v2788
        %v2795 = vpack.c.b16 %v2793, %v2791
        %v2796 = vpack.c.b16 %v2794, %v2792
        %2799 = vmatprep.subr.bf16.mxu0 0
        %2800 = vmatpush1.bf16.msra.mxu0 0
        %2801 = vmatprep.subr.bf16.mxu0 0
        %2802 = vmatpush1.bf16.msra.mxu0 0
        %2803 = vmatprep.subr.bf16.mxu0 0
        %2804 = vmatpush1.bf16.msra.mxu0 0
        %2805 = vmatprep.subr.bf16.mxu0 0
        %2806 = vmatpush1.bf16.msra.mxu0 0
        %2807 = vmatprep.subr.bf16.mxu0 0
        %2808 = vmatpush1.bf16.msra.mxu0 0
        %2809 = vmatprep.subr.bf16.mxu0 0
        %2810 = vmatpush1.bf16.msra.mxu0 0
        %2811 = vmatprep.subr.bf16.mxu0 0
        %2812 = vmatpush1.bf16.msra.mxu0 0
        %2813 = vmatprep.subr.bf16.mxu0 %v2796
        %2814 = vmatpush1.bf16.msra.mxu0 %v2795
        %2815 = vmatprep.subr.bf16.mxu0 0
        %2816 = vmatpush2.bf16.msra.mxu0 0
        %2817 = vmatprep.subr.bf16.mxu0 0
        %2818 = vmatpush2.bf16.msra.mxu0 0
        %2819 = vmatprep.subr.bf16.mxu0 0
        %2820 = vmatpush2.bf16.msra.mxu0 0
        %2821 = vmatprep.subr.bf16.mxu0 0
        %2822 = vmatpush2.bf16.msra.mxu0 0
        %2823 = vmatprep.subr.bf16.mxu0 0
        %2824 = vmatpush2.bf16.msra.mxu0 0
        %2825 = vmatprep.subr.bf16.mxu0 0
        %2826 = vmatpush2.bf16.msra.mxu0 0
        %2827 = vmatprep.subr.bf16.mxu0 0
        %2828 = vmatpush2.bf16.msra.mxu0 0
        %2829 = vmatprep.subr.bf16.mxu0 0
        %2830 = vmatpush2.bf16.msra.mxu0 0
        %2831 = vmatprep.mubr.bf16.mxu0 0
        %2832 = vmatmul.mubr.bf16.gmra.mxu0 %v1817
        %v2833 = vpop.f32.mrf.mxu0
        %v2834 = vadd.f32 0.0, %v2833
        %v2835 = vpop.f32.mrf.mxu0
        %v2836 = vadd.f32 0.0, %v2835
        %v2837 = vpop.f32.mrf.mxu0
        %v2838 = vadd.f32 0.0, %v2837
        %v2839 = vpop.f32.mrf.mxu0
        %v2840 = vadd.f32 0.0, %v2839
        %2841 = vdwg.mxu0
        %vm2842 = vcmp.gt.f32.partialorder %v2836, 0.0
        %vm2843 = vcmp.gt.f32.partialorder %v2840, 0.0
        %v2844 = vsel %vm2842, %v2836, 1.0
        %v2845 = vsel %vm2843, %v2840, 1.0
        %v2846 = vrcp.pop %v2844
        %v2847 = vrcp.pop %v2845
        %v2848 = vmul.f32 %v2834, %v2846
        %v2849 = vmul.f32 %v2838, %v2847
        %v2850 = vsel %vm2842, %v2848, 0.0
        %v2851 = vsel %vm2843, %v2849, 0.0
        %v2852 = vadd.f32 %v2850, %v2746
        %v2853 = vadd.f32 %v2851, %v2747
        %v2854 = vpack.c.bf16 %v2853, %v2852
        %s2855 = scalar_lea.vmem [#allocation12], 256
        %v2856 = vld [vmem:[%s2855] sm:$0xff]
        %v2857 = vld [vmem:[%s2855 + $0x8] sm:$0xff]
        %v2858 = vld [vmem:[%s2855 + $0x10] sm:$0xff]
        %v2859 = vld [vmem:[%s2855 + $0x18] sm:$0xff]
        %v2860 = vld [vmem:[%s2855 + $0x20] sm:$0xff]
        %v2861 = vld [vmem:[%s2855 + $0x28] sm:$0xff]
        %v2862 = vld [vmem:[%s2855 + $0x30] sm:$0xff]
        %v2863 = vld [vmem:[%s2855 + $0x38] sm:$0xff]
        %v2864 = vld [vmem:[%s2855 + $0x40] sm:$0xff]
        %v2865 = vld [vmem:[%s2855 + $0x48] sm:$0xff]
        %v2866 = vld [vmem:[%s2855 + $0x50] sm:$0xff]
        %v2867 = vld [vmem:[%s2855 + $0x58] sm:$0xff]
        %v2868 = vld [vmem:[%s2855 + $0x60] sm:$0xff]
        %v2869 = vld [vmem:[%s2855 + $0x68] sm:$0xff]
        %v2870 = vld [vmem:[%s2855 + $0x70] sm:$0xff]
        %v2871 = vld [vmem:[%s2855 + $0x78] sm:$0xff]
        %s2872 = scalar_lea.vmem %s12, 4
        %v2873 = vld [vmem:[%s2872] sm:$0x3]
        %v2875 = vlaneseq
        %v2876 = vshrl.u32 %v2875, 7
        %v2877 = vsub.s32 0, %v2876
        %v2878 = vrot.slane %v2873, %v2877
        %v2879 = vlaneseq
        %v2880 = vshrl.u32 %v2879, 7
        %v2881 = vsub.s32 1, %v2880
        %v2882 = vrot.slane %v2873, %v2881
        %v2901 = vunpack.c.l.b16 %v2856
        %v2902 = vunpack.c.h.b16 %v2856
        %v2903 = vunpack.c.l.b16 %v2857
        %v2904 = vunpack.c.h.b16 %v2857
        %v2905 = vunpack.c.l.b16 %v2858
        %v2906 = vunpack.c.h.b16 %v2858
        %v2907 = vunpack.c.l.b16 %v2859
        %v2908 = vunpack.c.h.b16 %v2859
        %v2909 = vunpack.c.l.b16 %v2860
        %v2910 = vunpack.c.h.b16 %v2860
        %v2911 = vunpack.c.l.b16 %v2861
        %v2912 = vunpack.c.h.b16 %v2861
        %v2913 = vunpack.c.l.b16 %v2862
        %v2914 = vunpack.c.h.b16 %v2862
        %v2915 = vunpack.c.l.b16 %v2863
        %v2916 = vunpack.c.h.b16 %v2863
        %v2917 = vunpack.c.l.b16 %v2864
        %v2918 = vunpack.c.h.b16 %v2864
        %v2919 = vunpack.c.l.b16 %v2865
        %v2920 = vunpack.c.h.b16 %v2865
        %v2921 = vunpack.c.l.b16 %v2866
        %v2922 = vunpack.c.h.b16 %v2866
        %v2923 = vunpack.c.l.b16 %v2867
        %v2924 = vunpack.c.h.b16 %v2867
        %v2925 = vunpack.c.l.b16 %v2868
        %v2926 = vunpack.c.h.b16 %v2868
        %v2927 = vunpack.c.l.b16 %v2869
        %v2928 = vunpack.c.h.b16 %v2869
        %v2929 = vunpack.c.l.b16 %v2870
        %v2930 = vunpack.c.h.b16 %v2870
        %v2931 = vunpack.c.l.b16 %v2871
        %v2932 = vunpack.c.h.b16 %v2871
        %v2933 = vpack.c.b16 %v2903, %v2901
        %v2934 = vpack.c.b16 %v2904, %v2902
        %v2935 = vpack.c.b16 %v2907, %v2905
        %v2936 = vpack.c.b16 %v2908, %v2906
        %v2937 = vpack.c.b16 %v2911, %v2909
        %v2938 = vpack.c.b16 %v2912, %v2910
        %v2939 = vpack.c.b16 %v2915, %v2913
        %v2940 = vpack.c.b16 %v2916, %v2914
        %v2941 = vpack.c.b16 %v2919, %v2917
        %v2942 = vpack.c.b16 %v2920, %v2918
        %v2943 = vpack.c.b16 %v2923, %v2921
        %v2944 = vpack.c.b16 %v2924, %v2922
        %v2945 = vpack.c.b16 %v2927, %v2925
        %v2946 = vpack.c.b16 %v2928, %v2926
        %v2947 = vpack.c.b16 %v2931, %v2929
        %v2948 = vpack.c.b16 %v2932, %v2930
        %2965 = vmatprep.subr.bf16.mxu0 %v2948
        %2966 = vmatpush1.bf16.msra.mxu0 %v2947
        %2967 = vmatprep.subr.bf16.mxu0 %v2946
        %2968 = vmatpush1.bf16.msra.mxu0 %v2945
        %2969 = vmatprep.subr.bf16.mxu0 %v2944
        %2970 = vmatpush1.bf16.msra.mxu0 %v2943
        %2971 = vmatprep.subr.bf16.mxu0 %v2942
        %2972 = vmatpush1.bf16.msra.mxu0 %v2941
        %2973 = vmatprep.subr.bf16.mxu0 %v2940
        %2974 = vmatpush1.bf16.msra.mxu0 %v2939
        %2975 = vmatprep.subr.bf16.mxu0 %v2938
        %2976 = vmatpush1.bf16.msra.mxu0 %v2937
        %2977 = vmatprep.subr.bf16.mxu0 %v2936
        %2978 = vmatpush1.bf16.msra.mxu0 %v2935
        %2979 = vmatprep.subr.bf16.mxu0 %v2934
        %2980 = vmatpush1.bf16.msra.mxu0 %v2933
        %2981 = vmatprep.subr.bf16.mxu0 0
        %2982 = vmatpush2.bf16.msra.mxu0 0
        %2983 = vmatprep.subr.bf16.mxu0 0
        %2984 = vmatpush2.bf16.msra.mxu0 0
        %2985 = vmatprep.subr.bf16.mxu0 0
        %2986 = vmatpush2.bf16.msra.mxu0 0
        %2987 = vmatprep.subr.bf16.mxu0 0
        %2988 = vmatpush2.bf16.msra.mxu0 0
        %2989 = vmatprep.subr.bf16.mxu0 0
        %2990 = vmatpush2.bf16.msra.mxu0 0
        %2991 = vmatprep.subr.bf16.mxu0 0
        %2992 = vmatpush2.bf16.msra.mxu0 0
        %2993 = vmatprep.subr.bf16.mxu0 0
        %2994 = vmatpush2.bf16.msra.mxu0 0
        %2995 = vmatprep.subr.bf16.mxu0 0
        %2996 = vmatpush2.bf16.msra.mxu0 0
        %2997 = vmatprep.mubr.bf16.mxu0 0
        %2998 = vmatmul.mubr.bf16.gmra.mxu0 %v2854
        %v2999 = vpop.f32.mrf.mxu0
        %v3000 = vadd.f32 %v2878, %v2999
        %v3001 = vpop.f32.mrf.mxu0
        %v3002 = vadd.f32 %v2882, %v3001
        %v3003 = vpop.f32.mrf.mxu0
        %v3004 = vadd.f32 %v2878, %v3003
        %v3005 = vpop.f32.mrf.mxu0
        %v3006 = vadd.f32 %v2882, %v3005
        %3007 = vdwg.mxu0
        %v3008 = vmax.f32 %v3000, 0.0
        %v3009 = vmax.f32 %v3002, 0.0
        %v3010 = vmax.f32 %v3004, 0.0
        %v3011 = vmax.f32 %v3006, 0.0
        %v3012 = vpack.c.bf16 %v3010, %v3008
        %v3013 = vpack.c.bf16 %v3011, %v3009
        %s3014 = scalar_lea.vmem [#allocation14], 256
        %v3015 = vld [vmem:[%s3014] sm:$0xf]
        %v3016 = vld [vmem:[%s3014 + $0x4] sm:$0xf]
        %v3017 = vld [vmem:[%s3014 + $0x8] sm:$0xf]
        %v3018 = vld [vmem:[%s3014 + $0xc] sm:$0xf]
        %v3019 = vld [vmem:[%s3014 + $0x10] sm:$0xf]
        %v3020 = vld [vmem:[%s3014 + $0x14] sm:$0xf]
        %v3021 = vld [vmem:[%s3014 + $0x18] sm:$0xf]
        %v3022 = vld [vmem:[%s3014 + $0x1c] sm:$0xf]
        %v3023 = vld [vmem:[%s3014 + $0x20] sm:$0xf]
        %v3024 = vld [vmem:[%s3014 + $0x24] sm:$0xf]
        %v3025 = vld [vmem:[%s3014 + $0x28] sm:$0xf]
        %v3026 = vld [vmem:[%s3014 + $0x2c] sm:$0xf]
        %v3027 = vld [vmem:[%s3014 + $0x30] sm:$0xf]
        %v3028 = vld [vmem:[%s3014 + $0x34] sm:$0xf]
        %v3029 = vld [vmem:[%s3014 + $0x38] sm:$0xf]
        %v3030 = vld [vmem:[%s3014 + $0x3c] sm:$0xf]
        %v3031 = vld [vmem:[%s3014 + $0x40] sm:$0xf]
        %v3032 = vld [vmem:[%s3014 + $0x44] sm:$0xf]
        %v3033 = vld [vmem:[%s3014 + $0x48] sm:$0xf]
        %v3034 = vld [vmem:[%s3014 + $0x4c] sm:$0xf]
        %v3035 = vld [vmem:[%s3014 + $0x50] sm:$0xf]
        %v3036 = vld [vmem:[%s3014 + $0x54] sm:$0xf]
        %v3037 = vld [vmem:[%s3014 + $0x58] sm:$0xf]
        %v3038 = vld [vmem:[%s3014 + $0x5c] sm:$0xf]
        %v3039 = vld [vmem:[%s3014 + $0x60] sm:$0xf]
        %v3040 = vld [vmem:[%s3014 + $0x64] sm:$0xf]
        %v3041 = vld [vmem:[%s3014 + $0x68] sm:$0xf]
        %v3042 = vld [vmem:[%s3014 + $0x6c] sm:$0xf]
        %v3043 = vld [vmem:[%s3014 + $0x70] sm:$0xf]
        %v3044 = vld [vmem:[%s3014 + $0x74] sm:$0xf]
        %v3045 = vld [vmem:[%s3014 + $0x78] sm:$0xf]
        %v3046 = vld [vmem:[%s3014 + $0x7c] sm:$0xf]
        %s3047 = scalar_lea.vmem %s14, 2
        %v3048 = vld [vmem:[%s3047] sm:$0x1]
        %v3050 = vlaneseq
        %v3051 = vshrl.u32 %v3050, 7
        %v3052 = vsub.s32 0, %v3051
        %v3053 = vrot.slane %v3048, %v3052
        %v3087 = vunpack.c.l.b16 %v3015
        %v3088 = vunpack.c.l.b16 %v3016
        %v3089 = vunpack.c.l.b16 %v3017
        %v3090 = vunpack.c.l.b16 %v3018
        %v3091 = vunpack.c.l.b16 %v3019
        %v3092 = vunpack.c.l.b16 %v3020
        %v3093 = vunpack.c.l.b16 %v3021
        %v3094 = vunpack.c.l.b16 %v3022
        %v3095 = vunpack.c.l.b16 %v3023
        %v3096 = vunpack.c.l.b16 %v3024
        %v3097 = vunpack.c.l.b16 %v3025
        %v3098 = vunpack.c.l.b16 %v3026
        %v3099 = vunpack.c.l.b16 %v3027
        %v3100 = vunpack.c.l.b16 %v3028
        %v3101 = vunpack.c.l.b16 %v3029
        %v3102 = vunpack.c.l.b16 %v3030
        %v3103 = vunpack.c.l.b16 %v3031
        %v3104 = vunpack.c.l.b16 %v3032
        %v3105 = vunpack.c.l.b16 %v3033
        %v3106 = vunpack.c.l.b16 %v3034
        %v3107 = vunpack.c.l.b16 %v3035
        %v3108 = vunpack.c.l.b16 %v3036
        %v3109 = vunpack.c.l.b16 %v3037
        %v3110 = vunpack.c.l.b16 %v3038
        %v3111 = vunpack.c.l.b16 %v3039
        %v3112 = vunpack.c.l.b16 %v3040
        %v3113 = vunpack.c.l.b16 %v3041
        %v3114 = vunpack.c.l.b16 %v3042
        %v3115 = vunpack.c.l.b16 %v3043
        %v3116 = vunpack.c.l.b16 %v3044
        %v3117 = vunpack.c.l.b16 %v3045
        %v3118 = vunpack.c.l.b16 %v3046
        %v3119 = vpack.c.b16 %v3088, %v3087
        %v3120 = vpack.c.b16 %v3090, %v3089
        %v3121 = vpack.c.b16 %v3092, %v3091
        %v3122 = vpack.c.b16 %v3094, %v3093
        %v3123 = vpack.c.b16 %v3096, %v3095
        %v3124 = vpack.c.b16 %v3098, %v3097
        %v3125 = vpack.c.b16 %v3100, %v3099
        %v3126 = vpack.c.b16 %v3102, %v3101
        %v3127 = vpack.c.b16 %v3104, %v3103
        %v3128 = vpack.c.b16 %v3106, %v3105
        %v3129 = vpack.c.b16 %v3108, %v3107
        %v3130 = vpack.c.b16 %v3110, %v3109
        %v3131 = vpack.c.b16 %v3112, %v3111
        %v3132 = vpack.c.b16 %v3114, %v3113
        %v3133 = vpack.c.b16 %v3116, %v3115
        %v3134 = vpack.c.b16 %v3118, %v3117
        %3151 = vmatprep.subr.bf16.mxu0 0
        %3152 = vmatpush1.bf16.msra.mxu0 %v3126
        %3153 = vmatprep.subr.bf16.mxu0 0
        %3154 = vmatpush1.bf16.msra.mxu0 %v3125
        %3155 = vmatprep.subr.bf16.mxu0 0
        %3156 = vmatpush1.bf16.msra.mxu0 %v3124
        %3157 = vmatprep.subr.bf16.mxu0 0
        %3158 = vmatpush1.bf16.msra.mxu0 %v3123
        %3159 = vmatprep.subr.bf16.mxu0 0
        %3160 = vmatpush1.bf16.msra.mxu0 %v3122
        %3161 = vmatprep.subr.bf16.mxu0 0
        %3162 = vmatpush1.bf16.msra.mxu0 %v3121
        %3163 = vmatprep.subr.bf16.mxu0 0
        %3164 = vmatpush1.bf16.msra.mxu0 %v3120
        %3165 = vmatprep.subr.bf16.mxu0 0
        %3166 = vmatpush1.bf16.msra.mxu0 %v3119
        %3167 = vmatprep.subr.bf16.mxu0 0
        %3168 = vmatpush2.bf16.msra.mxu0 %v3134
        %3169 = vmatprep.subr.bf16.mxu0 0
        %3170 = vmatpush2.bf16.msra.mxu0 %v3133
        %3171 = vmatprep.subr.bf16.mxu0 0
        %3172 = vmatpush2.bf16.msra.mxu0 %v3132
        %3173 = vmatprep.subr.bf16.mxu0 0
        %3174 = vmatpush2.bf16.msra.mxu0 %v3131
        %3175 = vmatprep.subr.bf16.mxu0 0
        %3176 = vmatpush2.bf16.msra.mxu0 %v3130
        %3177 = vmatprep.subr.bf16.mxu0 0
        %3178 = vmatpush2.bf16.msra.mxu0 %v3129
        %3179 = vmatprep.subr.bf16.mxu0 0
        %3180 = vmatpush2.bf16.msra.mxu0 %v3128
        %3181 = vmatprep.subr.bf16.mxu0 0
        %3182 = vmatpush2.bf16.msra.mxu0 %v3127
        %3183 = vmatprep.mubr.bf16.mxu0 %v3013
        %3184 = vmatmul.mubr.bf16.gmra.mxu0 %v3012
        %v3185 = vpop.f32.mrf.mxu0
        %v3186 = vadd.f32 %v3053, %v3185
        %v3187 = vpop.f32.mrf.mxu0
        %v3188 = vpop.f32.mrf.mxu0
        %v3189 = vadd.f32 %v3053, %v3188
        %v3190 = vpop.f32.mrf.mxu0
        %3191 = vdwg.mxu0
        %v3192 = vadd.f32 %v2700, %v3186
        %v3193 = vadd.f32 %v2701, %v3189
        %v3194 = vmul.f32 %v3192, %v1714
        %v3195 = vmul.f32 %v3193, %v1715
        %v3196 = vadd.f32 %v3194, %v3195
        %v3197 = vrot.slane %v3196, 4
        %v3198 = vadd.f32 %v3196, %v3197
        %v3199 = vrot.slane %v3198, 2
        %v3200 = vadd.f32 %v3198, %v3199
        %v3201 = vrot.slane %v3200, 1
        %v3202 = vadd.f32 %v3200, %v3201
        %v3203 = vmul.f32 %v3202, 0.0625
        %v3204 = vadd.f32 %v1669, %v3203
        %v3205 = vpack.c.bf16 %v3204, %v3204
        %v3206 = vld [vmem:[#allocation15] sm:$0xf]
        %v3207 = vld [vmem:[#allocation15 + $0x4] sm:$0xf]
        %v3208 = vld [vmem:[#allocation15 + $0x8] sm:$0xf]
        %v3209 = vld [vmem:[#allocation15 + $0xc] sm:$0xf]
        %v3210 = vld [vmem:[#allocation15 + $0x10] sm:$0xf]
        %v3211 = vld [vmem:[#allocation15 + $0x14] sm:$0xf]
        %v3212 = vld [vmem:[#allocation15 + $0x18] sm:$0xf]
        %v3213 = vld [vmem:[#allocation15 + $0x1c] sm:$0xf]
        %v3214 = vld [vmem:[#allocation15 + $0x20] sm:$0xf]
        %v3215 = vld [vmem:[#allocation15 + $0x24] sm:$0xf]
        %v3216 = vld [vmem:[#allocation15 + $0x28] sm:$0xf]
        %v3217 = vld [vmem:[#allocation15 + $0x2c] sm:$0xf]
        %v3218 = vld [vmem:[#allocation15 + $0x30] sm:$0xf]
        %v3219 = vld [vmem:[#allocation15 + $0x34] sm:$0xf]
        %v3220 = vld [vmem:[#allocation15 + $0x38] sm:$0xf]
        %v3221 = vld [vmem:[#allocation15 + $0x3c] sm:$0xf]
        %v3222 = vld [vmem:[%s16] sm:$0x1]
        %v3224 = vlaneseq
        %v3225 = vshrl.u32 %v3224, 7
        %v3226 = vsub.s32 0, %v3225
        %v3227 = vrot.slane %v3222, %v3226
        %v3245 = vunpack.c.l.b16 %v3206
        %v3246 = vunpack.c.l.b16 %v3207
        %v3247 = vunpack.c.l.b16 %v3208
        %v3248 = vunpack.c.l.b16 %v3209
        %v3249 = vunpack.c.l.b16 %v3210
        %v3250 = vunpack.c.l.b16 %v3211
        %v3251 = vunpack.c.l.b16 %v3212
        %v3252 = vunpack.c.l.b16 %v3213
        %v3253 = vunpack.c.l.b16 %v3214
        %v3254 = vunpack.c.l.b16 %v3215
        %v3255 = vunpack.c.l.b16 %v3216
        %v3256 = vunpack.c.l.b16 %v3217
        %v3257 = vunpack.c.l.b16 %v3218
        %v3258 = vunpack.c.l.b16 %v3219
        %v3259 = vunpack.c.l.b16 %v3220
        %v3260 = vunpack.c.l.b16 %v3221
        %v3261 = vpack.c.b16 %v3246, %v3245
        %v3262 = vpack.c.b16 %v3248, %v3247
        %v3263 = vpack.c.b16 %v3250, %v3249
        %v3264 = vpack.c.b16 %v3252, %v3251
        %v3265 = vpack.c.b16 %v3254, %v3253
        %v3266 = vpack.c.b16 %v3256, %v3255
        %v3267 = vpack.c.b16 %v3258, %v3257
        %v3268 = vpack.c.b16 %v3260, %v3259
        %3277 = vmatprep.subr.bf16.mxu0 0
        %3278 = vmatpush1.bf16.msra.mxu0 %v3268
        %3279 = vmatprep.subr.bf16.mxu0 0
        %3280 = vmatpush1.bf16.msra.mxu0 %v3267
        %3281 = vmatprep.subr.bf16.mxu0 0
        %3282 = vmatpush1.bf16.msra.mxu0 %v3266
        %3283 = vmatprep.subr.bf16.mxu0 0
        %3284 = vmatpush1.bf16.msra.mxu0 %v3265
        %3285 = vmatprep.subr.bf16.mxu0 0
        %3286 = vmatpush1.bf16.msra.mxu0 %v3264
        %3287 = vmatprep.subr.bf16.mxu0 0
        %3288 = vmatpush1.bf16.msra.mxu0 %v3263
        %3289 = vmatprep.subr.bf16.mxu0 0
        %3290 = vmatpush1.bf16.msra.mxu0 %v3262
        %3291 = vmatprep.subr.bf16.mxu0 0
        %3292 = vmatpush1.bf16.msra.mxu0 %v3261
        %3293 = vmatprep.subr.bf16.mxu0 0
        %3294 = vmatpush2.bf16.msra.mxu0 0
        %3295 = vmatprep.subr.bf16.mxu0 0
        %3296 = vmatpush2.bf16.msra.mxu0 0
        %3297 = vmatprep.subr.bf16.mxu0 0
        %3298 = vmatpush2.bf16.msra.mxu0 0
        %3299 = vmatprep.subr.bf16.mxu0 0
        %3300 = vmatpush2.bf16.msra.mxu0 0
        %3301 = vmatprep.subr.bf16.mxu0 0
        %3302 = vmatpush2.bf16.msra.mxu0 0
        %3303 = vmatprep.subr.bf16.mxu0 0
        %3304 = vmatpush2.bf16.msra.mxu0 0
        %3305 = vmatprep.subr.bf16.mxu0 0
        %3306 = vmatpush2.bf16.msra.mxu0 0
        %3307 = vmatprep.subr.bf16.mxu0 0
        %3308 = vmatpush2.bf16.msra.mxu0 0
        %3309 = vmatprep.mubr.bf16.mxu0 0
        %3310 = vmatmul.mubr.bf16.gmra.mxu0 %v3205
        %v3311 = vpop.f32.mrf.mxu0
        %v3312 = vadd.f32 %v3227, %v3311
        %v3313 = vpop.f32.mrf.mxu0
        %v3314 = vpop.f32.mrf.mxu0
        %v3315 = vpop.f32.mrf.mxu0
        %3316 = vdwg.mxu0
        %3317 = vst [vmem:[%s680] sm:$0xff] %v3312
        %s3318 = sand.u32 %s416, 1
        %s3319 = scalar_lea.sflag [#allocation5], %s3318
        %s3320 = sand.u32 %s416, 1
        %s3321 = smul.addr %s3320, 8
        %s3322 = scalar_lea.vmem [#allocation17], %s3321
        // Predicated region
        $region121: #{tpu_custom_call.1} parent=87 // pred_check
          %p3323 = pneg %p426
        $region122: #{tpu_custom_call.1} parent=87 // pred_check_branch
          %3325 = sbr.rel (%p3323) target = $region124
        $region123: #{tpu_custom_call.1} parent=87 // pred_region
          %s3327 = ssub.s32 128, 128
          %3328 = vsyncadd %s3319, %s3327
          %s3329 = smul.addr %s36, 128
          %s3330 = scalar_lea.hbm %s17, %s3329
          %s3332 = sshll.u32 %s3322, 4
          %s3333 = int_to_ptr.vmem [resolvable:$true] %s3332
          %3335 = dma.vmem_to_hbm [thread:$0]  %s3333, 128, %s3330, %s3319
        $region124: #{tpu_custom_call.1} parent=87 // pred_fallthru
          _
      $region88: #{tpu_custom_call.1} parent=5 // pred_fallthru
        _
      %p3336 = scmp.le.s32.totalorder 2, %s31
      // Predicated region
      $region125: #{tpu_custom_call.1} parent=5 // pred_check
        %p3337 = pneg %p3336
      $region126: #{tpu_custom_call.1} parent=5 // pred_check_branch
        %3339 = sbr.rel (%p3337) target = $region128
      $region127: #{tpu_custom_call.1} parent=5 // pred_region
        %s3340 = ssub.s32 %s31, 2
        // Predicated region
        $region129: #{tpu_custom_call.1} parent=127 // pred_check
          %p3341 = pneg %p432
        $region130: #{tpu_custom_call.1} parent=127 // pred_check_branch
          %3343 = sbr.rel (%p3341) target = $region132
        $region131: #{tpu_custom_call.1} parent=127 // pred_region
          %s3344 = sand.u32 %s417, 1
          %s3345 = scalar_lea.sflag [#allocation5], %s3344
          %s3346 = sand.u32 %s417, 1
          %s3347 = smul.addr %s3346, 8
          %s3348 = scalar_lea.vmem [#allocation17], %s3347
          %3349 = dma.done %s3345, 128
        $region132: #{tpu_custom_call.1} parent=127 // pred_fallthru
          _
      $region128: #{tpu_custom_call.1} parent=5 // pred_fallthru
        _
    $region6: #{tpu_custom_call.1} parent=1 // loop_footer
      %s35 = sadd.s32 1, %s31
    $region7: #{tpu_custom_call.1} parent=1 // loop_footer_branch
      %30 = sbr.rel target = $region3
    $region8: #{tpu_custom_call.1} parent=1 // loop_exit
      _
    %3350 = vsyncpa [#allocation4], 1
    %s3351 = scalar_lea.sflag [#allocation4], 1
    %3352 = vsyncpa %s3351, 1
    %3353 = vsyncpa [#allocation7], 1
    %3354 = vsyncpa [#allocation10], 1
    %3355 = vsyncpa [#allocation13], 1
    %3356 = vsyncpa [#allocation16], 1
    %3357 = vsyncpa [#allocation5], 1
    %s3358 = scalar_lea.sflag [#allocation5], 1
    %3359 = vsyncpa %s3358, 1

</llo_original>
